<compile_context>
chip_gen: v6e
topology: v6e:2x2x1
jax: 0.10.0
libtpu: 0.0.40
codegen_flags: <defaults>
</compile_context>

<pallas_src>
import functools

import jax
import jax.numpy as jnp
import numpy as np
from jax.experimental import pallas as pl
from jax.experimental.pallas import tpu as pltpu

_EPS = 1e-5
_SHIFTS2 = ((0, 0), (0, 1), (1, 0), (1, 1))   # stride-2 input shifts (dy, dx)


def _round_up(n, m):
    return ((n + m - 1) // m) * m


# ---------------------------------------------------------------------------
# fused kernel: 4 layers, parity-carried flat-spatial layout
#   flat index of a "block" pixel (h, w) is  h*wp + w  (wp = W + 2 row stride)
#   columns outside the valid set are masked to exact 0 so that "+1" shifts
#   that step off the image edge read genuine zeros (zero border semantics).
# ---------------------------------------------------------------------------
def _decoder_kernel(x_ref, m_ref, w1, b1, w2, b2, w3, b3, w4, b4, o_ref,
                    a1, a2, a3, *, wp, seg, c2, c3):
    maskf = m_ref[...]                         # (1, seg) f32 {0,1}
    mask1 = maskf > 0.5

    def mxu(w_ref, parts):
        xcat = jnp.concatenate(parts, axis=0)  # bf16 im2col RHS
        return jnp.dot(w_ref[...], xcat, preferred_element_type=jnp.float32)

    # -------- layer 1: ConvT(64->64, k3, s1, p1) + BN + ReLU ----------------
    x = x_ref[0]                               # (64, seg+128) bordered flat image
    offs1 = [(dy + 1) * wp + (dx + 1) for dy in (-1, 0, 1) for dx in (-1, 0, 1)]
    parts = [x[:, d:d + seg].astype(jnp.bfloat16) for d in offs1]
    y = mxu(w1, parts) + b1[...]               # (64, seg)
    a1[:, :seg] = jnp.where(mask1, jnp.maximum(y, 0.0), 0.0)

    # -------- layer 2: ConvT(64->32, k3, s2, p1, op1) + BN + ReLU -----------
    parts = [a1[:, (sy * wp + sx):(sy * wp + sx) + seg].astype(jnp.bfloat16)
             for sy, sx in _SHIFTS2]
    y = mxu(w2, parts) + b2[...]               # (4*32, seg); rows = (q2, co)
    a2[:, :seg] = jnp.where(mask1, jnp.maximum(y, 0.0), 0.0)

    # -------- layer 3: ConvT(32->16, k3, s2, p1, op1) + BN + ReLU -----------
    # a2 rows = (q2 = py2*2+px2) x 32ch, cols = flat(seg)
    parts = []
    for sy, sx in _SHIFTS2:
        cols = []
        for ry in range(2):
            for rx in range(2):
                ty, tx = ry + sy, rx + sx
                d = wp * (ty // 2) + (tx // 2)          # wrap -> next block pixel
                q = (ty % 2) * 2 + (tx % 2)             # source parity row-block
                cols.append(a2[q * c2:(q + 1) * c2, d:d + seg].astype(jnp.bfloat16))
        parts.append(jnp.concatenate(cols, axis=1))     # (32, 4*seg)
    y = mxu(w3, parts) + b3[...]               # (4*16, 4*seg); rows=(q3,co) cols=(p2,flat)
    mask4 = jnp.concatenate([maskf] * 4, axis=1) > 0.5
    a3[:, :4 * seg] = jnp.where(mask4, jnp.maximum(y, 0.0), 0.0)

    # -------- layer 4: ConvT(16->3, k3, s2, p1, op1), conv bias only --------
    # a3 rows = (q3 = py3*2+px3) x 16ch, cols = (p2 = ry2*2+rx2) x flat(seg)
    parts = []
    for sy, sx in _SHIFTS2:
        cols = []
        for ry in range(4):
            for rx in range(4):
                ty, tx = ry + sy, rx + sx
                d = wp * (ty // 4) + (tx // 4)
                ty, tx = ty % 4, tx % 4
                q = (ty % 2) * 2 + (tx % 2)             # row block of a3
                cb = (ty // 2) * 2 + (tx // 2)          # column block of a3
                cols.append(
                    a3[q * c3:(q + 1) * c3,
                       cb * seg + d: cb * seg + d + seg].astype(jnp.bfloat16))
        parts.append(jnp.concatenate(cols, axis=1))     # (16, 16*seg)
    o_ref[0] = mxu(w4, parts) + b4[...]        # (12, 16*seg); rows=(q4,co) cols=(p4,flat)


# ---------------------------------------------------------------------------
# one-time parameter preparation (BN folding + weight repacking), hoisted out
# of the per-call forward.
# ---------------------------------------------------------------------------
def _pack_s2_weight(w, scale):
    """Block-sparse parity weight for ConvT(k3, s2, p1, op1). w: (Cin,Cout,3,3)."""
    cin, cout = w.shape[0], w.shape[1]
    wb = jnp.zeros((4 * cout, 4 * cin), jnp.float32)
    # (output parity q=(py,px) row-major, input shift s in _SHIFTS2, ky, kx)
    entries = [(0, 0, 1, 1),
               (1, 0, 1, 2), (1, 1, 1, 0),
               (2, 0, 2, 1), (2, 2, 0, 1),
               (3, 0, 2, 2), (3, 1, 2, 0), (3, 2, 0, 2), (3, 3, 0, 0)]
    for q, s, ky, kx in entries:
        blk = scale[:, None] * jnp.transpose(w[:, :, ky, kx])       # (Cout, Cin)
        wb = wb.at[q * cout:(q + 1) * cout, s * cin:(s + 1) * cin].set(blk)
    return wb


def prepare_params(params, H, W):
    wp = W + 2
    seg = _round_up(H * wp + W + 1, 128)
    assert 2 * wp + 2 <= 128 and (H + 2) * wp <= seg + 128

    # layer 1 (stride 1): fold BN scale into rows, concat the 9 taps (im2col).
    w1, bc1, g1, bt1, mu1, var1 = params[0]
    s1 = g1 / jnp.sqrt(var1 + _EPS)
    t1 = s1 * (bc1 - mu1) + bt1
    taps = [(dy, dx) for dy in (-1, 0, 1) for dx in (-1, 0, 1)]
    w1p = jnp.concatenate(
        [s1[:, None] * jnp.transpose(w1[:, :, 1 - dy, 1 - dx]) for dy, dx in taps],
        axis=1)                                                     # (64, 576)
    packed = [w1p.astype(jnp.bfloat16), t1.reshape(-1, 1).astype(jnp.float32)]

    # layers 2..4 (stride 2): block-sparse parity weights, BN folded (layer 4: none).
    for li in (1, 2, 3):
        w, bc, g, bt, mu, var = params[li]
        if g is not None:
            s = g / jnp.sqrt(var + _EPS)
            t = s * (bc - mu) + bt
        else:
            s = jnp.ones_like(bc)
            t = bc
        packed.append(_pack_s2_weight(w, s).astype(jnp.bfloat16))
        packed.append(jnp.tile(t.reshape(1, -1), (4, 1)).reshape(-1, 1)
                      .astype(jnp.float32))

    # valid-position mask: flat j = h*wp + w with h < H, w < W
    j = np.arange(seg)
    mask = ((j < H * wp) & (j % wp < W)).astype(np.float32).reshape(1, seg)
    packed.append(jnp.asarray(mask))
    return tuple(packed)


# ---------------------------------------------------------------------------
# forward pass (jit-able): pad/flatten input, one fused pallas_call, one
# final un-permute of the carried parity layout.
# ---------------------------------------------------------------------------
def decoder_forward(x, packed):
    w1, b1, w2, b2, w3, b3, w4, b4, mask = packed
    B, cin, H, W = x.shape
    wp = W + 2
    seg = mask.shape[1]
    c2 = w2.shape[0] // 4
    c3 = w3.shape[0] // 4
    c4 = w4.shape[0] // 4
    lin = seg + 128

    # bordered, flattened, zero-padded layer-1 input (row stride wp)
    xp = jnp.pad(x, ((0, 0), (0, 0), (1, 1), (1, 1))).reshape(B, cin, (H + 2) * wp)
    xf = jnp.pad(xp, ((0, 0), (0, 0), (0, lin - (H + 2) * wp)))

    kern = functools.partial(_decoder_kernel, wp=wp, seg=seg, c2=c2, c3=c3)
    out_k = pl.pallas_call(
        kern,
        out_shape=jax.ShapeDtypeStruct((B, 4 * c4, 16 * seg), jnp.float32),
        grid=(B,),
        in_specs=[
            pl.BlockSpec((1, cin, lin), lambda b: (b, 0, 0)),
            pl.BlockSpec((1, seg), lambda b: (0, 0)),
            pl.BlockSpec(w1.shape, lambda b: (0, 0)),
            pl.BlockSpec(b1.shape, lambda b: (0, 0)),
            pl.BlockSpec(w2.shape, lambda b: (0, 0)),
            pl.BlockSpec(b2.shape, lambda b: (0, 0)),
            pl.BlockSpec(w3.shape, lambda b: (0, 0)),
            pl.BlockSpec(b3.shape, lambda b: (0, 0)),
            pl.BlockSpec(w4.shape, lambda b: (0, 0)),
            pl.BlockSpec(b4.shape, lambda b: (0, 0)),
        ],
        out_specs=pl.BlockSpec((1, 4 * c4, 16 * seg), lambda b: (b, 0, 0)),
        scratch_shapes=[
            pltpu.VMEM((w1.shape[0], seg + 128), jnp.float32),   # layer-1 out
            pltpu.VMEM((4 * c2, seg + 128), jnp.float32),        # layer-2 out
            pltpu.VMEM((4 * c3, 4 * seg + 128), jnp.float32),    # layer-3 out
        ],
        compiler_params=pltpu.CompilerParams(dimension_semantics=("parallel",)),
    )(xf, mask, w1, b1, w2, b2, w3, b3, w4, b4)

    # un-permute carried parities -> (B, 3, 8H, 8W)
    # rows = (py4, px4, co), cols = (ry, rx, flat)   with flat = h*wp + w
    t = out_k.reshape(B, 2, 2, c4, 4, 4, seg)[..., :H * wp]
    t = t.reshape(B, 2, 2, c4, 4, 4, H, wp)[..., :W]
    # (b, py, px, co, ry, rx, h, w) -> out[b, co, 8h+2ry+py, 8w+2rx+px]
    out = jnp.transpose(t, (0, 3, 6, 4, 1, 7, 5, 2)).reshape(B, c4, 8 * H, 8 * W)
    return out


# ---------------------------------------------------------------------------
# pure-JAX reference (correctness check only)
# ---------------------------------------------------------------------------
def _ref_convt(x, w, b, stride, out_pad):
    k, p = 3, 1
    wf = jnp.transpose(w[:, :, ::-1, ::-1], (1, 0, 2, 3))
    pad = (k - 1 - p, k - 1 - p + out_pad)
    y = jax.lax.conv_general_dilated(
        x, wf, window_strides=(1, 1), padding=(pad, pad),
        lhs_dilation=(stride, stride), rhs_dilation=(1, 1),
        dimension_numbers=("NCHW", "OIHW", "NCHW"),
        precision=jax.lax.Precision.HIGHEST)
    return y + b.reshape(1, -1, 1, 1)


def reference_decoder(x, params):
    cfg = [(1, 0, True), (2, 1, True), (2, 1, True), (2, 1, False)]
    for (stride, op, has_bn), prm in zip(cfg, params):
        w, bc, g, bt, mu, var = prm
        x = _ref_convt(x, w, bc, stride, op)
        if has_bn:
            x = (g.reshape(1, -1, 1, 1) * (x - mu.reshape(1, -1, 1, 1))
                 / jnp.sqrt(var.reshape(1, -1, 1, 1) + _EPS) + bt.reshape(1, -1, 1, 1))
            x = jnp.maximum(x, 0.0)
    return x


# ---------------------------------------------------------------------------
if __name__ == "__main__":
    key = jax.random.PRNGKey(0)
    B, H, W = 2, 8, 8
    layer_cfg = [(64, 64), (64, 32), (32, 16), (16, 3)]

    params = []
    for li, (cin, cout) in enumerate(layer_cfg):
        key, k1, k2, k3, k4, k5, k6 = jax.random.split(key, 7)
        w = 0.05 * jax.random.normal(k1, (cin, cout, 3, 3), jnp.float32)
        bc = 0.1 * jax.random.normal(k2, (cout,), jnp.float32)
        if li < 3:
            g = 1.0 + 0.1 * jax.random.normal(k3, (cout,), jnp.float32)
            bt = 0.1 * jax.random.normal(k4, (cout,), jnp.float32)
            mu = 0.1 * jax.random.normal(k5, (cout,), jnp.float32)
            var = 0.5 + jnp.abs(jax.random.normal(k6, (cout,), jnp.float32))
            params.append((w, bc, g, bt, mu, var))
        else:
            params.append((w, bc, None, None, None, None))

    key, kx = jax.random.split(key)
    x = jax.random.normal(kx, (B, 64, H, W), jnp.float32)

    packed = prepare_params(params, H, W)          # one-time repack (hoisted)
    fwd = jax.jit(decoder_forward)
    out = jax.block_until_ready(fwd(x, packed))

    ref = reference_decoder(x, params)
    np.testing.assert_allclose(np.asarray(out), np.asarray(ref), rtol=2e-2, atol=2e-2)

    print("KERNEL_OK")
</pallas_src>

<mosaic_0001>
module attributes {stable_mosaic.version = 11 : i64} {
  func.func @_decoder_kernel(%arg0: i32, %arg1: memref<1x64x256xf32, #tpu.memory_space<vmem>>, %arg2: memref<1x128xf32, #tpu.memory_space<vmem>>, %arg3: memref<64x576xbf16, #tpu.memory_space<vmem>>, %arg4: memref<64x1xf32, #tpu.memory_space<vmem>>, %arg5: memref<128x256xbf16, #tpu.memory_space<vmem>>, %arg6: memref<128x1xf32, #tpu.memory_space<vmem>>, %arg7: memref<64x128xbf16, #tpu.memory_space<vmem>>, %arg8: memref<64x1xf32, #tpu.memory_space<vmem>>, %arg9: memref<12x64xbf16, #tpu.memory_space<vmem>>, %arg10: memref<12x1xf32, #tpu.memory_space<vmem>>, %arg11: memref<1x12x2048xf32, #tpu.memory_space<vmem>>, %arg12: memref<64x256xf32, #tpu.memory_space<vmem>>, %arg13: memref<128x256xf32, #tpu.memory_space<vmem>>, %arg14: memref<64x640xf32, #tpu.memory_space<vmem>>) attributes {dimension_semantics = [#tpu.dimension_semantics<parallel>], iteration_bounds = array<i64: 2>, scalar_prefetch = 0 : i64, scratch_operands = 3 : i64, tpu.core_type = #tpu.core_type<tc>, window_params = [{transform_indices = @transform_0, window_bounds = array<i64: 1, 64, 256>}, {pipeline_mode = #tpu.pipeline_mode<synchronous>, transform_indices = @transform_1, window_bounds = array<i64: 1, 128>}, {pipeline_mode = #tpu.pipeline_mode<synchronous>, transform_indices = @transform_2, window_bounds = array<i64: 64, 576>}, {pipeline_mode = #tpu.pipeline_mode<synchronous>, transform_indices = @transform_3, window_bounds = array<i64: 64, 1>}, {pipeline_mode = #tpu.pipeline_mode<synchronous>, transform_indices = @transform_4, window_bounds = array<i64: 128, 256>}, {pipeline_mode = #tpu.pipeline_mode<synchronous>, transform_indices = @transform_5, window_bounds = array<i64: 128, 1>}, {pipeline_mode = #tpu.pipeline_mode<synchronous>, transform_indices = @transform_6, window_bounds = array<i64: 64, 128>}, {pipeline_mode = #tpu.pipeline_mode<synchronous>, transform_indices = @transform_7, window_bounds = array<i64: 64, 1>}, {pipeline_mode = #tpu.pipeline_mode<synchronous>, transform_indices = @transform_8, window_bounds = array<i64: 12, 64>}, {pipeline_mode = #tpu.pipeline_mode<synchronous>, transform_indices = @transform_9, window_bounds = array<i64: 12, 1>}, {transform_indices = @transform_10, window_bounds = array<i64: 1, 12, 2048>}]} {
    %c0 = arith.constant 0 : index
    %c0_0 = arith.constant 0 : index
    %0 = vector.load %arg2[%c0, %c0_0] : memref<1x128xf32, #tpu.memory_space<vmem>>, vector<1x128xf32>
    %cst = arith.constant 5.000000e-01 : f32
    %1 = vector.broadcast %cst : f32 to vector<1x128xf32>
    %2 = arith.cmpf ogt, %0, %1 : vector<1x128xf32>
    %c0_1 = arith.constant 0 : index
    %c0_2 = arith.constant 0 : index
    %c0_3 = arith.constant 0 : index
    %3 = vector.load %arg1[%c0_1, %c0_2, %c0_3] : memref<1x64x256xf32, #tpu.memory_space<vmem>>, vector<1x64x256xf32>
    %4 = vector.shape_cast %3 : vector<1x64x256xf32> to vector<64x256xf32>
    %5 = vector.extract_strided_slice %4 {offsets = [0, 0], sizes = [64, 128], strides = [1, 1]} : vector<64x256xf32> to vector<64x128xf32>
    %6 = arith.truncf %5 : vector<64x128xf32> to vector<64x128xbf16>
    %7 = vector.extract_strided_slice %4 {offsets = [0, 1], sizes = [64, 128], strides = [1, 1]} : vector<64x256xf32> to vector<64x128xf32>
    %8 = arith.truncf %7 : vector<64x128xf32> to vector<64x128xbf16>
    %9 = vector.extract_strided_slice %4 {offsets = [0, 2], sizes = [64, 128], strides = [1, 1]} : vector<64x256xf32> to vector<64x128xf32>
    %10 = arith.truncf %9 : vector<64x128xf32> to vector<64x128xbf16>
    %11 = vector.extract_strided_slice %4 {offsets = [0, 10], sizes = [64, 128], strides = [1, 1]} : vector<64x256xf32> to vector<64x128xf32>
    %12 = arith.truncf %11 : vector<64x128xf32> to vector<64x128xbf16>
    %13 = vector.extract_strided_slice %4 {offsets = [0, 11], sizes = [64, 128], strides = [1, 1]} : vector<64x256xf32> to vector<64x128xf32>
    %14 = arith.truncf %13 : vector<64x128xf32> to vector<64x128xbf16>
    %15 = vector.extract_strided_slice %4 {offsets = [0, 12], sizes = [64, 128], strides = [1, 1]} : vector<64x256xf32> to vector<64x128xf32>
    %16 = arith.truncf %15 : vector<64x128xf32> to vector<64x128xbf16>
    %17 = vector.extract_strided_slice %4 {offsets = [0, 20], sizes = [64, 128], strides = [1, 1]} : vector<64x256xf32> to vector<64x128xf32>
    %18 = arith.truncf %17 : vector<64x128xf32> to vector<64x128xbf16>
    %19 = vector.extract_strided_slice %4 {offsets = [0, 21], sizes = [64, 128], strides = [1, 1]} : vector<64x256xf32> to vector<64x128xf32>
    %20 = arith.truncf %19 : vector<64x128xf32> to vector<64x128xbf16>
    %21 = vector.extract_strided_slice %4 {offsets = [0, 22], sizes = [64, 128], strides = [1, 1]} : vector<64x256xf32> to vector<64x128xf32>
    %22 = arith.truncf %21 : vector<64x128xf32> to vector<64x128xbf16>
    %23 = tpu.concatenate %6, %8, %10, %12, %14, %16, %18, %20, %22 in 0 : vector<64x128xbf16>, vector<64x128xbf16>, vector<64x128xbf16>, vector<64x128xbf16>, vector<64x128xbf16>, vector<64x128xbf16>, vector<64x128xbf16>, vector<64x128xbf16>, vector<64x128xbf16> -> vector<576x128xbf16>
    %c0_4 = arith.constant 0 : index
    %c0_5 = arith.constant 0 : index
    %24 = vector.load %arg3[%c0_4, %c0_5] : memref<64x576xbf16, #tpu.memory_space<vmem>>, vector<64x576xbf16>
    %cst_6 = arith.constant dense<0.000000e+00> : vector<64x128xf32>
    %25 = tpu.matmul %24, %23, %cst_6 {dimension_numbers = #tpu.dot_dimension_numbers<[1], [0], [0], [1], [0, 0, 1, 1], [], []>} : vector<64x576xbf16>, vector<576x128xbf16>, vector<64x128xf32> -> vector<64x128xf32>
    %c0_7 = arith.constant 0 : index
    %c0_8 = arith.constant 0 : index
    %26 = vector.load %arg4[%c0_7, %c0_8] : memref<64x1xf32, #tpu.memory_space<vmem>>, vector<64x1xf32>
    %27 = vector.broadcast %26 : vector<64x1xf32> to vector<64x128xf32>
    %28 = arith.addf %25, %27 : vector<64x128xf32>
    %cst_9 = arith.constant 0.000000e+00 : f32
    %29 = vector.broadcast %cst_9 : f32 to vector<64x128xf32>
    %30 = arith.maximumf %28, %29 : vector<64x128xf32>
    %cst_10 = arith.constant 0.000000e+00 : f32
    %31 = vector.shape_cast %2 : vector<1x128xi1> to vector<1x128xi1>
    %32 = vector.broadcast %31 : vector<1x128xi1> to vector<64x128xi1>
    %33 = vector.broadcast %cst_10 : f32 to vector<64x128xf32>
    %34 = arith.select %32, %30, %33 : vector<64x128xi1>, vector<64x128xf32>
    %c0_11 = arith.constant 0 : index
    %c0_12 = arith.constant 0 : index
    %35 = vector.load %arg12[%c0_11, %c0_12] : memref<64x256xf32, #tpu.memory_space<vmem>>, vector<64x128xf32>
    tpu.vector_store %arg12[%c0_11, %c0_12], %34 {strides = array<i32>} : memref<64x256xf32, #tpu.memory_space<vmem>>, vector<64x128xf32>,
    %c0_13 = arith.constant 0 : index
    %c0_14 = arith.constant 0 : index
    %36 = vector.load %arg12[%c0_13, %c0_14] : memref<64x256xf32, #tpu.memory_space<vmem>>, vector<64x128xf32>
    %37 = arith.truncf %36 : vector<64x128xf32> to vector<64x128xbf16>
    %c0_15 = arith.constant 0 : index
    %c1 = arith.constant 1 : index
    %38 = vector.load %arg12[%c0_15, %c1] : memref<64x256xf32, #tpu.memory_space<vmem>>, vector<64x128xf32>
    %39 = arith.truncf %38 : vector<64x128xf32> to vector<64x128xbf16>
    %c0_16 = arith.constant 0 : index
    %c10 = arith.constant 10 : index
    %40 = vector.load %arg12[%c0_16, %c10] : memref<64x256xf32, #tpu.memory_space<vmem>>, vector<64x128xf32>
    %41 = arith.truncf %40 : vector<64x128xf32> to vector<64x128xbf16>
    %c0_17 = arith.constant 0 : index
    %c11 = arith.constant 11 : index
    %42 = vector.load %arg12[%c0_17, %c11] : memref<64x256xf32, #tpu.memory_space<vmem>>, vector<64x128xf32>
    %43 = arith.truncf %42 : vector<64x128xf32> to vector<64x128xbf16>
    %44 = tpu.concatenate %37, %39, %41, %43 in 0 : vector<64x128xbf16>, vector<64x128xbf16>, vector<64x128xbf16>, vector<64x128xbf16> -> vector<256x128xbf16>
    %c0_18 = arith.constant 0 : index
    %c0_19 = arith.constant 0 : index
    %45 = vector.load %arg5[%c0_18, %c0_19] : memref<128x256xbf16, #tpu.memory_space<vmem>>, vector<128x256xbf16>
    %cst_20 = arith.constant dense<0.000000e+00> : vector<128x128xf32>
    %46 = tpu.matmul %45, %44, %cst_20 {dimension_numbers = #tpu.dot_dimension_numbers<[1], [0], [0], [1], [0, 0, 1, 1], [], []>} : vector<128x256xbf16>, vector<256x128xbf16>, vector<128x128xf32> -> vector<128x128xf32>
    %c0_21 = arith.constant 0 : index
    %c0_22 = arith.constant 0 : index
    %47 = vector.load %arg6[%c0_21, %c0_22] : memref<128x1xf32, #tpu.memory_space<vmem>>, vector<128x1xf32>
    %48 = vector.broadcast %47 : vector<128x1xf32> to vector<128x128xf32>
    %49 = arith.addf %46, %48 : vector<128x128xf32>
    %cst_23 = arith.constant 0.000000e+00 : f32
    %50 = vector.broadcast %cst_23 : f32 to vector<128x128xf32>
    %51 = arith.maximumf %49, %50 : vector<128x128xf32>
    %cst_24 = arith.constant 0.000000e+00 : f32
    %52 = vector.shape_cast %2 : vector<1x128xi1> to vector<1x128xi1>
    %53 = vector.broadcast %52 : vector<1x128xi1> to vector<128x128xi1>
    %54 = vector.broadcast %cst_24 : f32 to vector<128x128xf32>
    %55 = arith.select %53, %51, %54 : vector<128x128xi1>, vector<128x128xf32>
    %c0_25 = arith.constant 0 : index
    %c0_26 = arith.constant 0 : index
    %56 = vector.load %arg13[%c0_25, %c0_26] : memref<128x256xf32, #tpu.memory_space<vmem>>, vector<128x128xf32>
    tpu.vector_store %arg13[%c0_25, %c0_26], %55 {strides = array<i32>} : memref<128x256xf32, #tpu.memory_space<vmem>>, vector<128x128xf32>,
    %c0_27 = arith.constant 0 : index
    %c0_28 = arith.constant 0 : index
    %57 = vector.load %arg13[%c0_27, %c0_28] : memref<128x256xf32, #tpu.memory_space<vmem>>, vector<32x128xf32>
    %58 = arith.truncf %57 : vector<32x128xf32> to vector<32x128xbf16>
    %c32 = arith.constant 32 : index
    %c0_29 = arith.constant 0 : index
    %59 = vector.load %arg13[%c32, %c0_29] : memref<128x256xf32, #tpu.memory_space<vmem>>, vector<32x128xf32>
    %60 = arith.truncf %59 : vector<32x128xf32> to vector<32x128xbf16>
    %c64 = arith.constant 64 : index
    %c0_30 = arith.constant 0 : index
    %61 = vector.load %arg13[%c64, %c0_30] : memref<128x256xf32, #tpu.memory_space<vmem>>, vector<32x128xf32>
    %62 = arith.truncf %61 : vector<32x128xf32> to vector<32x128xbf16>
    %c96 = arith.constant 96 : index
    %c0_31 = arith.constant 0 : index
    %63 = vector.load %arg13[%c96, %c0_31] : memref<128x256xf32, #tpu.memory_space<vmem>>, vector<32x128xf32>
    %64 = arith.truncf %63 : vector<32x128xf32> to vector<32x128xbf16>
    %65 = tpu.concatenate %58, %60, %62, %64 in 1 : vector<32x128xbf16>, vector<32x128xbf16>, vector<32x128xbf16>, vector<32x128xbf16> -> vector<32x512xbf16>
    %c32_32 = arith.constant 32 : index
    %c0_33 = arith.constant 0 : index
    %66 = vector.load %arg13[%c32_32, %c0_33] : memref<128x256xf32, #tpu.memory_space<vmem>>, vector<32x128xf32>
    %67 = arith.truncf %66 : vector<32x128xf32> to vector<32x128xbf16>
    %c0_34 = arith.constant 0 : index
    %c1_35 = arith.constant 1 : index
    %68 = vector.load %arg13[%c0_34, %c1_35] : memref<128x256xf32, #tpu.memory_space<vmem>>, vector<32x128xf32>
    %69 = arith.truncf %68 : vector<32x128xf32> to vector<32x128xbf16>
    %c96_36 = arith.constant 96 : index
    %c0_37 = arith.constant 0 : index
    %70 = vector.load %arg13[%c96_36, %c0_37] : memref<128x256xf32, #tpu.memory_space<vmem>>, vector<32x128xf32>
    %71 = arith.truncf %70 : vector<32x128xf32> to vector<32x128xbf16>
    %c64_38 = arith.constant 64 : index
    %c1_39 = arith.constant 1 : index
    %72 = vector.load %arg13[%c64_38, %c1_39] : memref<128x256xf32, #tpu.memory_space<vmem>>, vector<32x128xf32>
    %73 = arith.truncf %72 : vector<32x128xf32> to vector<32x128xbf16>
    %74 = tpu.concatenate %67, %69, %71, %73 in 1 : vector<32x128xbf16>, vector<32x128xbf16>, vector<32x128xbf16>, vector<32x128xbf16> -> vector<32x512xbf16>
    %c64_40 = arith.constant 64 : index
    %c0_41 = arith.constant 0 : index
    %75 = vector.load %arg13[%c64_40, %c0_41] : memref<128x256xf32, #tpu.memory_space<vmem>>, vector<32x128xf32>
    %76 = arith.truncf %75 : vector<32x128xf32> to vector<32x128xbf16>
    %c96_42 = arith.constant 96 : index
    %c0_43 = arith.constant 0 : index
    %77 = vector.load %arg13[%c96_42, %c0_43] : memref<128x256xf32, #tpu.memory_space<vmem>>, vector<32x128xf32>
    %78 = arith.truncf %77 : vector<32x128xf32> to vector<32x128xbf16>
    %c0_44 = arith.constant 0 : index
    %c10_45 = arith.constant 10 : index
    %79 = vector.load %arg13[%c0_44, %c10_45] : memref<128x256xf32, #tpu.memory_space<vmem>>, vector<32x128xf32>
    %80 = arith.truncf %79 : vector<32x128xf32> to vector<32x128xbf16>
    %c32_46 = arith.constant 32 : index
    %c10_47 = arith.constant 10 : index
    %81 = vector.load %arg13[%c32_46, %c10_47] : memref<128x256xf32, #tpu.memory_space<vmem>>, vector<32x128xf32>
    %82 = arith.truncf %81 : vector<32x128xf32> to vector<32x128xbf16>
    %83 = tpu.concatenate %76, %78, %80, %82 in 1 : vector<32x128xbf16>, vector<32x128xbf16>, vector<32x128xbf16>, vector<32x128xbf16> -> vector<32x512xbf16>
    %c96_48 = arith.constant 96 : index
    %c0_49 = arith.constant 0 : index
    %84 = vector.load %arg13[%c96_48, %c0_49] : memref<128x256xf32, #tpu.memory_space<vmem>>, vector<32x128xf32>
    %85 = arith.truncf %84 : vector<32x128xf32> to vector<32x128xbf16>
    %c64_50 = arith.constant 64 : index
    %c1_51 = arith.constant 1 : index
    %86 = vector.load %arg13[%c64_50, %c1_51] : memref<128x256xf32, #tpu.memory_space<vmem>>, vector<32x128xf32>
    %87 = arith.truncf %86 : vector<32x128xf32> to vector<32x128xbf16>
    %c32_52 = arith.constant 32 : index
    %c10_53 = arith.constant 10 : index
    %88 = vector.load %arg13[%c32_52, %c10_53] : memref<128x256xf32, #tpu.memory_space<vmem>>, vector<32x128xf32>
    %89 = arith.truncf %88 : vector<32x128xf32> to vector<32x128xbf16>
    %c0_54 = arith.constant 0 : index
    %c11_55 = arith.constant 11 : index
    %90 = vector.load %arg13[%c0_54, %c11_55] : memref<128x256xf32, #tpu.memory_space<vmem>>, vector<32x128xf32>
    %91 = arith.truncf %90 : vector<32x128xf32> to vector<32x128xbf16>
    %92 = tpu.concatenate %85, %87, %89, %91 in 1 : vector<32x128xbf16>, vector<32x128xbf16>, vector<32x128xbf16>, vector<32x128xbf16> -> vector<32x512xbf16>
    %93 = tpu.concatenate %65, %74, %83, %92 in 0 : vector<32x512xbf16>, vector<32x512xbf16>, vector<32x512xbf16>, vector<32x512xbf16> -> vector<128x512xbf16>
    %c0_56 = arith.constant 0 : index
    %c0_57 = arith.constant 0 : index
    %94 = vector.load %arg7[%c0_56, %c0_57] : memref<64x128xbf16, #tpu.memory_space<vmem>>, vector<64x128xbf16>
    %cst_58 = arith.constant dense<0.000000e+00> : vector<64x512xf32>
    %95 = tpu.matmul %94, %93, %cst_58 {dimension_numbers = #tpu.dot_dimension_numbers<[1], [0], [0], [1], [0, 0, 1, 1], [], []>} : vector<64x128xbf16>, vector<128x512xbf16>, vector<64x512xf32> -> vector<64x512xf32>
    %c0_59 = arith.constant 0 : index
    %c0_60 = arith.constant 0 : index
    %96 = vector.load %arg8[%c0_59, %c0_60] : memref<64x1xf32, #tpu.memory_space<vmem>>, vector<64x1xf32>
    %97 = vector.broadcast %96 : vector<64x1xf32> to vector<64x512xf32>
    %98 = arith.addf %95, %97 : vector<64x512xf32>
    %99 = tpu.concatenate %0, %0, %0, %0 in 1 : vector<1x128xf32>, vector<1x128xf32>, vector<1x128xf32>, vector<1x128xf32> -> vector<1x512xf32>
    %cst_61 = arith.constant 5.000000e-01 : f32
    %100 = vector.broadcast %cst_61 : f32 to vector<1x512xf32>
    %101 = arith.cmpf ogt, %99, %100 : vector<1x512xf32>
    %cst_62 = arith.constant 0.000000e+00 : f32
    %102 = vector.broadcast %cst_62 : f32 to vector<64x512xf32>
    %103 = arith.maximumf %98, %102 : vector<64x512xf32>
    %cst_63 = arith.constant 0.000000e+00 : f32
    %104 = vector.shape_cast %101 : vector<1x512xi1> to vector<1x512xi1>
    %105 = vector.broadcast %104 : vector<1x512xi1> to vector<64x512xi1>
    %106 = vector.broadcast %cst_63 : f32 to vector<64x512xf32>
    %107 = arith.select %105, %103, %106 : vector<64x512xi1>, vector<64x512xf32>
    %c0_64 = arith.constant 0 : index
    %c0_65 = arith.constant 0 : index
    %108 = vector.load %arg14[%c0_64, %c0_65] : memref<64x640xf32, #tpu.memory_space<vmem>>, vector<64x512xf32>
    tpu.vector_store %arg14[%c0_64, %c0_65], %107 {strides = array<i32>} : memref<64x640xf32, #tpu.memory_space<vmem>>, vector<64x512xf32>,
    %c0_66 = arith.constant 0 : index
    %c0_67 = arith.constant 0 : index
    %109 = vector.load %arg14[%c0_66, %c0_67] : memref<64x640xf32, #tpu.memory_space<vmem>>, vector<16x128xf32>
    %110 = arith.truncf %109 : vector<16x128xf32> to vector<16x128xbf16>
    %c16 = arith.constant 16 : index
    %c0_68 = arith.constant 0 : index
    %111 = vector.load %arg14[%c16, %c0_68] : memref<64x640xf32, #tpu.memory_space<vmem>>, vector<16x128xf32>
    %112 = arith.truncf %111 : vector<16x128xf32> to vector<16x128xbf16>
    %c0_69 = arith.constant 0 : index
    %c128 = arith.constant 128 : index
    %113 = vector.load %arg14[%c0_69, %c128] : memref<64x640xf32, #tpu.memory_space<vmem>>, vector<16x128xf32>
    %114 = arith.truncf %113 : vector<16x128xf32> to vector<16x128xbf16>
    %c16_70 = arith.constant 16 : index
    %c128_71 = arith.constant 128 : index
    %115 = vector.load %arg14[%c16_70, %c128_71] : memref<64x640xf32, #tpu.memory_space<vmem>>, vector<16x128xf32>
    %116 = arith.truncf %115 : vector<16x128xf32> to vector<16x128xbf16>
    %c32_72 = arith.constant 32 : index
    %c0_73 = arith.constant 0 : index
    %117 = vector.load %arg14[%c32_72, %c0_73] : memref<64x640xf32, #tpu.memory_space<vmem>>, vector<16x128xf32>
    %118 = arith.truncf %117 : vector<16x128xf32> to vector<16x128xbf16>
    %c48 = arith.constant 48 : index
    %c0_74 = arith.constant 0 : index
    %119 = vector.load %arg14[%c48, %c0_74] : memref<64x640xf32, #tpu.memory_space<vmem>>, vector<16x128xf32>
    %120 = arith.truncf %119 : vector<16x128xf32> to vector<16x128xbf16>
    %c32_75 = arith.constant 32 : index
    %c128_76 = arith.constant 128 : index
    %121 = vector.load %arg14[%c32_75, %c128_76] : memref<64x640xf32, #tpu.memory_space<vmem>>, vector<16x128xf32>
    %122 = arith.truncf %121 : vector<16x128xf32> to vector<16x128xbf16>
    %c48_77 = arith.constant 48 : index
    %c128_78 = arith.constant 128 : index
    %123 = vector.load %arg14[%c48_77, %c128_78] : memref<64x640xf32, #tpu.memory_space<vmem>>, vector<16x128xf32>
    %124 = arith.truncf %123 : vector<16x128xf32> to vector<16x128xbf16>
    %c0_79 = arith.constant 0 : index
    %c256 = arith.constant 256 : index
    %125 = vector.load %arg14[%c0_79, %c256] : memref<64x640xf32, #tpu.memory_space<vmem>>, vector<16x128xf32>
    %126 = arith.truncf %125 : vector<16x128xf32> to vector<16x128xbf16>
    %c16_80 = arith.constant 16 : index
    %c256_81 = arith.constant 256 : index
    %127 = vector.load %arg14[%c16_80, %c256_81] : memref<64x640xf32, #tpu.memory_space<vmem>>, vector<16x128xf32>
    %128 = arith.truncf %127 : vector<16x128xf32> to vector<16x128xbf16>
    %c0_82 = arith.constant 0 : index
    %c384 = arith.constant 384 : index
    %129 = vector.load %arg14[%c0_82, %c384] : memref<64x640xf32, #tpu.memory_space<vmem>>, vector<16x128xf32>
    %130 = arith.truncf %129 : vector<16x128xf32> to vector<16x128xbf16>
    %c16_83 = arith.constant 16 : index
    %c384_84 = arith.constant 384 : index
    %131 = vector.load %arg14[%c16_83, %c384_84] : memref<64x640xf32, #tpu.memory_space<vmem>>, vector<16x128xf32>
    %132 = arith.truncf %131 : vector<16x128xf32> to vector<16x128xbf16>
    %c32_85 = arith.constant 32 : index
    %c256_86 = arith.constant 256 : index
    %133 = vector.load %arg14[%c32_85, %c256_86] : memref<64x640xf32, #tpu.memory_space<vmem>>, vector<16x128xf32>
    %134 = arith.truncf %133 : vector<16x128xf32> to vector<16x128xbf16>
    %c48_87 = arith.constant 48 : index
    %c256_88 = arith.constant 256 : index
    %135 = vector.load %arg14[%c48_87, %c256_88] : memref<64x640xf32, #tpu.memory_space<vmem>>, vector<16x128xf32>
    %136 = arith.truncf %135 : vector<16x128xf32> to vector<16x128xbf16>
    %c32_89 = arith.constant 32 : index
    %c384_90 = arith.constant 384 : index
    %137 = vector.load %arg14[%c32_89, %c384_90] : memref<64x640xf32, #tpu.memory_space<vmem>>, vector<16x128xf32>
    %138 = arith.truncf %137 : vector<16x128xf32> to vector<16x128xbf16>
    %c48_91 = arith.constant 48 : index
    %c384_92 = arith.constant 384 : index
    %139 = vector.load %arg14[%c48_91, %c384_92] : memref<64x640xf32, #tpu.memory_space<vmem>>, vector<16x128xf32>
    %140 = arith.truncf %139 : vector<16x128xf32> to vector<16x128xbf16>
    %141 = tpu.concatenate %110, %112, %114, %116, %118, %120, %122, %124, %126, %128, %130, %132, %134, %136, %138, %140 in 1 : vector<16x128xbf16>, vector<16x128xbf16>, vector<16x128xbf16>, vector<16x128xbf16>, vector<16x128xbf16>, vector<16x128xbf16>, vector<16x128xbf16>, vector<16x128xbf16>, vector<16x128xbf16>, vector<16x128xbf16>, vector<16x128xbf16>, vector<16x128xbf16>, vector<16x128xbf16>, vector<16x128xbf16>, vector<16x128xbf16>, vector<16x128xbf16> -> vector<16x2048xbf16>
    %c16_93 = arith.constant 16 : index
    %c0_94 = arith.constant 0 : index
    %142 = vector.load %arg14[%c16_93, %c0_94] : memref<64x640xf32, #tpu.memory_space<vmem>>, vector<16x128xf32>
    %143 = arith.truncf %142 : vector<16x128xf32> to vector<16x128xbf16>
    %c0_95 = arith.constant 0 : index
    %c128_96 = arith.constant 128 : index
    %144 = vector.load %arg14[%c0_95, %c128_96] : memref<64x640xf32, #tpu.memory_space<vmem>>, vector<16x128xf32>
    %145 = arith.truncf %144 : vector<16x128xf32> to vector<16x128xbf16>
    %c16_97 = arith.constant 16 : index
    %c128_98 = arith.constant 128 : index
    %146 = vector.load %arg14[%c16_97, %c128_98] : memref<64x640xf32, #tpu.memory_space<vmem>>, vector<16x128xf32>
    %147 = arith.truncf %146 : vector<16x128xf32> to vector<16x128xbf16>
    %c0_99 = arith.constant 0 : index
    %c1_100 = arith.constant 1 : index
    %148 = vector.load %arg14[%c0_99, %c1_100] : memref<64x640xf32, #tpu.memory_space<vmem>>, vector<16x128xf32>
    %149 = arith.truncf %148 : vector<16x128xf32> to vector<16x128xbf16>
    %c48_101 = arith.constant 48 : index
    %c0_102 = arith.constant 0 : index
    %150 = vector.load %arg14[%c48_101, %c0_102] : memref<64x640xf32, #tpu.memory_space<vmem>>, vector<16x128xf32>
    %151 = arith.truncf %150 : vector<16x128xf32> to vector<16x128xbf16>
    %c32_103 = arith.constant 32 : index
    %c128_104 = arith.constant 128 : index
    %152 = vector.load %arg14[%c32_103, %c128_104] : memref<64x640xf32, #tpu.memory_space<vmem>>, vector<16x128xf32>
    %153 = arith.truncf %152 : vector<16x128xf32> to vector<16x128xbf16>
    %c48_105 = arith.constant 48 : index
    %c128_106 = arith.constant 128 : index
    %154 = vector.load %arg14[%c48_105, %c128_106] : memref<64x640xf32, #tpu.memory_space<vmem>>, vector<16x128xf32>
    %155 = arith.truncf %154 : vector<16x128xf32> to vector<16x128xbf16>
    %c32_107 = arith.constant 32 : index
    %c1_108 = arith.constant 1 : index
    %156 = vector.load %arg14[%c32_107, %c1_108] : memref<64x640xf32, #tpu.memory_space<vmem>>, vector<16x128xf32>
    %157 = arith.truncf %156 : vector<16x128xf32> to vector<16x128xbf16>
    %c16_109 = arith.constant 16 : index
    %c256_110 = arith.constant 256 : index
    %158 = vector.load %arg14[%c16_109, %c256_110] : memref<64x640xf32, #tpu.memory_space<vmem>>, vector<16x128xf32>
    %159 = arith.truncf %158 : vector<16x128xf32> to vector<16x128xbf16>
    %c0_111 = arith.constant 0 : index
    %c384_112 = arith.constant 384 : index
    %160 = vector.load %arg14[%c0_111, %c384_112] : memref<64x640xf32, #tpu.memory_space<vmem>>, vector<16x128xf32>
    %161 = arith.truncf %160 : vector<16x128xf32> to vector<16x128xbf16>
    %c16_113 = arith.constant 16 : index
    %c384_114 = arith.constant 384 : index
    %162 = vector.load %arg14[%c16_113, %c384_114] : memref<64x640xf32, #tpu.memory_space<vmem>>, vector<16x128xf32>
    %163 = arith.truncf %162 : vector<16x128xf32> to vector<16x128xbf16>
    %c0_115 = arith.constant 0 : index
    %c257 = arith.constant 257 : index
    %164 = vector.load %arg14[%c0_115, %c257] : memref<64x640xf32, #tpu.memory_space<vmem>>, vector<16x128xf32>
    %165 = arith.truncf %164 : vector<16x128xf32> to vector<16x128xbf16>
    %c48_116 = arith.constant 48 : index
    %c256_117 = arith.constant 256 : index
    %166 = vector.load %arg14[%c48_116, %c256_117] : memref<64x640xf32, #tpu.memory_space<vmem>>, vector<16x128xf32>
    %167 = arith.truncf %166 : vector<16x128xf32> to vector<16x128xbf16>
    %c32_118 = arith.constant 32 : index
    %c384_119 = arith.constant 384 : index
    %168 = vector.load %arg14[%c32_118, %c384_119] : memref<64x640xf32, #tpu.memory_space<vmem>>, vector<16x128xf32>
    %169 = arith.truncf %168 : vector<16x128xf32> to vector<16x128xbf16>
    %c48_120 = arith.constant 48 : index
    %c384_121 = arith.constant 384 : index
    %170 = vector.load %arg14[%c48_120, %c384_121] : memref<64x640xf32, #tpu.memory_space<vmem>>, vector<16x128xf32>
    %171 = arith.truncf %170 : vector<16x128xf32> to vector<16x128xbf16>
    %c32_122 = arith.constant 32 : index
    %c257_123 = arith.constant 257 : index
    %172 = vector.load %arg14[%c32_122, %c257_123] : memref<64x640xf32, #tpu.memory_space<vmem>>, vector<16x128xf32>
    %173 = arith.truncf %172 : vector<16x128xf32> to vector<16x128xbf16>
    %174 = tpu.concatenate %143, %145, %147, %149, %151, %153, %155, %157, %159, %161, %163, %165, %167, %169, %171, %173 in 1 : vector<16x128xbf16>, vector<16x128xbf16>, vector<16x128xbf16>, vector<16x128xbf16>, vector<16x128xbf16>, vector<16x128xbf16>, vector<16x128xbf16>, vector<16x128xbf16>, vector<16x128xbf16>, vector<16x128xbf16>, vector<16x128xbf16>, vector<16x128xbf16>, vector<16x128xbf16>, vector<16x128xbf16>, vector<16x128xbf16>, vector<16x128xbf16> -> vector<16x2048xbf16>
    %c32_124 = arith.constant 32 : index
    %c0_125 = arith.constant 0 : index
    %175 = vector.load %arg14[%c32_124, %c0_125] : memref<64x640xf32, #tpu.memory_space<vmem>>, vector<16x128xf32>
    %176 = arith.truncf %175 : vector<16x128xf32> to vector<16x128xbf16>
    %c48_126 = arith.constant 48 : index
    %c0_127 = arith.constant 0 : index
    %177 = vector.load %arg14[%c48_126, %c0_127] : memref<64x640xf32, #tpu.memory_space<vmem>>, vector<16x128xf32>
    %178 = arith.truncf %177 : vector<16x128xf32> to vector<16x128xbf16>
    %c32_128 = arith.constant 32 : index
    %c128_129 = arith.constant 128 : index
    %179 = vector.load %arg14[%c32_128, %c128_129] : memref<64x640xf32, #tpu.memory_space<vmem>>, vector<16x128xf32>
    %180 = arith.truncf %179 : vector<16x128xf32> to vector<16x128xbf16>
    %c48_130 = arith.constant 48 : index
    %c128_131 = arith.constant 128 : index
    %181 = vector.load %arg14[%c48_130, %c128_131] : memref<64x640xf32, #tpu.memory_space<vmem>>, vector<16x128xf32>
    %182 = arith.truncf %181 : vector<16x128xf32> to vector<16x128xbf16>
    %c0_132 = arith.constant 0 : index
    %c256_133 = arith.constant 256 : index
    %183 = vector.load %arg14[%c0_132, %c256_133] : memref<64x640xf32, #tpu.memory_space<vmem>>, vector<16x128xf32>
    %184 = arith.truncf %183 : vector<16x128xf32> to vector<16x128xbf16>
    %c16_134 = arith.constant 16 : index
    %c256_135 = arith.constant 256 : index
    %185 = vector.load %arg14[%c16_134, %c256_135] : memref<64x640xf32, #tpu.memory_space<vmem>>, vector<16x128xf32>
    %186 = arith.truncf %185 : vector<16x128xf32> to vector<16x128xbf16>
    %c0_136 = arith.constant 0 : index
    %c384_137 = arith.constant 384 : index
    %187 = vector.load %arg14[%c0_136, %c384_137] : memref<64x640xf32, #tpu.memory_space<vmem>>, vector<16x128xf32>
    %188 = arith.truncf %187 : vector<16x128xf32> to vector<16x128xbf16>
    %c16_138 = arith.constant 16 : index
    %c384_139 = arith.constant 384 : index
    %189 = vector.load %arg14[%c16_138, %c384_139] : memref<64x640xf32, #tpu.memory_space<vmem>>, vector<16x128xf32>
    %190 = arith.truncf %189 : vector<16x128xf32> to vector<16x128xbf16>
    %c32_140 = arith.constant 32 : index
    %c256_141 = arith.constant 256 : index
    %191 = vector.load %arg14[%c32_140, %c256_141] : memref<64x640xf32, #tpu.memory_space<vmem>>, vector<16x128xf32>
    %192 = arith.truncf %191 : vector<16x128xf32> to vector<16x128xbf16>
    %c48_142 = arith.constant 48 : index
    %c256_143 = arith.constant 256 : index
    %193 = vector.load %arg14[%c48_142, %c256_143] : memref<64x640xf32, #tpu.memory_space<vmem>>, vector<16x128xf32>
    %194 = arith.truncf %193 : vector<16x128xf32> to vector<16x128xbf16>
    %c32_144 = arith.constant 32 : index
    %c384_145 = arith.constant 384 : index
    %195 = vector.load %arg14[%c32_144, %c384_145] : memref<64x640xf32, #tpu.memory_space<vmem>>, vector<16x128xf32>
    %196 = arith.truncf %195 : vector<16x128xf32> to vector<16x128xbf16>
    %c48_146 = arith.constant 48 : index
    %c384_147 = arith.constant 384 : index
    %197 = vector.load %arg14[%c48_146, %c384_147] : memref<64x640xf32, #tpu.memory_space<vmem>>, vector<16x128xf32>
    %198 = arith.truncf %197 : vector<16x128xf32> to vector<16x128xbf16>
    %c0_148 = arith.constant 0 : index
    %c10_149 = arith.constant 10 : index
    %199 = vector.load %arg14[%c0_148, %c10_149] : memref<64x640xf32, #tpu.memory_space<vmem>>, vector<16x128xf32>
    %200 = arith.truncf %199 : vector<16x128xf32> to vector<16x128xbf16>
    %c16_150 = arith.constant 16 : index
    %c10_151 = arith.constant 10 : index
    %201 = vector.load %arg14[%c16_150, %c10_151] : memref<64x640xf32, #tpu.memory_space<vmem>>, vector<16x128xf32>
    %202 = arith.truncf %201 : vector<16x128xf32> to vector<16x128xbf16>
    %c0_152 = arith.constant 0 : index
    %c138 = arith.constant 138 : index
    %203 = vector.load %arg14[%c0_152, %c138] : memref<64x640xf32, #tpu.memory_space<vmem>>, vector<16x128xf32>
    %204 = arith.truncf %203 : vector<16x128xf32> to vector<16x128xbf16>
    %c16_153 = arith.constant 16 : index
    %c138_154 = arith.constant 138 : index
    %205 = vector.load %arg14[%c16_153, %c138_154] : memref<64x640xf32, #tpu.memory_space<vmem>>, vector<16x128xf32>
    %206 = arith.truncf %205 : vector<16x128xf32> to vector<16x128xbf16>
    %207 = tpu.concatenate %176, %178, %180, %182, %184, %186, %188, %190, %192, %194, %196, %198, %200, %202, %204, %206 in 1 : vector<16x128xbf16>, vector<16x128xbf16>, vector<16x128xbf16>, vector<16x128xbf16>, vector<16x128xbf16>, vector<16x128xbf16>, vector<16x128xbf16>, vector<16x128xbf16>, vector<16x128xbf16>, vector<16x128xbf16>, vector<16x128xbf16>, vector<16x128xbf16>, vector<16x128xbf16>, vector<16x128xbf16>, vector<16x128xbf16>, vector<16x128xbf16> -> vector<16x2048xbf16>
    %c48_155 = arith.constant 48 : index
    %c0_156 = arith.constant 0 : index
    %208 = vector.load %arg14[%c48_155, %c0_156] : memref<64x640xf32, #tpu.memory_space<vmem>>, vector<16x128xf32>
    %209 = arith.truncf %208 : vector<16x128xf32> to vector<16x128xbf16>
    %c32_157 = arith.constant 32 : index
    %c128_158 = arith.constant 128 : index
    %210 = vector.load %arg14[%c32_157, %c128_158] : memref<64x640xf32, #tpu.memory_space<vmem>>, vector<16x128xf32>
    %211 = arith.truncf %210 : vector<16x128xf32> to vector<16x128xbf16>
    %c48_159 = arith.constant 48 : index
    %c128_160 = arith.constant 128 : index
    %212 = vector.load %arg14[%c48_159, %c128_160] : memref<64x640xf32, #tpu.memory_space<vmem>>, vector<16x128xf32>
    %213 = arith.truncf %212 : vector<16x128xf32> to vector<16x128xbf16>
    %c32_161 = arith.constant 32 : index
    %c1_162 = arith.constant 1 : index
    %214 = vector.load %arg14[%c32_161, %c1_162] : memref<64x640xf32, #tpu.memory_space<vmem>>, vector<16x128xf32>
    %215 = arith.truncf %214 : vector<16x128xf32> to vector<16x128xbf16>
    %c16_163 = arith.constant 16 : index
    %c256_164 = arith.constant 256 : index
    %216 = vector.load %arg14[%c16_163, %c256_164] : memref<64x640xf32, #tpu.memory_space<vmem>>, vector<16x128xf32>
    %217 = arith.truncf %216 : vector<16x128xf32> to vector<16x128xbf16>
    %c0_165 = arith.constant 0 : index
    %c384_166 = arith.constant 384 : index
    %218 = vector.load %arg14[%c0_165, %c384_166] : memref<64x640xf32, #tpu.memory_space<vmem>>, vector<16x128xf32>
    %219 = arith.truncf %218 : vector<16x128xf32> to vector<16x128xbf16>
    %c16_167 = arith.constant 16 : index
    %c384_168 = arith.constant 384 : index
    %220 = vector.load %arg14[%c16_167, %c384_168] : memref<64x640xf32, #tpu.memory_space<vmem>>, vector<16x128xf32>
    %221 = arith.truncf %220 : vector<16x128xf32> to vector<16x128xbf16>
    %c0_169 = arith.constant 0 : index
    %c257_170 = arith.constant 257 : index
    %222 = vector.load %arg14[%c0_169, %c257_170] : memref<64x640xf32, #tpu.memory_space<vmem>>, vector<16x128xf32>
    %223 = arith.truncf %222 : vector<16x128xf32> to vector<16x128xbf16>
    %c48_171 = arith.constant 48 : index
    %c256_172 = arith.constant 256 : index
    %224 = vector.load %arg14[%c48_171, %c256_172] : memref<64x640xf32, #tpu.memory_space<vmem>>, vector<16x128xf32>
    %225 = arith.truncf %224 : vector<16x128xf32> to vector<16x128xbf16>
    %c32_173 = arith.constant 32 : index
    %c384_174 = arith.constant 384 : index
    %226 = vector.load %arg14[%c32_173, %c384_174] : memref<64x640xf32, #tpu.memory_space<vmem>>, vector<16x128xf32>
    %227 = arith.truncf %226 : vector<16x128xf32> to vector<16x128xbf16>
    %c48_175 = arith.constant 48 : index
    %c384_176 = arith.constant 384 : index
    %228 = vector.load %arg14[%c48_175, %c384_176] : memref<64x640xf32, #tpu.memory_space<vmem>>, vector<16x128xf32>
    %229 = arith.truncf %228 : vector<16x128xf32> to vector<16x128xbf16>
    %c32_177 = arith.constant 32 : index
    %c257_178 = arith.constant 257 : index
    %230 = vector.load %arg14[%c32_177, %c257_178] : memref<64x640xf32, #tpu.memory_space<vmem>>, vector<16x128xf32>
    %231 = arith.truncf %230 : vector<16x128xf32> to vector<16x128xbf16>
    %c16_179 = arith.constant 16 : index
    %c10_180 = arith.constant 10 : index
    %232 = vector.load %arg14[%c16_179, %c10_180] : memref<64x640xf32, #tpu.memory_space<vmem>>, vector<16x128xf32>
    %233 = arith.truncf %232 : vector<16x128xf32> to vector<16x128xbf16>
    %c0_181 = arith.constant 0 : index
    %c138_182 = arith.constant 138 : index
    %234 = vector.load %arg14[%c0_181, %c138_182] : memref<64x640xf32, #tpu.memory_space<vmem>>, vector<16x128xf32>
    %235 = arith.truncf %234 : vector<16x128xf32> to vector<16x128xbf16>
    %c16_183 = arith.constant 16 : index
    %c138_184 = arith.constant 138 : index
    %236 = vector.load %arg14[%c16_183, %c138_184] : memref<64x640xf32, #tpu.memory_space<vmem>>, vector<16x128xf32>
    %237 = arith.truncf %236 : vector<16x128xf32> to vector<16x128xbf16>
    %c0_185 = arith.constant 0 : index
    %c11_186 = arith.constant 11 : index
    %238 = vector.load %arg14[%c0_185, %c11_186] : memref<64x640xf32, #tpu.memory_space<vmem>>, vector<16x128xf32>
    %239 = arith.truncf %238 : vector<16x128xf32> to vector<16x128xbf16>
    %240 = tpu.concatenate %209, %211, %213, %215, %217, %219, %221, %223, %225, %227, %229, %231, %233, %235, %237, %239 in 1 : vector<16x128xbf16>, vector<16x128xbf16>, vector<16x128xbf16>, vector<16x128xbf16>, vector<16x128xbf16>, vector<16x128xbf16>, vector<16x128xbf16>, vector<16x128xbf16>, vector<16x128xbf16>, vector<16x128xbf16>, vector<16x128xbf16>, vector<16x128xbf16>, vector<16x128xbf16>, vector<16x128xbf16>, vector<16x128xbf16>, vector<16x128xbf16> -> vector<16x2048xbf16>
    %241 = tpu.concatenate %141, %174, %207, %240 in 0 : vector<16x2048xbf16>, vector<16x2048xbf16>, vector<16x2048xbf16>, vector<16x2048xbf16> -> vector<64x2048xbf16>
    %c0_187 = arith.constant 0 : index
    %c0_188 = arith.constant 0 : index
    %242 = vector.load %arg9[%c0_187, %c0_188] : memref<12x64xbf16, #tpu.memory_space<vmem>>, vector<12x64xbf16>
    %cst_189 = arith.constant dense<0.000000e+00> : vector<12x2048xf32>
    %243 = tpu.matmul %242, %241, %cst_189 {dimension_numbers = #tpu.dot_dimension_numbers<[1], [0], [0], [1], [0, 0, 1, 1], [], []>} : vector<12x64xbf16>, vector<64x2048xbf16>, vector<12x2048xf32> -> vector<12x2048xf32>
    %c0_190 = arith.constant 0 : index
    %c0_191 = arith.constant 0 : index
    %244 = vector.load %arg10[%c0_190, %c0_191] : memref<12x1xf32, #tpu.memory_space<vmem>>, vector<12x1xf32>
    %245 = vector.broadcast %244 : vector<12x1xf32> to vector<12x2048xf32>
    %246 = arith.addf %243, %245 : vector<12x2048xf32>
    %c0_192 = arith.constant 0 : index
    %c0_193 = arith.constant 0 : index
    %c0_194 = arith.constant 0 : index
    %247 = vector.load %arg11[%c0_192, %c0_193, %c0_194] : memref<1x12x2048xf32, #tpu.memory_space<vmem>>, vector<1x12x2048xf32>
    %248 = vector.shape_cast %247 : vector<1x12x2048xf32> to vector<12x2048xf32>
    %249 = vector.shape_cast %246 : vector<12x2048xf32> to vector<1x12x2048xf32>
    tpu.vector_store %arg11[%c0_192, %c0_193, %c0_194], %249 {strides = array<i32>} : memref<1x12x2048xf32, #tpu.memory_space<vmem>>, vector<1x12x2048xf32>,
    return
  }
  func.func @transform_0(%arg0: i32) -> (i32, i32, i32) {
    %c0_i32 = arith.constant 0 : i32
    %c0_i32_0 = arith.constant 0 : i32
    %c0_i32_1 = arith.constant 0 : i32
    return %arg0, %c0_i32, %c0_i32_0 : i32, i32, i32
  }
  func.func @transform_1(%arg0: i32) -> (i32, i32) {
    %c0_i32 = arith.constant 0 : i32
    %c0_i32_0 = arith.constant 0 : i32
    %c0_i32_1 = arith.constant 0 : i32
    return %c0_i32, %c0_i32_0 : i32, i32
  }
  func.func @transform_2(%arg0: i32) -> (i32, i32) {
    %c0_i32 = arith.constant 0 : i32
    %c0_i32_0 = arith.constant 0 : i32
    %c0_i32_1 = arith.constant 0 : i32
    return %c0_i32, %c0_i32_0 : i32, i32
  }
  func.func @transform_3(%arg0: i32) -> (i32, i32) {
    %c0_i32 = arith.constant 0 : i32
    %c0_i32_0 = arith.constant 0 : i32
    %c0_i32_1 = arith.constant 0 : i32
    return %c0_i32, %c0_i32_0 : i32, i32
  }
  func.func @transform_4(%arg0: i32) -> (i32, i32) {
    %c0_i32 = arith.constant 0 : i32
    %c0_i32_0 = arith.constant 0 : i32
    %c0_i32_1 = arith.constant 0 : i32
    return %c0_i32, %c0_i32_0 : i32, i32
  }
  func.func @transform_5(%arg0: i32) -> (i32, i32) {
    %c0_i32 = arith.constant 0 : i32
    %c0_i32_0 = arith.constant 0 : i32
    %c0_i32_1 = arith.constant 0 : i32
    return %c0_i32, %c0_i32_0 : i32, i32
  }
  func.func @transform_6(%arg0: i32) -> (i32, i32) {
    %c0_i32 = arith.constant 0 : i32
    %c0_i32_0 = arith.constant 0 : i32
    %c0_i32_1 = arith.constant 0 : i32
    return %c0_i32, %c0_i32_0 : i32, i32
  }
  func.func @transform_7(%arg0: i32) -> (i32, i32) {
    %c0_i32 = arith.constant 0 : i32
    %c0_i32_0 = arith.constant 0 : i32
    %c0_i32_1 = arith.constant 0 : i32
    return %c0_i32, %c0_i32_0 : i32, i32
  }
  func.func @transform_8(%arg0: i32) -> (i32, i32) {
    %c0_i32 = arith.constant 0 : i32
    %c0_i32_0 = arith.constant 0 : i32
    %c0_i32_1 = arith.constant 0 : i32
    return %c0_i32, %c0_i32_0 : i32, i32
  }
  func.func @transform_9(%arg0: i32) -> (i32, i32) {
    %c0_i32 = arith.constant 0 : i32
    %c0_i32_0 = arith.constant 0 : i32
    %c0_i32_1 = arith.constant 0 : i32
    return %c0_i32, %c0_i32_0 : i32, i32
  }
  func.func @transform_10(%arg0: i32) -> (i32, i32, i32) {
    %c0_i32 = arith.constant 0 : i32
    %c0_i32_0 = arith.constant 0 : i32
    %c0_i32_1 = arith.constant 0 : i32
    return %arg0, %c0_i32, %c0_i32_0 : i32, i32, i32
  }
}

</mosaic_0001>

<llo_original>
// kernel: decoder_forward.1
$region0: #{decoder_forward.1}
  #allocation0 [shape = 'u32[]', space=smem, size = 0x4, offset = 0x4, fixed_abs, tag = 'smem constant byte address 0x4 - core index']
  #allocation1 [shape = 'u32[144,128]{1,0:T(1,128)}', space=vmem, size = 0x12000, scoped, tag = 'internal scratch']
  #allocation2 [shape = 'f32[64,256]{1,0:T(8,128)}', space=vmem, size = 0x10000, scoped, tag = 'scratch operand']
  #allocation3 [shape = 'f32[128,256]{1,0:T(8,128)}', space=vmem, size = 0x20000, scoped, tag = 'scratch operand']
  #allocation4 [shape = 'f32[64,640]{1,0:T(8,128)}', space=vmem, size = 0x28000, scoped, tag = 'scratch operand']
  %s0 = inlined_call_operand.vmem [shape: f32[2,64,256], index: 0, kind: input, shape index: {}]
  %s1 = inlined_call_operand.hbm [shape: f32[1,128], index: 1, kind: input, shape index: {}]
  %s2 = inlined_call_operand.hbm [shape: bf16[64,576], index: 2, kind: input, shape index: {}]
  %s3 = inlined_call_operand.vmem [shape: f32[64,1], index: 3, kind: input, shape index: {}]
  %s4 = inlined_call_operand.hbm [shape: bf16[128,256], index: 4, kind: input, shape index: {}]
  %s5 = inlined_call_operand.vmem [shape: f32[128,1], index: 5, kind: input, shape index: {}]
  %s6 = inlined_call_operand.hbm [shape: bf16[64,128], index: 6, kind: input, shape index: {}]
  %s7 = inlined_call_operand.vmem [shape: f32[64,1], index: 7, kind: input, shape index: {}]
  %s8 = inlined_call_operand.hbm [shape: bf16[12,64], index: 8, kind: input, shape index: {}]
  %s9 = inlined_call_operand.vmem [shape: f32[12,1], index: 9, kind: input, shape index: {}]
  %s10 = inlined_call_operand.vmem [shape: f32[2,12,2048], index: 10, kind: output, shape index: {}]
  %s11 = sld [smem:[#allocation0]]
  $region93: #{decoder_forward.1} parent=0
    _
  %s13 = ssub.s32 1, %s11
  %s14 = scalar_select 0, %s13, %s11
  $region1: #{decoder_forward.1} parent=0
    #allocation5 [shape = 'u8[512]{0}', space=vmem, size = 0x400, scoped, tag = 'input window, operand 1, single buffered']
    #allocation6 [shape = 's32[2]{0}', space=sflag, size = 0x8, scoped, tag = 'scoped memory for decoder_forward.1']
    #allocation7 [shape = 'u8[81920]{0}', space=vmem, size = 0x14000, scoped, tag = 'input window, operand 2, single buffered']
    #allocation8 [shape = 's32[1]{0}', space=sflag, size = 0x4, scoped, tag = 'scoped memory for decoder_forward.1']
    #allocation9 [shape = 'u8[65536]{0}', space=vmem, size = 0x10000, scoped, tag = 'input window, operand 4, single buffered']
    #allocation10 [shape = 'u8[16384]{0}', space=vmem, size = 0x4000, scoped, tag = 'input window, operand 6, single buffered']
    #allocation11 [shape = 's32[1]{0}', space=sflag, size = 0x4, scoped, tag = 'scoped memory for decoder_forward.1']
    #allocation12 [shape = 'u8[4096]{0}', space=vmem, size = 0x1000, scoped, tag = 'input window, operand 8, single buffered']
    %15 = vsyncpa [#allocation6], 0
    %16 = vsyncpa [#allocation8], 0
    %17 = vsyncpa [#allocation11], 0
    loop: start=0, step=1, limit=4
    $region2: #{decoder_forward.1} parent=1 // loop_pre_header
      _
    $region3: #{decoder_forward.1} parent=1 // loop_header
      %s19 = sphi 0, %s23
      %p20 = scmp.ge.s32.totalorder %s19, 4
      %s29 = sphi 0, %s31
      %s32 = sphi 0, %s29
      %s33 = sphi 0, %s32
      %s49 = sphi 0, %s33
      %s53 = sphi 0, %s53
      %s55 = sphi 0, %s53
      %s56 = sphi 0, %s55
      %s70 = sphi 0, %s56
      %s74 = sphi 0, %s74
      %s76 = sphi 0, %s74
      %s77 = sphi 0, %s76
      %s91 = sphi 0, %s77
      %s95 = sphi 0, %s95
      %s97 = sphi 0, %s95
      %s98 = sphi 0, %s97
      %s112 = sphi 0, %s98
      %s116 = sphi 0, %s116
      %s118 = sphi 0, %s116
      %s119 = sphi 0, %s118
      %s133 = sphi 0, %s119
      %s137 = sphi 0, %s137
      %s139 = sphi 0, %s137
      %s140 = sphi 0, %s139
      %s154 = sphi 0, %s140
      %s158 = sphi 0, %s158
      %s160 = sphi 0, %s158
      %s161 = sphi 0, %s160
      %s175 = sphi 0, %s161
      %s179 = sphi 0, %s179
      %s181 = sphi 0, %s179
      %s182 = sphi 0, %s181
      %s196 = sphi 0, %s182
      %s200 = sphi 0, %s200
      %s202 = sphi 0, %s200
      %s203 = sphi 0, %s202
      %s217 = sphi 0, %s203
      %s221 = sphi 0, %s221
      %s223 = sphi 0, %s221
      %s224 = sphi 0, %s223
      %s238 = sphi 0, %s224
      %s244 = sphi 0, %s246
      %s247 = sphi 0, %s244
      %s248 = sphi 0, %s247
      %s264 = sphi 0, %s248
    $region4: #{decoder_forward.1} parent=1 // loop_header_branch
      %22 = sbr.rel (%p20) target = $region8
    $region5: #{decoder_forward.1} parent=1 // loop_body
      %s24 = ssub.s32 %s19, 1
      %s25 = ssub.s32 %s19, 2
      %s26 = sadd.s32 %s19, 1
      %s27 = ssub.s32 %s19, %s26
      %p28 = scmp.eq.s32.totalorder %s27, 0
      %s30 = sadd.s32 %s29, 1
      %s31 = scalar_select %p28, %s29, %s30
      %p34 = pneg %p28
      %p35 = scmp.eq.s32.totalorder %s19, 1
      %p36 = por %p34, %p35
      %p37 = scmp.ne.s32.totalorder %s29, %s32
      %p38 = scmp.eq.s32.totalorder %s19, 0
      %p39 = por %p37, %p38
      %p40 = scmp.ne.s32.totalorder %s29, %s32
      %p41 = scmp.eq.s32.totalorder %s24, 1
      %p42 = por %p40, %p41
      %p43 = scmp.ne.s32.totalorder %s32, %s33
      %p44 = scmp.eq.s32.totalorder %s24, 0
      %p45 = por %p43, %p44
      %p46 = scmp.ne.s32.totalorder %s32, %s33
      %p47 = scmp.eq.s32.totalorder %s25, 1
      %p48 = por %p46, %p47
      %p50 = scmp.ne.s32.totalorder %s33, %s49
      %p51 = scmp.eq.s32.totalorder %s25, 0
      %p52 = por %p50, %p51
      %s54 = sadd.s32 %s53, 1
      %p57 = scmp.eq.s32.totalorder %s19, 1
      %p58 = scmp.ne.s32.totalorder %s53, %s55
      %p59 = scmp.eq.s32.totalorder %s19, 0
      %p60 = por %p58, %p59
      %p61 = scmp.ne.s32.totalorder %s53, %s55
      %p62 = scmp.eq.s32.totalorder %s24, 1
      %p63 = por %p61, %p62
      %p64 = scmp.ne.s32.totalorder %s55, %s56
      %p65 = scmp.eq.s32.totalorder %s24, 0
      %p66 = por %p64, %p65
      %p67 = scmp.ne.s32.totalorder %s55, %s56
      %p68 = scmp.eq.s32.totalorder %s25, 1
      %p69 = por %p67, %p68
      %p71 = scmp.ne.s32.totalorder %s56, %s70
      %p72 = scmp.eq.s32.totalorder %s25, 0
      %p73 = por %p71, %p72
      %s75 = sadd.s32 %s74, 1
      %p78 = scmp.eq.s32.totalorder %s19, 1
      %p79 = scmp.ne.s32.totalorder %s74, %s76
      %p80 = scmp.eq.s32.totalorder %s19, 0
      %p81 = por %p79, %p80
      %p82 = scmp.ne.s32.totalorder %s74, %s76
      %p83 = scmp.eq.s32.totalorder %s24, 1
      %p84 = por %p82, %p83
      %p85 = scmp.ne.s32.totalorder %s76, %s77
      %p86 = scmp.eq.s32.totalorder %s24, 0
      %p87 = por %p85, %p86
      %p88 = scmp.ne.s32.totalorder %s76, %s77
      %p89 = scmp.eq.s32.totalorder %s25, 1
      %p90 = por %p88, %p89
      %p92 = scmp.ne.s32.totalorder %s77, %s91
      %p93 = scmp.eq.s32.totalorder %s25, 0
      %p94 = por %p92, %p93
      %s96 = sadd.s32 %s95, 1
      %p99 = scmp.eq.s32.totalorder %s19, 1
      %p100 = scmp.ne.s32.totalorder %s95, %s97
      %p101 = scmp.eq.s32.totalorder %s19, 0
      %p102 = por %p100, %p101
      %p103 = scmp.ne.s32.totalorder %s95, %s97
      %p104 = scmp.eq.s32.totalorder %s24, 1
      %p105 = por %p103, %p104
      %p106 = scmp.ne.s32.totalorder %s97, %s98
      %p107 = scmp.eq.s32.totalorder %s24, 0
      %p108 = por %p106, %p107
      %p109 = scmp.ne.s32.totalorder %s97, %s98
      %p110 = scmp.eq.s32.totalorder %s25, 1
      %p111 = por %p109, %p110
      %p113 = scmp.ne.s32.totalorder %s98, %s112
      %p114 = scmp.eq.s32.totalorder %s25, 0
      %p115 = por %p113, %p114
      %s117 = sadd.s32 %s116, 1
      %p120 = scmp.eq.s32.totalorder %s19, 1
      %p121 = scmp.ne.s32.totalorder %s116, %s118
      %p122 = scmp.eq.s32.totalorder %s19, 0
      %p123 = por %p121, %p122
      %p124 = scmp.ne.s32.totalorder %s116, %s118
      %p125 = scmp.eq.s32.totalorder %s24, 1
      %p126 = por %p124, %p125
      %p127 = scmp.ne.s32.totalorder %s118, %s119
      %p128 = scmp.eq.s32.totalorder %s24, 0
      %p129 = por %p127, %p128
      %p130 = scmp.ne.s32.totalorder %s118, %s119
      %p131 = scmp.eq.s32.totalorder %s25, 1
      %p132 = por %p130, %p131
      %p134 = scmp.ne.s32.totalorder %s119, %s133
      %p135 = scmp.eq.s32.totalorder %s25, 0
      %p136 = por %p134, %p135
      %s138 = sadd.s32 %s137, 1
      %p141 = scmp.eq.s32.totalorder %s19, 1
      %p142 = scmp.ne.s32.totalorder %s137, %s139
      %p143 = scmp.eq.s32.totalorder %s19, 0
      %p144 = por %p142, %p143
      %p145 = scmp.ne.s32.totalorder %s137, %s139
      %p146 = scmp.eq.s32.totalorder %s24, 1
      %p147 = por %p145, %p146
      %p148 = scmp.ne.s32.totalorder %s139, %s140
      %p149 = scmp.eq.s32.totalorder %s24, 0
      %p150 = por %p148, %p149
      %p151 = scmp.ne.s32.totalorder %s139, %s140
      %p152 = scmp.eq.s32.totalorder %s25, 1
      %p153 = por %p151, %p152
      %p155 = scmp.ne.s32.totalorder %s140, %s154
      %p156 = scmp.eq.s32.totalorder %s25, 0
      %p157 = por %p155, %p156
      %s159 = sadd.s32 %s158, 1
      %p162 = scmp.eq.s32.totalorder %s19, 1
      %p163 = scmp.ne.s32.totalorder %s158, %s160
      %p164 = scmp.eq.s32.totalorder %s19, 0
      %p165 = por %p163, %p164
      %p166 = scmp.ne.s32.totalorder %s158, %s160
      %p167 = scmp.eq.s32.totalorder %s24, 1
      %p168 = por %p166, %p167
      %p169 = scmp.ne.s32.totalorder %s160, %s161
      %p170 = scmp.eq.s32.totalorder %s24, 0
      %p171 = por %p169, %p170
      %p172 = scmp.ne.s32.totalorder %s160, %s161
      %p173 = scmp.eq.s32.totalorder %s25, 1
      %p174 = por %p172, %p173
      %p176 = scmp.ne.s32.totalorder %s161, %s175
      %p177 = scmp.eq.s32.totalorder %s25, 0
      %p178 = por %p176, %p177
      %s180 = sadd.s32 %s179, 1
      %p183 = scmp.eq.s32.totalorder %s19, 1
      %p184 = scmp.ne.s32.totalorder %s179, %s181
      %p185 = scmp.eq.s32.totalorder %s19, 0
      %p186 = por %p184, %p185
      %p187 = scmp.ne.s32.totalorder %s179, %s181
      %p188 = scmp.eq.s32.totalorder %s24, 1
      %p189 = por %p187, %p188
      %p190 = scmp.ne.s32.totalorder %s181, %s182
      %p191 = scmp.eq.s32.totalorder %s24, 0
      %p192 = por %p190, %p191
      %p193 = scmp.ne.s32.totalorder %s181, %s182
      %p194 = scmp.eq.s32.totalorder %s25, 1
      %p195 = por %p193, %p194
      %p197 = scmp.ne.s32.totalorder %s182, %s196
      %p198 = scmp.eq.s32.totalorder %s25, 0
      %p199 = por %p197, %p198
      %s201 = sadd.s32 %s200, 1
      %p204 = scmp.eq.s32.totalorder %s19, 1
      %p205 = scmp.ne.s32.totalorder %s200, %s202
      %p206 = scmp.eq.s32.totalorder %s19, 0
      %p207 = por %p205, %p206
      %p208 = scmp.ne.s32.totalorder %s200, %s202
      %p209 = scmp.eq.s32.totalorder %s24, 1
      %p210 = por %p208, %p209
      %p211 = scmp.ne.s32.totalorder %s202, %s203
      %p212 = scmp.eq.s32.totalorder %s24, 0
      %p213 = por %p211, %p212
      %p214 = scmp.ne.s32.totalorder %s202, %s203
      %p215 = scmp.eq.s32.totalorder %s25, 1
      %p216 = por %p214, %p215
      %p218 = scmp.ne.s32.totalorder %s203, %s217
      %p219 = scmp.eq.s32.totalorder %s25, 0
      %p220 = por %p218, %p219
      %s222 = sadd.s32 %s221, 1
      %p225 = scmp.eq.s32.totalorder %s19, 1
      %p226 = scmp.ne.s32.totalorder %s221, %s223
      %p227 = scmp.eq.s32.totalorder %s19, 0
      %p228 = por %p226, %p227
      %p229 = scmp.ne.s32.totalorder %s221, %s223
      %p230 = scmp.eq.s32.totalorder %s24, 1
      %p231 = por %p229, %p230
      %p232 = scmp.ne.s32.totalorder %s223, %s224
      %p233 = scmp.eq.s32.totalorder %s24, 0
      %p234 = por %p232, %p233
      %p235 = scmp.ne.s32.totalorder %s223, %s224
      %p236 = scmp.eq.s32.totalorder %s25, 1
      %p237 = por %p235, %p236
      %p239 = scmp.ne.s32.totalorder %s224, %s238
      %p240 = scmp.eq.s32.totalorder %s25, 0
      %p241 = por %p239, %p240
      %s242 = ssub.s32 %s19, %s26
      %p243 = scmp.eq.s32.totalorder %s242, 0
      %s245 = sadd.s32 %s244, 1
      %s246 = scalar_select %p243, %s244, %s245
      %p249 = pneg %p243
      %p250 = scmp.eq.s32.totalorder %s19, 1
      %p251 = por %p249, %p250
      %p252 = scmp.ne.s32.totalorder %s244, %s247
      %p253 = scmp.eq.s32.totalorder %s19, 0
      %p254 = por %p252, %p253
      %p255 = scmp.ne.s32.totalorder %s244, %s247
      %p256 = scmp.eq.s32.totalorder %s24, 1
      %p257 = por %p255, %p256
      %p258 = scmp.ne.s32.totalorder %s247, %s248
      %p259 = scmp.eq.s32.totalorder %s24, 0
      %p260 = por %p258, %p259
      %p261 = scmp.ne.s32.totalorder %s247, %s248
      %p262 = scmp.eq.s32.totalorder %s25, 1
      %p263 = por %p261, %p262
      %p265 = scmp.ne.s32.totalorder %s248, %s264
      %p266 = scmp.eq.s32.totalorder %s25, 0
      %p267 = por %p265, %p266
      %p268 = scmp.le.s32.totalorder 1, %s19
      %p269 = scmp.lt.s32.totalorder %s19, 3
      %p270 = pnand %p268, %p269
      %p271 = pneg %p270
      // Predicated region
      $region9: #{decoder_forward.1} parent=5 // pred_check
        _
      $region10: #{decoder_forward.1} parent=5 // pred_check_branch
        %273 = sbr.rel (%p270) target = $region12
      $region11: #{decoder_forward.1} parent=5 // pred_region
        %s274 = ssub.s32 %s19, 1
        // Predicated region
        $region13: #{decoder_forward.1} parent=11 // pred_check
          %p275 = pneg %p66
        $region14: #{decoder_forward.1} parent=11 // pred_check_branch
          %277 = sbr.rel (%p275) target = $region16
        $region15: #{decoder_forward.1} parent=11 // pred_region
          %s279 = ssub.s32 16, 16
          %280 = vsyncadd [#allocation6], %s279
          %s282 = sshll.u32 [#allocation5], 4
          %s283 = int_to_ptr.vmem [resolvable:$true] %s282
          %285 = dma.hbm_to_vmem [thread:$0]  %s1, 16, %s283, [#allocation6]
        $region16: #{decoder_forward.1} parent=11 // pred_fallthru
          _
        // Predicated region
        $region17: #{decoder_forward.1} parent=11 // pred_check
          %p286 = pneg %p87
        $region18: #{decoder_forward.1} parent=11 // pred_check_branch
          %288 = sbr.rel (%p286) target = $region20
        $region19: #{decoder_forward.1} parent=11 // pred_region
          %s290 = ssub.s32 2560, 2560
          %291 = vsyncadd [#allocation8], %s290
          %s292 = sshll.u32 [#allocation7], 4
          %s293 = int_to_ptr.vmem [resolvable:$true] %s292
          %298 = dma.hbm_to_vmem [thread:$0]  %s2, 2560, %s293, [#allocation8], 320, 320, 20
        $region20: #{decoder_forward.1} parent=11 // pred_fallthru
          _
        // Predicated region
        $region21: #{decoder_forward.1} parent=11 // pred_check
          %p299 = pneg %p108
        $region22: #{decoder_forward.1} parent=11 // pred_check_branch
          %301 = sbr.rel (%p299) target = $region24
        $region23: #{decoder_forward.1} parent=11 // pred_region
          _
        $region24: #{decoder_forward.1} parent=11 // pred_fallthru
          _
        // Predicated region
        $region25: #{decoder_forward.1} parent=11 // pred_check
          %p302 = pneg %p129
        $region26: #{decoder_forward.1} parent=11 // pred_check_branch
          %304 = sbr.rel (%p302) target = $region28
        $region27: #{decoder_forward.1} parent=11 // pred_region
          %s306 = ssub.s32 2048, 2048
          %307 = vsyncadd [#allocation8], %s306
          %s308 = sshll.u32 [#allocation9], 4
          %s309 = int_to_ptr.vmem [resolvable:$true] %s308
          %314 = dma.hbm_to_vmem [thread:$0]  %s4, 2048, %s309, [#allocation8], 128, 128, 8
        $region28: #{decoder_forward.1} parent=11 // pred_fallthru
          _
        // Predicated region
        $region29: #{decoder_forward.1} parent=11 // pred_check
          %p315 = pneg %p150
        $region30: #{decoder_forward.1} parent=11 // pred_check_branch
          %317 = sbr.rel (%p315) target = $region32
        $region31: #{decoder_forward.1} parent=11 // pred_region
          _
        $region32: #{decoder_forward.1} parent=11 // pred_fallthru
          _
        // Predicated region
        $region33: #{decoder_forward.1} parent=11 // pred_check
          %p318 = pneg %p171
        $region34: #{decoder_forward.1} parent=11 // pred_check_branch
          %320 = sbr.rel (%p318) target = $region36
        $region35: #{decoder_forward.1} parent=11 // pred_region
          %s322 = ssub.s32 512, 512
          %323 = vsyncadd [#allocation11], %s322
          %s324 = sshll.u32 [#allocation10], 4
          %s325 = int_to_ptr.vmem [resolvable:$true] %s324
          %330 = dma.hbm_to_vmem [thread:$0]  %s6, 512, %s325, [#allocation11], 64, 64, 4
        $region36: #{decoder_forward.1} parent=11 // pred_fallthru
          _
        // Predicated region
        $region37: #{decoder_forward.1} parent=11 // pred_check
          %p331 = pneg %p192
        $region38: #{decoder_forward.1} parent=11 // pred_check_branch
          %333 = sbr.rel (%p331) target = $region40
        $region39: #{decoder_forward.1} parent=11 // pred_region
          _
        $region40: #{decoder_forward.1} parent=11 // pred_fallthru
          _
        // Predicated region
        $region41: #{decoder_forward.1} parent=11 // pred_check
          %p334 = pneg %p213
        $region42: #{decoder_forward.1} parent=11 // pred_check_branch
          %336 = sbr.rel (%p334) target = $region44
        $region43: #{decoder_forward.1} parent=11 // pred_region
          %s338 = ssub.s32 128, 128
          %339 = vsyncadd [#allocation11], %s338
          %s340 = sshll.u32 [#allocation12], 4
          %s341 = int_to_ptr.vmem [resolvable:$true] %s340
          %346 = dma.hbm_to_vmem [thread:$0]  %s8, 128, %s341, [#allocation11], 64, 64, 4
        $region44: #{decoder_forward.1} parent=11 // pred_fallthru
          _
        // Predicated region
        $region45: #{decoder_forward.1} parent=11 // pred_check
          %p347 = pneg %p234
        $region46: #{decoder_forward.1} parent=11 // pred_check_branch
          %349 = sbr.rel (%p347) target = $region48
        $region47: #{decoder_forward.1} parent=11 // pred_region
          _
        $region48: #{decoder_forward.1} parent=11 // pred_fallthru
          _
      $region12: #{decoder_forward.1} parent=5 // pred_fallthru
        _
      %p350 = scmp.lt.s32.totalorder %s19, 2
      // Predicated region
      $region49: #{decoder_forward.1} parent=5 // pred_check
        %p351 = pneg %p350
      $region50: #{decoder_forward.1} parent=5 // pred_check_branch
        %353 = sbr.rel (%p351) target = $region52
      $region51: #{decoder_forward.1} parent=5 // pred_region
        // Predicated region
        $region53: #{decoder_forward.1} parent=51 // pred_check
          %p354 = pneg %p39
        $region54: #{decoder_forward.1} parent=51 // pred_check_branch
          %356 = sbr.rel (%p354) target = $region56
        $region55: #{decoder_forward.1} parent=51 // pred_region
          %p357 = scmp.lt.s32.totalorder %s19, 1
          %s358 = scalar_select %p357, %s19, 1
          %s359 = smul.addr %s358, 16
          %s360 = smul.addr %s359, 8
          %s361 = scalar_lea.vmem %s0, %s360
        $region56: #{decoder_forward.1} parent=51 // pred_fallthru
          _
      $region52: #{decoder_forward.1} parent=5 // pred_fallthru
        _
      %p362 = scmp.le.s32.totalorder 1, %s19
      %p363 = scmp.lt.s32.totalorder %s19, 3
      %p364 = pnand %p362, %p363
      %p365 = pneg %p364
      // Predicated region
      $region57: #{decoder_forward.1} parent=5 // pred_check
        _
      $region58: #{decoder_forward.1} parent=5 // pred_check_branch
        %367 = sbr.rel (%p364) target = $region60
      $region59: #{decoder_forward.1} parent=5 // pred_region
        %s368 = ssub.s32 %s19, 1
        // Predicated region
        $region61: #{decoder_forward.1} parent=59 // pred_check
          %p369 = pneg %p66
        $region62: #{decoder_forward.1} parent=59 // pred_check_branch
          %371 = sbr.rel (%p369) target = $region64
        $region63: #{decoder_forward.1} parent=59 // pred_region
          %372 = dma.done [#allocation6], 16
        $region64: #{decoder_forward.1} parent=59 // pred_fallthru
          _
        // Predicated region
        $region65: #{decoder_forward.1} parent=59 // pred_check
          %p373 = pneg %p87
        $region66: #{decoder_forward.1} parent=59 // pred_check_branch
          %375 = sbr.rel (%p373) target = $region68
        $region67: #{decoder_forward.1} parent=59 // pred_region
          %376 = dma.done [#allocation8], 2560
        $region68: #{decoder_forward.1} parent=59 // pred_fallthru
          _
        // Predicated region
        $region69: #{decoder_forward.1} parent=59 // pred_check
          %p377 = pneg %p129
        $region70: #{decoder_forward.1} parent=59 // pred_check_branch
          %379 = sbr.rel (%p377) target = $region72
        $region71: #{decoder_forward.1} parent=59 // pred_region
          %380 = dma.done [#allocation8], 2048
        $region72: #{decoder_forward.1} parent=59 // pred_fallthru
          _
        // Predicated region
        $region73: #{decoder_forward.1} parent=59 // pred_check
          %p381 = pneg %p171
        $region74: #{decoder_forward.1} parent=59 // pred_check_branch
          %383 = sbr.rel (%p381) target = $region76
        $region75: #{decoder_forward.1} parent=59 // pred_region
          %384 = dma.done [#allocation11], 512
        $region76: #{decoder_forward.1} parent=59 // pred_fallthru
          _
        // Predicated region
        $region77: #{decoder_forward.1} parent=59 // pred_check
          %p385 = pneg %p213
        $region78: #{decoder_forward.1} parent=59 // pred_check_branch
          %387 = sbr.rel (%p385) target = $region80
        $region79: #{decoder_forward.1} parent=59 // pred_region
          %388 = dma.done [#allocation11], 128
        $region80: #{decoder_forward.1} parent=59 // pred_fallthru
          _
        %p389 = scmp.lt.s32.totalorder %s24, 1
        %s390 = scalar_select %p389, %s24, 1
        %s391 = smul.addr %s390, 16
        %s392 = smul.addr %s391, 8
        %s393 = scalar_lea.vmem %s0, %s392
        %p394 = pneg %p45
        %p395 = pneg %p42
        %p396 = pneg %p66
        %p397 = pneg %p63
        %p398 = pneg %p87
        %p399 = pneg %p84
        %p400 = pneg %p108
        %p401 = pneg %p105
        %p402 = pneg %p129
        %p403 = pneg %p126
        %p404 = pneg %p150
        %p405 = pneg %p147
        %p406 = pneg %p171
        %p407 = pneg %p168
        %p408 = pneg %p192
        %p409 = pneg %p189
        %p410 = pneg %p213
        %p411 = pneg %p210
        %p412 = pneg %p234
        %p413 = pneg %p231
        %p414 = pneg %p260
        %p415 = pneg %p257
        %p416 = scmp.lt.s32.totalorder %s24, 1
        %s417 = scalar_select %p416, %s24, 1
        %s418 = smul.addr %s417, 32
        %s419 = smul.addr %s418, 8
        %s420 = scalar_lea.vmem %s10, %s419
        %p421 = scmp.lt.s32.totalorder %s24, 1
        %s422 = scalar_select %p421, %s24, 1
        %s423 = smul.addr %s422, 16
        %s424 = smul.addr %s423, 8
        %s425 = scalar_lea.vmem %s0, %s424
        %p426 = scmp.lt.s32.totalorder %s24, 1
        %s427 = scalar_select %p426, %s24, 1
        %s428 = smul.addr %s427, 32
        %s429 = smul.addr %s428, 8
        %s430 = scalar_lea.vmem %s10, %s429
        %v432 = vld [vmem:[#allocation5] sm:$0x1]
        %vm433 = vcmp.gt.f32.partialorder %v432, 0.5
        %v434 = vld [vmem:[%s425] sm:$0xff]
        %v435 = vld [vmem:[%s425 + $0x8] sm:$0xff]
        %v436 = vld [vmem:[%s425 + $0x10] sm:$0xff]
        %v437 = vld [vmem:[%s425 + $0x18] sm:$0xff]
        %v438 = vld [vmem:[%s425 + $0x20] sm:$0xff]
        %v439 = vld [vmem:[%s425 + $0x28] sm:$0xff]
        %v440 = vld [vmem:[%s425 + $0x30] sm:$0xff]
        %v441 = vld [vmem:[%s425 + $0x38] sm:$0xff]
        %v442 = vld [vmem:[%s425 + $0x40] sm:$0xff]
        %v443 = vld [vmem:[%s425 + $0x48] sm:$0xff]
        %v444 = vld [vmem:[%s425 + $0x50] sm:$0xff]
        %v445 = vld [vmem:[%s425 + $0x58] sm:$0xff]
        %v446 = vld [vmem:[%s425 + $0x60] sm:$0xff]
        %v447 = vld [vmem:[%s425 + $0x68] sm:$0xff]
        %v448 = vld [vmem:[%s425 + $0x70] sm:$0xff]
        %v449 = vld [vmem:[%s425 + $0x78] sm:$0xff]
        %v450 = vpack.c.bf16 %v436, %v434
        %v451 = vpack.c.bf16 %v440, %v438
        %v452 = vpack.c.bf16 %v444, %v442
        %v453 = vpack.c.bf16 %v448, %v446
        %v454 = vpack.c.bf16 %v437, %v435
        %v455 = vpack.c.bf16 %v441, %v439
        %v456 = vpack.c.bf16 %v445, %v443
        %v457 = vpack.c.bf16 %v449, %v447
        %466 = vrot.lane.b32.xlu0 %v450, 127
        %v467 = vpop.permute.xlu0 %466
        %468 = vrot.lane.b32.xlu0 %v454, 127
        %v469 = vpop.permute.xlu0 %468
        %470 = vrot.lane.b32.xlu0 %v451, 127
        %v471 = vpop.permute.xlu0 %470
        %472 = vrot.lane.b32.xlu0 %v455, 127
        %v473 = vpop.permute.xlu0 %472
        %474 = vrot.lane.b32.xlu0 %v452, 127
        %v475 = vpop.permute.xlu0 %474
        %476 = vrot.lane.b32.xlu0 %v456, 127
        %v477 = vpop.permute.xlu0 %476
        %478 = vrot.lane.b32.xlu0 %v453, 127
        %v479 = vpop.permute.xlu0 %478
        %480 = vrot.lane.b32.xlu0 %v457, 127
        %v481 = vpop.permute.xlu0 %480
        %vm482 = vcmask 1039360
        %v483 = vsel %vm482, %v467, %v469
        %v484 = vsel %vm482, %v471, %v473
        %v485 = vsel %vm482, %v475, %v477
        %v486 = vsel %vm482, %v479, %v481
        %491 = vrot.lane.b32.xlu0 %v450, 126
        %v492 = vpop.permute.xlu0 %491
        %493 = vrot.lane.b32.xlu0 %v454, 126
        %v494 = vpop.permute.xlu0 %493
        %495 = vrot.lane.b32.xlu0 %v451, 126
        %v496 = vpop.permute.xlu0 %495
        %497 = vrot.lane.b32.xlu0 %v455, 126
        %v498 = vpop.permute.xlu0 %497
        %499 = vrot.lane.b32.xlu0 %v452, 126
        %v500 = vpop.permute.xlu0 %499
        %501 = vrot.lane.b32.xlu0 %v456, 126
        %v502 = vpop.permute.xlu0 %501
        %503 = vrot.lane.b32.xlu0 %v453, 126
        %v504 = vpop.permute.xlu0 %503
        %505 = vrot.lane.b32.xlu0 %v457, 126
        %v506 = vpop.permute.xlu0 %505
        %vm507 = vcmask 1031168
        %v508 = vsel %vm507, %v492, %v494
        %v509 = vsel %vm507, %v496, %v498
        %v510 = vsel %vm507, %v500, %v502
        %v511 = vsel %vm507, %v504, %v506
        %516 = vrot.lane.b32.xlu0 %v450, 118
        %v517 = vpop.permute.xlu0 %516
        %518 = vrot.lane.b32.xlu0 %v454, 118
        %v519 = vpop.permute.xlu0 %518
        %520 = vrot.lane.b32.xlu0 %v451, 118
        %v521 = vpop.permute.xlu0 %520
        %522 = vrot.lane.b32.xlu0 %v455, 118
        %v523 = vpop.permute.xlu0 %522
        %524 = vrot.lane.b32.xlu0 %v452, 118
        %v525 = vpop.permute.xlu0 %524
        %526 = vrot.lane.b32.xlu0 %v456, 118
        %v527 = vpop.permute.xlu0 %526
        %528 = vrot.lane.b32.xlu0 %v453, 118
        %v529 = vpop.permute.xlu0 %528
        %530 = vrot.lane.b32.xlu0 %v457, 118
        %v531 = vpop.permute.xlu0 %530
        %vm532 = vcmask 965632
        %v533 = vsel %vm532, %v517, %v519
        %v534 = vsel %vm532, %v521, %v523
        %v535 = vsel %vm532, %v525, %v527
        %v536 = vsel %vm532, %v529, %v531
        %541 = vrot.lane.b32.xlu0 %v450, 117
        %v542 = vpop.permute.xlu0 %541
        %543 = vrot.lane.b32.xlu0 %v454, 117
        %v544 = vpop.permute.xlu0 %543
        %545 = vrot.lane.b32.xlu0 %v451, 117
        %v546 = vpop.permute.xlu0 %545
        %547 = vrot.lane.b32.xlu0 %v455, 117
        %v548 = vpop.permute.xlu0 %547
        %549 = vrot.lane.b32.xlu0 %v452, 117
        %v550 = vpop.permute.xlu0 %549
        %551 = vrot.lane.b32.xlu0 %v456, 117
        %v552 = vpop.permute.xlu0 %551
        %553 = vrot.lane.b32.xlu0 %v453, 117
        %v554 = vpop.permute.xlu0 %553
        %555 = vrot.lane.b32.xlu0 %v457, 117
        %v556 = vpop.permute.xlu0 %555
        %vm557 = vcmask 957440
        %v558 = vsel %vm557, %v542, %v544
        %v559 = vsel %vm557, %v546, %v548
        %v560 = vsel %vm557, %v550, %v552
        %v561 = vsel %vm557, %v554, %v556
        %566 = vrot.lane.b32.xlu0 %v450, 116
        %v567 = vpop.permute.xlu0 %566
        %568 = vrot.lane.b32.xlu0 %v454, 116
        %v569 = vpop.permute.xlu0 %568
        %570 = vrot.lane.b32.xlu0 %v451, 116
        %v571 = vpop.permute.xlu0 %570
        %572 = vrot.lane.b32.xlu0 %v455, 116
        %v573 = vpop.permute.xlu0 %572
        %574 = vrot.lane.b32.xlu0 %v452, 116
        %v575 = vpop.permute.xlu0 %574
        %576 = vrot.lane.b32.xlu0 %v456, 116
        %v577 = vpop.permute.xlu0 %576
        %578 = vrot.lane.b32.xlu0 %v453, 116
        %v579 = vpop.permute.xlu0 %578
        %580 = vrot.lane.b32.xlu0 %v457, 116
        %v581 = vpop.permute.xlu0 %580
        %vm582 = vcmask 949248
        %v583 = vsel %vm582, %v567, %v569
        %v584 = vsel %vm582, %v571, %v573
        %v585 = vsel %vm582, %v575, %v577
        %v586 = vsel %vm582, %v579, %v581
        %591 = vrot.lane.b32.xlu0 %v450, 108
        %v592 = vpop.permute.xlu0 %591
        %593 = vrot.lane.b32.xlu0 %v454, 108
        %v594 = vpop.permute.xlu0 %593
        %595 = vrot.lane.b32.xlu0 %v451, 108
        %v596 = vpop.permute.xlu0 %595
        %597 = vrot.lane.b32.xlu0 %v455, 108
        %v598 = vpop.permute.xlu0 %597
        %599 = vrot.lane.b32.xlu0 %v452, 108
        %v600 = vpop.permute.xlu0 %599
        %601 = vrot.lane.b32.xlu0 %v456, 108
        %v602 = vpop.permute.xlu0 %601
        %603 = vrot.lane.b32.xlu0 %v453, 108
        %v604 = vpop.permute.xlu0 %603
        %605 = vrot.lane.b32.xlu0 %v457, 108
        %v606 = vpop.permute.xlu0 %605
        %vm607 = vcmask 883712
        %v608 = vsel %vm607, %v592, %v594
        %v609 = vsel %vm607, %v596, %v598
        %v610 = vsel %vm607, %v600, %v602
        %v611 = vsel %vm607, %v604, %v606
        %616 = vrot.lane.b32.xlu0 %v450, 107
        %v617 = vpop.permute.xlu0 %616
        %618 = vrot.lane.b32.xlu0 %v454, 107
        %v619 = vpop.permute.xlu0 %618
        %620 = vrot.lane.b32.xlu0 %v451, 107
        %v621 = vpop.permute.xlu0 %620
        %622 = vrot.lane.b32.xlu0 %v455, 107
        %v623 = vpop.permute.xlu0 %622
        %624 = vrot.lane.b32.xlu0 %v452, 107
        %v625 = vpop.permute.xlu0 %624
        %626 = vrot.lane.b32.xlu0 %v456, 107
        %v627 = vpop.permute.xlu0 %626
        %628 = vrot.lane.b32.xlu0 %v453, 107
        %v629 = vpop.permute.xlu0 %628
        %630 = vrot.lane.b32.xlu0 %v457, 107
        %v631 = vpop.permute.xlu0 %630
        %vm632 = vcmask 875520
        %v633 = vsel %vm632, %v617, %v619
        %v634 = vsel %vm632, %v621, %v623
        %v635 = vsel %vm632, %v625, %v627
        %v636 = vsel %vm632, %v629, %v631
        %641 = vrot.lane.b32.xlu0 %v450, 106
        %v642 = vpop.permute.xlu0 %641
        %643 = vrot.lane.b32.xlu0 %v454, 106
        %v644 = vpop.permute.xlu0 %643
        %645 = vrot.lane.b32.xlu0 %v451, 106
        %v646 = vpop.permute.xlu0 %645
        %647 = vrot.lane.b32.xlu0 %v455, 106
        %v648 = vpop.permute.xlu0 %647
        %649 = vrot.lane.b32.xlu0 %v452, 106
        %v650 = vpop.permute.xlu0 %649
        %651 = vrot.lane.b32.xlu0 %v456, 106
        %v652 = vpop.permute.xlu0 %651
        %653 = vrot.lane.b32.xlu0 %v453, 106
        %v654 = vpop.permute.xlu0 %653
        %655 = vrot.lane.b32.xlu0 %v457, 106
        %v656 = vpop.permute.xlu0 %655
        %vm657 = vcmask 867328
        %v658 = vsel %vm657, %v642, %v644
        %v659 = vsel %vm657, %v646, %v648
        %v660 = vsel %vm657, %v650, %v652
        %v661 = vsel %vm657, %v654, %v656
        %v666 = vld [vmem:[#allocation7] sm:$0xff]
        %v667 = vld [vmem:[#allocation7 + $0x8] sm:$0xff]
        %v668 = vld [vmem:[#allocation7 + $0x10] sm:$0xf]
        %v669 = vld [vmem:[#allocation7 + $0x14] sm:$0xff]
        %v670 = vld [vmem:[#allocation7 + $0x1c] sm:$0xff]
        %v671 = vld [vmem:[#allocation7 + $0x24] sm:$0xf]
        %v672 = vld [vmem:[#allocation7 + $0x28] sm:$0xff]
        %v673 = vld [vmem:[#allocation7 + $0x30] sm:$0xff]
        %v674 = vld [vmem:[#allocation7 + $0x38] sm:$0xf]
        %v675 = vld [vmem:[#allocation7 + $0x3c] sm:$0xff]
        %v676 = vld [vmem:[#allocation7 + $0x44] sm:$0xff]
        %v677 = vld [vmem:[#allocation7 + $0x4c] sm:$0xf]
        %v678 = vld [vmem:[#allocation7 + $0x50] sm:$0xff]
        %v679 = vld [vmem:[#allocation7 + $0x58] sm:$0xff]
        %v680 = vld [vmem:[#allocation7 + $0x60] sm:$0xf]
        %v681 = vld [vmem:[#allocation7 + $0x64] sm:$0xff]
        %v682 = vld [vmem:[#allocation7 + $0x6c] sm:$0xff]
        %v683 = vld [vmem:[#allocation7 + $0x74] sm:$0xf]
        %v684 = vld [vmem:[#allocation7 + $0x78] sm:$0xff]
        %v685 = vld [vmem:[#allocation7 + $0x80] sm:$0xff]
        %v686 = vld [vmem:[#allocation7 + $0x88] sm:$0xf]
        %v687 = vld [vmem:[#allocation7 + $0x8c] sm:$0xff]
        %v688 = vld [vmem:[#allocation7 + $0x94] sm:$0xff]
        %v689 = vld [vmem:[#allocation7 + $0x9c] sm:$0xf]
        %v690 = vld [vmem:[%s3] sm:$0xff]
        %v691 = vld [vmem:[%s3 + $0x8] sm:$0xff]
        %v692 = vld [vmem:[%s3 + $0x10] sm:$0xff]
        %v693 = vld [vmem:[%s3 + $0x18] sm:$0xff]
        %v694 = vld [vmem:[%s3 + $0x20] sm:$0xff]
        %v695 = vld [vmem:[%s3 + $0x28] sm:$0xff]
        %v696 = vld [vmem:[%s3 + $0x30] sm:$0xff]
        %v697 = vld [vmem:[%s3 + $0x38] sm:$0xff]
        %699 = vset.pattern.permute.xlu0 0
        %700 = vperm.xlu0 %699, %v690
        %v701 = vpop.permute.xlu0 %700
        %704 = vset.pattern.permute.xlu0 0
        %705 = vperm.xlu0 %704, %v691
        %v706 = vpop.permute.xlu0 %705
        %709 = vset.pattern.permute.xlu0 0
        %710 = vperm.xlu0 %709, %v692
        %v711 = vpop.permute.xlu0 %710
        %714 = vset.pattern.permute.xlu0 0
        %715 = vperm.xlu0 %714, %v693
        %v716 = vpop.permute.xlu0 %715
        %719 = vset.pattern.permute.xlu0 0
        %720 = vperm.xlu0 %719, %v694
        %v721 = vpop.permute.xlu0 %720
        %724 = vset.pattern.permute.xlu0 0
        %725 = vperm.xlu0 %724, %v695
        %v726 = vpop.permute.xlu0 %725
        %729 = vset.pattern.permute.xlu0 0
        %730 = vperm.xlu0 %729, %v696
        %v731 = vpop.permute.xlu0 %730
        %734 = vset.pattern.permute.xlu0 0
        %735 = vperm.xlu0 %734, %v697
        %v736 = vpop.permute.xlu0 %735
        %v762 = vunpack.c.l.b16 %v666
        %v763 = vunpack.c.h.b16 %v666
        %v764 = vunpack.c.l.b16 %v667
        %v765 = vunpack.c.h.b16 %v667
        %v766 = vunpack.c.l.b16 %v668
        %v767 = vunpack.c.l.b16 %v669
        %v768 = vunpack.c.h.b16 %v669
        %v769 = vunpack.c.l.b16 %v670
        %v770 = vunpack.c.h.b16 %v670
        %v771 = vunpack.c.l.b16 %v671
        %v772 = vunpack.c.l.b16 %v672
        %v773 = vunpack.c.h.b16 %v672
        %v774 = vunpack.c.l.b16 %v673
        %v775 = vunpack.c.h.b16 %v673
        %v776 = vunpack.c.l.b16 %v674
        %v777 = vunpack.c.l.b16 %v675
        %v778 = vunpack.c.h.b16 %v675
        %v779 = vunpack.c.l.b16 %v676
        %v780 = vunpack.c.h.b16 %v676
        %v781 = vunpack.c.l.b16 %v677
        %v782 = vunpack.c.l.b16 %v678
        %v783 = vunpack.c.h.b16 %v678
        %v784 = vunpack.c.l.b16 %v679
        %v785 = vunpack.c.h.b16 %v679
        %v786 = vunpack.c.l.b16 %v680
        %v787 = vunpack.c.l.b16 %v681
        %v788 = vunpack.c.h.b16 %v681
        %v789 = vunpack.c.l.b16 %v682
        %v790 = vunpack.c.h.b16 %v682
        %v791 = vunpack.c.l.b16 %v683
        %v792 = vunpack.c.l.b16 %v684
        %v793 = vunpack.c.h.b16 %v684
        %v794 = vunpack.c.l.b16 %v685
        %v795 = vunpack.c.h.b16 %v685
        %v796 = vunpack.c.l.b16 %v686
        %v797 = vunpack.c.l.b16 %v687
        %v798 = vunpack.c.h.b16 %v687
        %v799 = vunpack.c.l.b16 %v688
        %v800 = vunpack.c.h.b16 %v688
        %v801 = vunpack.c.l.b16 %v689
        %v802 = vpack.c.b16 %v767, %v762
        %v803 = vpack.c.b16 %v768, %v763
        %v804 = vpack.c.b16 %v769, %v764
        %v805 = vpack.c.b16 %v770, %v765
        %v806 = vpack.c.b16 %v771, %v766
        %v807 = vpack.c.b16 %v777, %v772
        %v808 = vpack.c.b16 %v778, %v773
        %v809 = vpack.c.b16 %v779, %v774
        %v810 = vpack.c.b16 %v780, %v775
        %v811 = vpack.c.b16 %v781, %v776
        %v812 = vpack.c.b16 %v787, %v782
        %v813 = vpack.c.b16 %v788, %v783
        %v814 = vpack.c.b16 %v789, %v784
        %v815 = vpack.c.b16 %v790, %v785
        %v816 = vpack.c.b16 %v791, %v786
        %v817 = vpack.c.b16 %v797, %v792
        %v818 = vpack.c.b16 %v798, %v793
        %v819 = vpack.c.b16 %v799, %v794
        %v820 = vpack.c.b16 %v800, %v795
        %v821 = vpack.c.b16 %v801, %v796
        %vm838 = vcmask 523264
        %v840 = vsel %vm838, %v806, 0
        %v843 = vsel %vm838, %v811, 0
        %v846 = vsel %vm838, %v816, 0
        %v849 = vsel %vm838, %v821, 0
        %851 = vmatprep.subr.bf16.mxu0 0
        %852 = vmatpush1.bf16.msra.mxu0 %v486
        %853 = vmatprep.subr.bf16.mxu0 0
        %854 = vmatpush1.bf16.msra.mxu0 %v485
        %855 = vmatprep.subr.bf16.mxu0 0
        %856 = vmatpush1.bf16.msra.mxu0 %v484
        %857 = vmatprep.subr.bf16.mxu0 0
        %858 = vmatpush1.bf16.msra.mxu0 %v483
        %859 = vmatprep.subr.bf16.mxu0 0
        %860 = vmatpush1.bf16.msra.mxu0 %v453
        %861 = vmatprep.subr.bf16.mxu0 0
        %862 = vmatpush1.bf16.msra.mxu0 %v452
        %863 = vmatprep.subr.bf16.mxu0 0
        %864 = vmatpush1.bf16.msra.mxu0 %v451
        %865 = vmatprep.subr.bf16.mxu0 0
        %866 = vmatpush1.bf16.msra.mxu0 %v450
        %867 = vmatprep.subr.bf16.mxu0 0
        %868 = vmatpush2.bf16.msra.mxu0 %v536
        %869 = vmatprep.subr.bf16.mxu0 0
        %870 = vmatpush2.bf16.msra.mxu0 %v535
        %871 = vmatprep.subr.bf16.mxu0 0
        %872 = vmatpush2.bf16.msra.mxu0 %v534
        %873 = vmatprep.subr.bf16.mxu0 0
        %874 = vmatpush2.bf16.msra.mxu0 %v533
        %875 = vmatprep.subr.bf16.mxu0 0
        %876 = vmatpush2.bf16.msra.mxu0 %v511
        %877 = vmatprep.subr.bf16.mxu0 0
        %878 = vmatpush2.bf16.msra.mxu0 %v510
        %879 = vmatprep.subr.bf16.mxu0 0
        %880 = vmatpush2.bf16.msra.mxu0 %v509
        %881 = vmatprep.subr.bf16.mxu0 0
        %882 = vmatpush2.bf16.msra.mxu0 %v508
        %883 = vmatprep.mubr.bf16.mxu0 %v803
        %884 = vmatmul.mubr.bf16.gmra.mxu0 %v802
        %v885 = vpop.f32.mrf.mxu0
        %v886 = vadd.f32 %v701, %v885
        %v887 = vpop.f32.mrf.mxu0
        %v888 = vpop.f32.mrf.mxu0
        %v889 = vadd.f32 %v706, %v888
        %v890 = vpop.f32.mrf.mxu0
        %891 = vmatprep.mubr.bf16.mxu0 %v808
        %892 = vmatmul.mubr.bf16.gmra.mxu0 %v807
        %v893 = vpop.f32.mrf.mxu0
        %v894 = vadd.f32 %v711, %v893
        %v895 = vpop.f32.mrf.mxu0
        %v896 = vpop.f32.mrf.mxu0
        %v897 = vadd.f32 %v716, %v896
        %v898 = vpop.f32.mrf.mxu0
        %899 = vmatprep.mubr.bf16.mxu0 %v813
        %900 = vmatmul.mubr.bf16.gmra.mxu0 %v812
        %v901 = vpop.f32.mrf.mxu0
        %v902 = vadd.f32 %v721, %v901
        %v903 = vpop.f32.mrf.mxu0
        %v904 = vpop.f32.mrf.mxu0
        %v905 = vadd.f32 %v726, %v904
        %v906 = vpop.f32.mrf.mxu0
        %907 = vmatprep.mubr.bf16.mxu0 %v818
        %908 = vmatmul.mubr.bf16.gmra.mxu0 %v817
        %v909 = vpop.f32.mrf.mxu0
        %v910 = vadd.f32 %v731, %v909
        %v911 = vpop.f32.mrf.mxu0
        %v912 = vpop.f32.mrf.mxu0
        %v913 = vadd.f32 %v736, %v912
        %v914 = vpop.f32.mrf.mxu0
        %915 = vdwg.mxu0
        %916 = vmatprep.subr.bf16.mxu0 0
        %917 = vmatpush1.bf16.msra.mxu0 %v586
        %918 = vmatprep.subr.bf16.mxu0 0
        %919 = vmatpush1.bf16.msra.mxu0 %v585
        %920 = vmatprep.subr.bf16.mxu0 0
        %921 = vmatpush1.bf16.msra.mxu0 %v584
        %922 = vmatprep.subr.bf16.mxu0 0
        %923 = vmatpush1.bf16.msra.mxu0 %v583
        %924 = vmatprep.subr.bf16.mxu0 0
        %925 = vmatpush1.bf16.msra.mxu0 %v561
        %926 = vmatprep.subr.bf16.mxu0 0
        %927 = vmatpush1.bf16.msra.mxu0 %v560
        %928 = vmatprep.subr.bf16.mxu0 0
        %929 = vmatpush1.bf16.msra.mxu0 %v559
        %930 = vmatprep.subr.bf16.mxu0 0
        %931 = vmatpush1.bf16.msra.mxu0 %v558
        %932 = vmatprep.subr.bf16.mxu0 0
        %933 = vmatpush2.bf16.msra.mxu0 %v636
        %934 = vmatprep.subr.bf16.mxu0 0
        %935 = vmatpush2.bf16.msra.mxu0 %v635
        %936 = vmatprep.subr.bf16.mxu0 0
        %937 = vmatpush2.bf16.msra.mxu0 %v634
        %938 = vmatprep.subr.bf16.mxu0 0
        %939 = vmatpush2.bf16.msra.mxu0 %v633
        %940 = vmatprep.subr.bf16.mxu0 0
        %941 = vmatpush2.bf16.msra.mxu0 %v611
        %942 = vmatprep.subr.bf16.mxu0 0
        %943 = vmatpush2.bf16.msra.mxu0 %v610
        %944 = vmatprep.subr.bf16.mxu0 0
        %945 = vmatpush2.bf16.msra.mxu0 %v609
        %946 = vmatprep.subr.bf16.mxu0 0
        %947 = vmatpush2.bf16.msra.mxu0 %v608
        %948 = vmatprep.mubr.bf16.mxu0 %v805
        %949 = vmatmul.mubr.bf16.gmra.mxu0 %v804
        %v950 = vpop.f32.mrf.mxu0
        %v951 = vadd.f32 %v886, %v950
        %v952 = vpop.f32.mrf.mxu0
        %v953 = vpop.f32.mrf.mxu0
        %v954 = vadd.f32 %v889, %v953
        %v955 = vpop.f32.mrf.mxu0
        %956 = vmatprep.mubr.bf16.mxu0 %v810
        %957 = vmatmul.mubr.bf16.gmra.mxu0 %v809
        %v958 = vpop.f32.mrf.mxu0
        %v959 = vadd.f32 %v894, %v958
        %v960 = vpop.f32.mrf.mxu0
        %v961 = vpop.f32.mrf.mxu0
        %v962 = vadd.f32 %v897, %v961
        %v963 = vpop.f32.mrf.mxu0
        %964 = vmatprep.mubr.bf16.mxu0 %v815
        %965 = vmatmul.mubr.bf16.gmra.mxu0 %v814
        %v966 = vpop.f32.mrf.mxu0
        %v967 = vadd.f32 %v902, %v966
        %v968 = vpop.f32.mrf.mxu0
        %v969 = vpop.f32.mrf.mxu0
        %v970 = vadd.f32 %v905, %v969
        %v971 = vpop.f32.mrf.mxu0
        %972 = vmatprep.mubr.bf16.mxu0 %v820
        %973 = vmatmul.mubr.bf16.gmra.mxu0 %v819
        %v974 = vpop.f32.mrf.mxu0
        %v975 = vadd.f32 %v910, %v974
        %v976 = vpop.f32.mrf.mxu0
        %v977 = vpop.f32.mrf.mxu0
        %v978 = vadd.f32 %v913, %v977
        %v979 = vpop.f32.mrf.mxu0
        %980 = vdwg.mxu0
        %981 = vmatprep.subr.bf16.mxu0 0
        %982 = vmatpush1.bf16.msra.mxu0 0
        %983 = vmatprep.subr.bf16.mxu0 0
        %984 = vmatpush1.bf16.msra.mxu0 0
        %985 = vmatprep.subr.bf16.mxu0 0
        %986 = vmatpush1.bf16.msra.mxu0 0
        %987 = vmatprep.subr.bf16.mxu0 0
        %988 = vmatpush1.bf16.msra.mxu0 0
        %989 = vmatprep.subr.bf16.mxu0 0
        %990 = vmatpush1.bf16.msra.mxu0 %v661
        %991 = vmatprep.subr.bf16.mxu0 0
        %992 = vmatpush1.bf16.msra.mxu0 %v660
        %993 = vmatprep.subr.bf16.mxu0 0
        %994 = vmatpush1.bf16.msra.mxu0 %v659
        %995 = vmatprep.subr.bf16.mxu0 0
        %996 = vmatpush1.bf16.msra.mxu0 %v658
        %997 = vmatprep.subr.bf16.mxu0 0
        %998 = vmatpush2.bf16.msra.mxu0 0
        %999 = vmatprep.subr.bf16.mxu0 0
        %1000 = vmatpush2.bf16.msra.mxu0 0
        %1001 = vmatprep.subr.bf16.mxu0 0
        %1002 = vmatpush2.bf16.msra.mxu0 0
        %1003 = vmatprep.subr.bf16.mxu0 0
        %1004 = vmatpush2.bf16.msra.mxu0 0
        %1005 = vmatprep.subr.bf16.mxu0 0
        %1006 = vmatpush2.bf16.msra.mxu0 0
        %1007 = vmatprep.subr.bf16.mxu0 0
        %1008 = vmatpush2.bf16.msra.mxu0 0
        %1009 = vmatprep.subr.bf16.mxu0 0
        %1010 = vmatpush2.bf16.msra.mxu0 0
        %1011 = vmatprep.subr.bf16.mxu0 0
        %1012 = vmatpush2.bf16.msra.mxu0 0
        %1013 = vmatprep.mubr.bf16.mxu0 0
        %1014 = vmatmul.mubr.bf16.gmra.mxu0 %v840
        %v1015 = vpop.f32.mrf.mxu0
        %v1016 = vadd.f32 %v951, %v1015
        %v1017 = vpop.f32.mrf.mxu0
        %v1018 = vpop.f32.mrf.mxu0
        %v1019 = vadd.f32 %v954, %v1018
        %v1020 = vpop.f32.mrf.mxu0
        %1021 = vmatprep.mubr.bf16.mxu0 0
        %1022 = vmatmul.mubr.bf16.gmra.mxu0 %v843
        %v1023 = vpop.f32.mrf.mxu0
        %v1024 = vadd.f32 %v959, %v1023
        %v1025 = vpop.f32.mrf.mxu0
        %v1026 = vpop.f32.mrf.mxu0
        %v1027 = vadd.f32 %v962, %v1026
        %v1028 = vpop.f32.mrf.mxu0
        %1029 = vmatprep.mubr.bf16.mxu0 0
        %1030 = vmatmul.mubr.bf16.gmra.mxu0 %v846
        %v1031 = vpop.f32.mrf.mxu0
        %v1032 = vadd.f32 %v967, %v1031
        %v1033 = vpop.f32.mrf.mxu0
        %v1034 = vpop.f32.mrf.mxu0
        %v1035 = vadd.f32 %v970, %v1034
        %v1036 = vpop.f32.mrf.mxu0
        %1037 = vmatprep.mubr.bf16.mxu0 0
        %1038 = vmatmul.mubr.bf16.gmra.mxu0 %v849
        %v1039 = vpop.f32.mrf.mxu0
        %v1040 = vadd.f32 %v975, %v1039
        %v1041 = vpop.f32.mrf.mxu0
        %v1042 = vpop.f32.mrf.mxu0
        %v1043 = vadd.f32 %v978, %v1042
        %v1044 = vpop.f32.mrf.mxu0
        %1045 = vdwg.mxu0
        %v1046 = vmax.f32 %v1016, 0.0
        %v1047 = vmax.f32 %v1019, 0.0
        %v1048 = vmax.f32 %v1024, 0.0
        %v1049 = vmax.f32 %v1027, 0.0
        %v1050 = vmax.f32 %v1032, 0.0
        %v1051 = vmax.f32 %v1035, 0.0
        %v1052 = vmax.f32 %v1040, 0.0
        %v1053 = vmax.f32 %v1043, 0.0
        %v1054 = vsel %vm433, 1, 0
        %v1055 = vlaneseq
        %v1056 = vshrl.u32 %v1055, 7
        %v1057 = vsub.s32 0, %v1056
        %v1058 = vrot.slane %v1054, %v1057
        %vm1059 = vcmp.eq.s32.totalorder %v1058, 1
        %v1060 = vsel %vm1059, %v1046, 0.0
        %v1061 = vsel %vm1059, %v1047, 0.0
        %v1062 = vsel %vm1059, %v1048, 0.0
        %v1063 = vsel %vm1059, %v1049, 0.0
        %v1064 = vsel %vm1059, %v1050, 0.0
        %v1065 = vsel %vm1059, %v1051, 0.0
        %v1066 = vsel %vm1059, %v1052, 0.0
        %v1067 = vsel %vm1059, %v1053, 0.0
        %1068 = vst [vmem:[#allocation2] sm:$0xff] %v1060
        %1069 = vst [vmem:[#allocation2 + $0x10] sm:$0xff] %v1061
        %1070 = vst [vmem:[#allocation2 + $0x20] sm:$0xff] %v1062
        %1071 = vst [vmem:[#allocation2 + $0x30] sm:$0xff] %v1063
        %1072 = vst [vmem:[#allocation2 + $0x40] sm:$0xff] %v1064
        %1073 = vst [vmem:[#allocation2 + $0x50] sm:$0xff] %v1065
        %1074 = vst [vmem:[#allocation2 + $0x60] sm:$0xff] %v1066
        %1075 = vst [vmem:[#allocation2 + $0x70] sm:$0xff] %v1067
        %v1076 = vld [vmem:[#allocation2] sm:$0xff]
        %v1077 = vld [vmem:[#allocation2 + $0x10] sm:$0xff]
        %v1078 = vld [vmem:[#allocation2 + $0x20] sm:$0xff]
        %v1079 = vld [vmem:[#allocation2 + $0x30] sm:$0xff]
        %v1080 = vld [vmem:[#allocation2 + $0x40] sm:$0xff]
        %v1081 = vld [vmem:[#allocation2 + $0x50] sm:$0xff]
        %v1082 = vld [vmem:[#allocation2 + $0x60] sm:$0xff]
        %v1083 = vld [vmem:[#allocation2 + $0x70] sm:$0xff]
        %v1084 = vpack.c.bf16 %v1077, %v1076
        %v1085 = vpack.c.bf16 %v1079, %v1078
        %v1086 = vpack.c.bf16 %v1081, %v1080
        %v1087 = vpack.c.bf16 %v1083, %v1082
        %v1088 = vld [vmem:[#allocation2] sm:$0xff]
        %v1089 = vld [vmem:[#allocation2 + $0x8] sm:$0xff]
        %v1090 = vld [vmem:[#allocation2 + $0x10] sm:$0xff]
        %v1091 = vld [vmem:[#allocation2 + $0x18] sm:$0xff]
        %v1092 = vld [vmem:[#allocation2 + $0x20] sm:$0xff]
        %v1093 = vld [vmem:[#allocation2 + $0x28] sm:$0xff]
        %v1094 = vld [vmem:[#allocation2 + $0x30] sm:$0xff]
        %v1095 = vld [vmem:[#allocation2 + $0x38] sm:$0xff]
        %v1096 = vld [vmem:[#allocation2 + $0x40] sm:$0xff]
        %v1097 = vld [vmem:[#allocation2 + $0x48] sm:$0xff]
        %v1098 = vld [vmem:[#allocation2 + $0x50] sm:$0xff]
        %v1099 = vld [vmem:[#allocation2 + $0x58] sm:$0xff]
        %v1100 = vld [vmem:[#allocation2 + $0x60] sm:$0xff]
        %v1101 = vld [vmem:[#allocation2 + $0x68] sm:$0xff]
        %v1102 = vld [vmem:[#allocation2 + $0x70] sm:$0xff]
        %v1103 = vld [vmem:[#allocation2 + $0x78] sm:$0xff]
        %v1104 = vpack.c.bf16 %v1090, %v1088
        %v1105 = vpack.c.bf16 %v1091, %v1089
        %v1106 = vpack.c.bf16 %v1094, %v1092
        %v1107 = vpack.c.bf16 %v1095, %v1093
        %v1108 = vpack.c.bf16 %v1098, %v1096
        %v1109 = vpack.c.bf16 %v1099, %v1097
        %v1110 = vpack.c.bf16 %v1102, %v1100
        %v1111 = vpack.c.bf16 %v1103, %v1101
        %1120 = vrot.lane.b32.xlu0 %v1104, 127
        %v1121 = vpop.permute.xlu0 %1120
        %1122 = vrot.lane.b32.xlu0 %v1105, 127
        %v1123 = vpop.permute.xlu0 %1122
        %1124 = vrot.lane.b32.xlu0 %v1106, 127
        %v1125 = vpop.permute.xlu0 %1124
        %1126 = vrot.lane.b32.xlu0 %v1107, 127
        %v1127 = vpop.permute.xlu0 %1126
        %1128 = vrot.lane.b32.xlu0 %v1108, 127
        %v1129 = vpop.permute.xlu0 %1128
        %1130 = vrot.lane.b32.xlu0 %v1109, 127
        %v1131 = vpop.permute.xlu0 %1130
        %1132 = vrot.lane.b32.xlu0 %v1110, 127
        %v1133 = vpop.permute.xlu0 %1132
        %1134 = vrot.lane.b32.xlu0 %v1111, 127
        %v1135 = vpop.permute.xlu0 %1134
        %v1136 = vsel %vm482, %v1121, %v1123
        %v1137 = vsel %vm482, %v1125, %v1127
        %v1138 = vsel %vm482, %v1129, %v1131
        %v1139 = vsel %vm482, %v1133, %v1135
        %1144 = vrot.lane.b32.xlu0 %v1104, 118
        %v1145 = vpop.permute.xlu0 %1144
        %1146 = vrot.lane.b32.xlu0 %v1105, 118
        %v1147 = vpop.permute.xlu0 %1146
        %1148 = vrot.lane.b32.xlu0 %v1106, 118
        %v1149 = vpop.permute.xlu0 %1148
        %1150 = vrot.lane.b32.xlu0 %v1107, 118
        %v1151 = vpop.permute.xlu0 %1150
        %1152 = vrot.lane.b32.xlu0 %v1108, 118
        %v1153 = vpop.permute.xlu0 %1152
        %1154 = vrot.lane.b32.xlu0 %v1109, 118
        %v1155 = vpop.permute.xlu0 %1154
        %1156 = vrot.lane.b32.xlu0 %v1110, 118
        %v1157 = vpop.permute.xlu0 %1156
        %1158 = vrot.lane.b32.xlu0 %v1111, 118
        %v1159 = vpop.permute.xlu0 %1158
        %v1160 = vsel %vm532, %v1145, %v1147
        %v1161 = vsel %vm532, %v1149, %v1151
        %v1162 = vsel %vm532, %v1153, %v1155
        %v1163 = vsel %vm532, %v1157, %v1159
        %1168 = vrot.lane.b32.xlu0 %v1104, 117
        %v1169 = vpop.permute.xlu0 %1168
        %1170 = vrot.lane.b32.xlu0 %v1105, 117
        %v1171 = vpop.permute.xlu0 %1170
        %1172 = vrot.lane.b32.xlu0 %v1106, 117
        %v1173 = vpop.permute.xlu0 %1172
        %1174 = vrot.lane.b32.xlu0 %v1107, 117
        %v1175 = vpop.permute.xlu0 %1174
        %1176 = vrot.lane.b32.xlu0 %v1108, 117
        %v1177 = vpop.permute.xlu0 %1176
        %1178 = vrot.lane.b32.xlu0 %v1109, 117
        %v1179 = vpop.permute.xlu0 %1178
        %1180 = vrot.lane.b32.xlu0 %v1110, 117
        %v1181 = vpop.permute.xlu0 %1180
        %1182 = vrot.lane.b32.xlu0 %v1111, 117
        %v1183 = vpop.permute.xlu0 %1182
        %v1184 = vsel %vm557, %v1169, %v1171
        %v1185 = vsel %vm557, %v1173, %v1175
        %v1186 = vsel %vm557, %v1177, %v1179
        %v1187 = vsel %vm557, %v1181, %v1183
        %v1192 = vld [vmem:[#allocation9] sm:$0xff]
        %v1193 = vld [vmem:[#allocation9 + $0x8] sm:$0xff]
        %v1194 = vld [vmem:[#allocation9 + $0x10] sm:$0xff]
        %v1195 = vld [vmem:[#allocation9 + $0x18] sm:$0xff]
        %v1196 = vld [vmem:[#allocation9 + $0x20] sm:$0xff]
        %v1197 = vld [vmem:[#allocation9 + $0x28] sm:$0xff]
        %v1198 = vld [vmem:[#allocation9 + $0x30] sm:$0xff]
        %v1199 = vld [vmem:[#allocation9 + $0x38] sm:$0xff]
        %v1200 = vld [vmem:[#allocation9 + $0x40] sm:$0xff]
        %v1201 = vld [vmem:[#allocation9 + $0x48] sm:$0xff]
        %v1202 = vld [vmem:[#allocation9 + $0x50] sm:$0xff]
        %v1203 = vld [vmem:[#allocation9 + $0x58] sm:$0xff]
        %v1204 = vld [vmem:[#allocation9 + $0x60] sm:$0xff]
        %v1205 = vld [vmem:[#allocation9 + $0x68] sm:$0xff]
        %v1206 = vld [vmem:[#allocation9 + $0x70] sm:$0xff]
        %v1207 = vld [vmem:[#allocation9 + $0x78] sm:$0xff]
        %v1208 = vld [vmem:[%s5] sm:$0xff]
        %v1209 = vld [vmem:[%s5 + $0x8] sm:$0xff]
        %v1210 = vld [vmem:[%s5 + $0x10] sm:$0xff]
        %v1211 = vld [vmem:[%s5 + $0x18] sm:$0xff]
        %v1212 = vld [vmem:[%s5 + $0x20] sm:$0xff]
        %v1213 = vld [vmem:[%s5 + $0x28] sm:$0xff]
        %v1214 = vld [vmem:[%s5 + $0x30] sm:$0xff]
        %v1215 = vld [vmem:[%s5 + $0x38] sm:$0xff]
        %v1216 = vld [vmem:[%s5 + $0x40] sm:$0xff]
        %v1217 = vld [vmem:[%s5 + $0x48] sm:$0xff]
        %v1218 = vld [vmem:[%s5 + $0x50] sm:$0xff]
        %v1219 = vld [vmem:[%s5 + $0x58] sm:$0xff]
        %v1220 = vld [vmem:[%s5 + $0x60] sm:$0xff]
        %v1221 = vld [vmem:[%s5 + $0x68] sm:$0xff]
        %v1222 = vld [vmem:[%s5 + $0x70] sm:$0xff]
        %v1223 = vld [vmem:[%s5 + $0x78] sm:$0xff]
        %1225 = vset.pattern.permute.xlu0 0
        %1226 = vperm.xlu0 %1225, %v1208
        %v1227 = vpop.permute.xlu0 %1226
        %1230 = vset.pattern.permute.xlu0 0
        %1231 = vperm.xlu0 %1230, %v1209
        %v1232 = vpop.permute.xlu0 %1231
        %1235 = vset.pattern.permute.xlu0 0
        %1236 = vperm.xlu0 %1235, %v1210
        %v1237 = vpop.permute.xlu0 %1236
        %1240 = vset.pattern.permute.xlu0 0
        %1241 = vperm.xlu0 %1240, %v1211
        %v1242 = vpop.permute.xlu0 %1241
        %1245 = vset.pattern.permute.xlu0 0
        %1246 = vperm.xlu0 %1245, %v1212
        %v1247 = vpop.permute.xlu0 %1246
        %1250 = vset.pattern.permute.xlu0 0
        %1251 = vperm.xlu0 %1250, %v1213
        %v1252 = vpop.permute.xlu0 %1251
        %1255 = vset.pattern.permute.xlu0 0
        %1256 = vperm.xlu0 %1255, %v1214
        %v1257 = vpop.permute.xlu0 %1256
        %1260 = vset.pattern.permute.xlu0 0
        %1261 = vperm.xlu0 %1260, %v1215
        %v1262 = vpop.permute.xlu0 %1261
        %1265 = vset.pattern.permute.xlu0 0
        %1266 = vperm.xlu0 %1265, %v1216
        %v1267 = vpop.permute.xlu0 %1266
        %1270 = vset.pattern.permute.xlu0 0
        %1271 = vperm.xlu0 %1270, %v1217
        %v1272 = vpop.permute.xlu0 %1271
        %1275 = vset.pattern.permute.xlu0 0
        %1276 = vperm.xlu0 %1275, %v1218
        %v1277 = vpop.permute.xlu0 %1276
        %1280 = vset.pattern.permute.xlu0 0
        %1281 = vperm.xlu0 %1280, %v1219
        %v1282 = vpop.permute.xlu0 %1281
        %1285 = vset.pattern.permute.xlu0 0
        %1286 = vperm.xlu0 %1285, %v1220
        %v1287 = vpop.permute.xlu0 %1286
        %1290 = vset.pattern.permute.xlu0 0
        %1291 = vperm.xlu0 %1290, %v1221
        %v1292 = vpop.permute.xlu0 %1291
        %1295 = vset.pattern.permute.xlu0 0
        %1296 = vperm.xlu0 %1295, %v1222
        %v1297 = vpop.permute.xlu0 %1296
        %1300 = vset.pattern.permute.xlu0 0
        %1301 = vperm.xlu0 %1300, %v1223
        %v1302 = vpop.permute.xlu0 %1301
        %v1320 = vunpack.c.l.b16 %v1192
        %v1321 = vunpack.c.h.b16 %v1192
        %v1322 = vunpack.c.l.b16 %v1193
        %v1323 = vunpack.c.h.b16 %v1193
        %v1324 = vunpack.c.l.b16 %v1194
        %v1325 = vunpack.c.h.b16 %v1194
        %v1326 = vunpack.c.l.b16 %v1195
        %v1327 = vunpack.c.h.b16 %v1195
        %v1328 = vunpack.c.l.b16 %v1196
        %v1329 = vunpack.c.h.b16 %v1196
        %v1330 = vunpack.c.l.b16 %v1197
        %v1331 = vunpack.c.h.b16 %v1197
        %v1332 = vunpack.c.l.b16 %v1198
        %v1333 = vunpack.c.h.b16 %v1198
        %v1334 = vunpack.c.l.b16 %v1199
        %v1335 = vunpack.c.h.b16 %v1199
        %v1336 = vunpack.c.l.b16 %v1200
        %v1337 = vunpack.c.h.b16 %v1200
        %v1338 = vunpack.c.l.b16 %v1201
        %v1339 = vunpack.c.h.b16 %v1201
        %v1340 = vunpack.c.l.b16 %v1202
        %v1341 = vunpack.c.h.b16 %v1202
        %v1342 = vunpack.c.l.b16 %v1203
        %v1343 = vunpack.c.h.b16 %v1203
        %v1344 = vunpack.c.l.b16 %v1204
        %v1345 = vunpack.c.h.b16 %v1204
        %v1346 = vunpack.c.l.b16 %v1205
        %v1347 = vunpack.c.h.b16 %v1205
        %v1348 = vunpack.c.l.b16 %v1206
        %v1349 = vunpack.c.h.b16 %v1206
        %v1350 = vunpack.c.l.b16 %v1207
        %v1351 = vunpack.c.h.b16 %v1207
        %v1352 = vpack.c.b16 %v1322, %v1320
        %v1353 = vpack.c.b16 %v1323, %v1321
        %v1354 = vpack.c.b16 %v1326, %v1324
        %v1355 = vpack.c.b16 %v1327, %v1325
        %v1356 = vpack.c.b16 %v1330, %v1328
        %v1357 = vpack.c.b16 %v1331, %v1329
        %v1358 = vpack.c.b16 %v1334, %v1332
        %v1359 = vpack.c.b16 %v1335, %v1333
        %v1360 = vpack.c.b16 %v1338, %v1336
        %v1361 = vpack.c.b16 %v1339, %v1337
        %v1362 = vpack.c.b16 %v1342, %v1340
        %v1363 = vpack.c.b16 %v1343, %v1341
        %v1364 = vpack.c.b16 %v1346, %v1344
        %v1365 = vpack.c.b16 %v1347, %v1345
        %v1366 = vpack.c.b16 %v1350, %v1348
        %v1367 = vpack.c.b16 %v1351, %v1349
        %1384 = vmatprep.subr.bf16.mxu0 0
        %1385 = vmatpush1.bf16.msra.mxu0 %v1139
        %1386 = vmatprep.subr.bf16.mxu0 0
        %1387 = vmatpush1.bf16.msra.mxu0 %v1138
        %1388 = vmatprep.subr.bf16.mxu0 0
        %1389 = vmatpush1.bf16.msra.mxu0 %v1137
        %1390 = vmatprep.subr.bf16.mxu0 0
        %1391 = vmatpush1.bf16.msra.mxu0 %v1136
        %1392 = vmatprep.subr.bf16.mxu0 0
        %1393 = vmatpush1.bf16.msra.mxu0 %v1087
        %1394 = vmatprep.subr.bf16.mxu0 0
        %1395 = vmatpush1.bf16.msra.mxu0 %v1086
        %1396 = vmatprep.subr.bf16.mxu0 0
        %1397 = vmatpush1.bf16.msra.mxu0 %v1085
        %1398 = vmatprep.subr.bf16.mxu0 0
        %1399 = vmatpush1.bf16.msra.mxu0 %v1084
        %1400 = vmatprep.subr.bf16.mxu0 0
        %1401 = vmatpush2.bf16.msra.mxu0 %v1187
        %1402 = vmatprep.subr.bf16.mxu0 0
        %1403 = vmatpush2.bf16.msra.mxu0 %v1186
        %1404 = vmatprep.subr.bf16.mxu0 0
        %1405 = vmatpush2.bf16.msra.mxu0 %v1185
        %1406 = vmatprep.subr.bf16.mxu0 0
        %1407 = vmatpush2.bf16.msra.mxu0 %v1184
        %1408 = vmatprep.subr.bf16.mxu0 0
        %1409 = vmatpush2.bf16.msra.mxu0 %v1163
        %1410 = vmatprep.subr.bf16.mxu0 0
        %1411 = vmatpush2.bf16.msra.mxu0 %v1162
        %1412 = vmatprep.subr.bf16.mxu0 0
        %1413 = vmatpush2.bf16.msra.mxu0 %v1161
        %1414 = vmatprep.subr.bf16.mxu0 0
        %1415 = vmatpush2.bf16.msra.mxu0 %v1160
        %1416 = vmatprep.mubr.bf16.mxu0 %v1353
        %1417 = vmatmul.mubr.bf16.gmra.mxu0 %v1352
        %v1418 = vpop.f32.mrf.mxu0
        %v1419 = vadd.f32 %v1227, %v1418
        %v1420 = vpop.f32.mrf.mxu0
        %v1421 = vpop.f32.mrf.mxu0
        %v1422 = vadd.f32 %v1232, %v1421
        %v1423 = vpop.f32.mrf.mxu0
        %1424 = vmatprep.mubr.bf16.mxu0 %v1355
        %1425 = vmatmul.mubr.bf16.gmra.mxu0 %v1354
        %v1426 = vpop.f32.mrf.mxu0
        %v1427 = vadd.f32 %v1237, %v1426
        %v1428 = vpop.f32.mrf.mxu0
        %v1429 = vpop.f32.mrf.mxu0
        %v1430 = vadd.f32 %v1242, %v1429
        %v1431 = vpop.f32.mrf.mxu0
        %1432 = vmatprep.mubr.bf16.mxu0 %v1357
        %1433 = vmatmul.mubr.bf16.gmra.mxu0 %v1356
        %v1434 = vpop.f32.mrf.mxu0
        %v1435 = vadd.f32 %v1247, %v1434
        %v1436 = vpop.f32.mrf.mxu0
        %v1437 = vpop.f32.mrf.mxu0
        %v1438 = vadd.f32 %v1252, %v1437
        %v1439 = vpop.f32.mrf.mxu0
        %1440 = vmatprep.mubr.bf16.mxu0 %v1359
        %1441 = vmatmul.mubr.bf16.gmra.mxu0 %v1358
        %v1442 = vpop.f32.mrf.mxu0
        %v1443 = vadd.f32 %v1257, %v1442
        %v1444 = vpop.f32.mrf.mxu0
        %v1445 = vpop.f32.mrf.mxu0
        %v1446 = vadd.f32 %v1262, %v1445
        %v1447 = vpop.f32.mrf.mxu0
        %1448 = vmatprep.mubr.bf16.mxu0 %v1361
        %1449 = vmatmul.mubr.bf16.gmra.mxu0 %v1360
        %v1450 = vpop.f32.mrf.mxu0
        %v1451 = vadd.f32 %v1267, %v1450
        %v1452 = vpop.f32.mrf.mxu0
        %v1453 = vpop.f32.mrf.mxu0
        %v1454 = vadd.f32 %v1272, %v1453
        %v1455 = vpop.f32.mrf.mxu0
        %1456 = vmatprep.mubr.bf16.mxu0 %v1363
        %1457 = vmatmul.mubr.bf16.gmra.mxu0 %v1362
        %v1458 = vpop.f32.mrf.mxu0
        %v1459 = vadd.f32 %v1277, %v1458
        %v1460 = vpop.f32.mrf.mxu0
        %v1461 = vpop.f32.mrf.mxu0
        %v1462 = vadd.f32 %v1282, %v1461
        %v1463 = vpop.f32.mrf.mxu0
        %1464 = vmatprep.mubr.bf16.mxu0 %v1365
        %1465 = vmatmul.mubr.bf16.gmra.mxu0 %v1364
        %v1466 = vpop.f32.mrf.mxu0
        %v1467 = vadd.f32 %v1287, %v1466
        %v1468 = vpop.f32.mrf.mxu0
        %v1469 = vpop.f32.mrf.mxu0
        %v1470 = vadd.f32 %v1292, %v1469
        %v1471 = vpop.f32.mrf.mxu0
        %1472 = vmatprep.mubr.bf16.mxu0 %v1367
        %1473 = vmatmul.mubr.bf16.gmra.mxu0 %v1366
        %v1474 = vpop.f32.mrf.mxu0
        %v1475 = vadd.f32 %v1297, %v1474
        %v1476 = vpop.f32.mrf.mxu0
        %v1477 = vpop.f32.mrf.mxu0
        %v1478 = vadd.f32 %v1302, %v1477
        %v1479 = vpop.f32.mrf.mxu0
        %1480 = vdwg.mxu0
        %v1481 = vmax.f32 %v1419, 0.0
        %v1482 = vmax.f32 %v1422, 0.0
        %v1483 = vmax.f32 %v1427, 0.0
        %v1484 = vmax.f32 %v1430, 0.0
        %v1485 = vmax.f32 %v1435, 0.0
        %v1486 = vmax.f32 %v1438, 0.0
        %v1487 = vmax.f32 %v1443, 0.0
        %v1488 = vmax.f32 %v1446, 0.0
        %v1489 = vmax.f32 %v1451, 0.0
        %v1490 = vmax.f32 %v1454, 0.0
        %v1491 = vmax.f32 %v1459, 0.0
        %v1492 = vmax.f32 %v1462, 0.0
        %v1493 = vmax.f32 %v1467, 0.0
        %v1494 = vmax.f32 %v1470, 0.0
        %v1495 = vmax.f32 %v1475, 0.0
        %v1496 = vmax.f32 %v1478, 0.0
        %v1497 = vsel %vm1059, %v1481, 0.0
        %v1498 = vsel %vm1059, %v1482, 0.0
        %v1499 = vsel %vm1059, %v1483, 0.0
        %v1500 = vsel %vm1059, %v1484, 0.0
        %v1501 = vsel %vm1059, %v1485, 0.0
        %v1502 = vsel %vm1059, %v1486, 0.0
        %v1503 = vsel %vm1059, %v1487, 0.0
        %v1504 = vsel %vm1059, %v1488, 0.0
        %v1505 = vsel %vm1059, %v1489, 0.0
        %v1506 = vsel %vm1059, %v1490, 0.0
        %v1507 = vsel %vm1059, %v1491, 0.0
        %v1508 = vsel %vm1059, %v1492, 0.0
        %v1509 = vsel %vm1059, %v1493, 0.0
        %v1510 = vsel %vm1059, %v1494, 0.0
        %v1511 = vsel %vm1059, %v1495, 0.0
        %v1512 = vsel %vm1059, %v1496, 0.0
        %1513 = vst [vmem:[#allocation3] sm:$0xff] %v1497
        %1514 = vst [vmem:[#allocation3 + $0x10] sm:$0xff] %v1498
        %1515 = vst [vmem:[#allocation3 + $0x20] sm:$0xff] %v1499
        %1516 = vst [vmem:[#allocation3 + $0x30] sm:$0xff] %v1500
        %1517 = vst [vmem:[#allocation3 + $0x40] sm:$0xff] %v1501
        %1518 = vst [vmem:[#allocation3 + $0x50] sm:$0xff] %v1502
        %1519 = vst [vmem:[#allocation3 + $0x60] sm:$0xff] %v1503
        %1520 = vst [vmem:[#allocation3 + $0x70] sm:$0xff] %v1504
        %1521 = vst [vmem:[#allocation3 + $0x80] sm:$0xff] %v1505
        %1522 = vst [vmem:[#allocation3 + $0x90] sm:$0xff] %v1506
        %1523 = vst [vmem:[#allocation3 + $0xa0] sm:$0xff] %v1507
        %1524 = vst [vmem:[#allocation3 + $0xb0] sm:$0xff] %v1508
        %1525 = vst [vmem:[#allocation3 + $0xc0] sm:$0xff] %v1509
        %1526 = vst [vmem:[#allocation3 + $0xd0] sm:$0xff] %v1510
        %1527 = vst [vmem:[#allocation3 + $0xe0] sm:$0xff] %v1511
        %1528 = vst [vmem:[#allocation3 + $0xf0] sm:$0xff] %v1512
        %v1529 = vld [vmem:[#allocation3] sm:$0xff]
        %v1530 = vld [vmem:[#allocation3 + $0x10] sm:$0xff]
        %v1531 = vld [vmem:[#allocation3 + $0x20] sm:$0xff]
        %v1532 = vld [vmem:[#allocation3 + $0x30] sm:$0xff]
        %v1533 = vpack.c.bf16 %v1530, %v1529
        %v1534 = vpack.c.bf16 %v1532, %v1531
        %v1535 = vld [vmem:[#allocation3 + $0x40] sm:$0xff]
        %v1536 = vld [vmem:[#allocation3 + $0x50] sm:$0xff]
        %v1537 = vld [vmem:[#allocation3 + $0x60] sm:$0xff]
        %v1538 = vld [vmem:[#allocation3 + $0x70] sm:$0xff]
        %v1539 = vpack.c.bf16 %v1536, %v1535
        %v1540 = vpack.c.bf16 %v1538, %v1537
        %v1541 = vld [vmem:[#allocation3 + $0x80] sm:$0xff]
        %v1542 = vld [vmem:[#allocation3 + $0x90] sm:$0xff]
        %v1543 = vld [vmem:[#allocation3 + $0xa0] sm:$0xff]
        %v1544 = vld [vmem:[#allocation3 + $0xb0] sm:$0xff]
        %v1545 = vpack.c.bf16 %v1542, %v1541
        %v1546 = vpack.c.bf16 %v1544, %v1543
        %v1547 = vld [vmem:[#allocation3 + $0xc0] sm:$0xff]
        %v1548 = vld [vmem:[#allocation3 + $0xd0] sm:$0xff]
        %v1549 = vld [vmem:[#allocation3 + $0xe0] sm:$0xff]
        %v1550 = vld [vmem:[#allocation3 + $0xf0] sm:$0xff]
        %v1551 = vpack.c.bf16 %v1548, %v1547
        %v1552 = vpack.c.bf16 %v1550, %v1549
        %v1553 = vld [vmem:[#allocation3 + $0x8] sm:$0xff]
        %v1554 = vld [vmem:[#allocation3 + $0x18] sm:$0xff]
        %v1555 = vld [vmem:[#allocation3 + $0x28] sm:$0xff]
        %v1556 = vld [vmem:[#allocation3 + $0x38] sm:$0xff]
        %v1557 = vpack.c.bf16 %v1554, %v1553
        %v1558 = vpack.c.bf16 %v1556, %v1555
        %v1559 = vld [vmem:[#allocation3 + $0x88] sm:$0xff]
        %v1560 = vld [vmem:[#allocation3 + $0x98] sm:$0xff]
        %v1561 = vld [vmem:[#allocation3 + $0xa8] sm:$0xff]
        %v1562 = vld [vmem:[#allocation3 + $0xb8] sm:$0xff]
        %v1563 = vpack.c.bf16 %v1560, %v1559
        %v1564 = vpack.c.bf16 %v1562, %v1561
        %1569 = vrot.lane.b32.xlu0 %v1533, 127
        %v1570 = vpop.permute.xlu0 %1569
        %1571 = vrot.lane.b32.xlu0 %v1557, 127
        %v1572 = vpop.permute.xlu0 %1571
        %1573 = vrot.lane.b32.xlu0 %v1534, 127
        %v1574 = vpop.permute.xlu0 %1573
        %1575 = vrot.lane.b32.xlu0 %v1558, 127
        %v1576 = vpop.permute.xlu0 %1575
        %v1577 = vsel %vm482, %v1570, %v1572
        %v1578 = vsel %vm482, %v1574, %v1576
        %1585 = vrot.lane.b32.xlu0 %v1545, 127
        %v1586 = vpop.permute.xlu0 %1585
        %1587 = vrot.lane.b32.xlu0 %v1563, 127
        %v1588 = vpop.permute.xlu0 %1587
        %1589 = vrot.lane.b32.xlu0 %v1546, 127
        %v1590 = vpop.permute.xlu0 %1589
        %1591 = vrot.lane.b32.xlu0 %v1564, 127
        %v1592 = vpop.permute.xlu0 %1591
        %v1593 = vsel %vm482, %v1586, %v1588
        %v1594 = vsel %vm482, %v1590, %v1592
        %v1597 = vld [vmem:[#allocation3 + $0x48] sm:$0xff]
        %v1598 = vld [vmem:[#allocation3 + $0x58] sm:$0xff]
        %v1599 = vld [vmem:[#allocation3 + $0x68] sm:$0xff]
        %v1600 = vld [vmem:[#allocation3 + $0x78] sm:$0xff]
        %v1601 = vpack.c.bf16 %v1598, %v1597
        %v1602 = vpack.c.bf16 %v1600, %v1599
        %1603 = vrot.lane.b32.xlu0 %v1533, 118
        %v1604 = vpop.permute.xlu0 %1603
        %1605 = vrot.lane.b32.xlu0 %v1557, 118
        %v1606 = vpop.permute.xlu0 %1605
        %1607 = vrot.lane.b32.xlu0 %v1534, 118
        %v1608 = vpop.permute.xlu0 %1607
        %1609 = vrot.lane.b32.xlu0 %v1558, 118
        %v1610 = vpop.permute.xlu0 %1609
        %v1611 = vsel %vm532, %v1604, %v1606
        %v1612 = vsel %vm532, %v1608, %v1610
        %1619 = vrot.lane.b32.xlu0 %v1539, 118
        %v1620 = vpop.permute.xlu0 %1619
        %1621 = vrot.lane.b32.xlu0 %v1601, 118
        %v1622 = vpop.permute.xlu0 %1621
        %1623 = vrot.lane.b32.xlu0 %v1540, 118
        %v1624 = vpop.permute.xlu0 %1623
        %1625 = vrot.lane.b32.xlu0 %v1602, 118
        %v1626 = vpop.permute.xlu0 %1625
        %v1627 = vsel %vm532, %v1620, %v1622
        %v1628 = vsel %vm532, %v1624, %v1626
        %1631 = vrot.lane.b32.xlu0 %v1533, 117
        %v1632 = vpop.permute.xlu0 %1631
        %1633 = vrot.lane.b32.xlu0 %v1557, 117
        %v1634 = vpop.permute.xlu0 %1633
        %1635 = vrot.lane.b32.xlu0 %v1534, 117
        %v1636 = vpop.permute.xlu0 %1635
        %1637 = vrot.lane.b32.xlu0 %v1558, 117
        %v1638 = vpop.permute.xlu0 %1637
        %v1639 = vsel %vm557, %v1632, %v1634
        %v1640 = vsel %vm557, %v1636, %v1638
        %v1643 = vld [vmem:[#allocation10] sm:$0xf]
        %v1644 = vld [vmem:[#allocation10 + $0x4] sm:$0xf]
        %v1645 = vld [vmem:[#allocation10 + $0x8] sm:$0xf]
        %v1646 = vld [vmem:[#allocation10 + $0xc] sm:$0xf]
        %v1647 = vld [vmem:[#allocation10 + $0x10] sm:$0xf]
        %v1648 = vld [vmem:[#allocation10 + $0x14] sm:$0xf]
        %v1649 = vld [vmem:[#allocation10 + $0x18] sm:$0xf]
        %v1650 = vld [vmem:[#allocation10 + $0x1c] sm:$0xf]
        %v1651 = vld [vmem:[%s7] sm:$0xff]
        %v1652 = vld [vmem:[%s7 + $0x8] sm:$0xff]
        %v1653 = vld [vmem:[%s7 + $0x10] sm:$0xff]
        %v1654 = vld [vmem:[%s7 + $0x18] sm:$0xff]
        %v1655 = vld [vmem:[%s7 + $0x20] sm:$0xff]
        %v1656 = vld [vmem:[%s7 + $0x28] sm:$0xff]
        %v1657 = vld [vmem:[%s7 + $0x30] sm:$0xff]
        %v1658 = vld [vmem:[%s7 + $0x38] sm:$0xff]
        %1660 = vset.pattern.permute.xlu0 0
        %1661 = vperm.xlu0 %1660, %v1651
        %v1662 = vpop.permute.xlu0 %1661
        %1665 = vset.pattern.permute.xlu0 0
        %1666 = vperm.xlu0 %1665, %v1652
        %v1667 = vpop.permute.xlu0 %1666
        %1670 = vset.pattern.permute.xlu0 0
        %1671 = vperm.xlu0 %1670, %v1653
        %v1672 = vpop.permute.xlu0 %1671
        %1675 = vset.pattern.permute.xlu0 0
        %1676 = vperm.xlu0 %1675, %v1654
        %v1677 = vpop.permute.xlu0 %1676
        %1680 = vset.pattern.permute.xlu0 0
        %1681 = vperm.xlu0 %1680, %v1655
        %v1682 = vpop.permute.xlu0 %1681
        %1685 = vset.pattern.permute.xlu0 0
        %1686 = vperm.xlu0 %1685, %v1656
        %v1687 = vpop.permute.xlu0 %1686
        %1690 = vset.pattern.permute.xlu0 0
        %1691 = vperm.xlu0 %1690, %v1657
        %v1692 = vpop.permute.xlu0 %1691
        %1695 = vset.pattern.permute.xlu0 0
        %1696 = vperm.xlu0 %1695, %v1658
        %v1697 = vpop.permute.xlu0 %1696
        %v1707 = vunpack.c.l.b16 %v1643
        %v1708 = vunpack.c.l.b16 %v1644
        %v1709 = vunpack.c.l.b16 %v1645
        %v1710 = vunpack.c.l.b16 %v1646
        %v1711 = vunpack.c.l.b16 %v1647
        %v1712 = vunpack.c.l.b16 %v1648
        %v1713 = vunpack.c.l.b16 %v1649
        %v1714 = vunpack.c.l.b16 %v1650
        %v1715 = vpack.c.b16 %v1708, %v1707
        %v1716 = vpack.c.b16 %v1710, %v1709
        %v1717 = vpack.c.b16 %v1712, %v1711
        %v1718 = vpack.c.b16 %v1714, %v1713
        %1723 = vmatprep.subr.bf16.mxu0 %v1594
        %1724 = vmatpush1.bf16.msra.mxu0 %v1552
        %1725 = vmatprep.subr.bf16.mxu0 %v1593
        %1726 = vmatpush1.bf16.msra.mxu0 %v1551
        %1727 = vmatprep.subr.bf16.mxu0 %v1552
        %1728 = vmatpush1.bf16.msra.mxu0 %v1546
        %1729 = vmatprep.subr.bf16.mxu0 %v1551
        %1730 = vmatpush1.bf16.msra.mxu0 %v1545
        %1731 = vmatprep.subr.bf16.mxu0 %v1578
        %1732 = vmatpush1.bf16.msra.mxu0 %v1540
        %1733 = vmatprep.subr.bf16.mxu0 %v1577
        %1734 = vmatpush1.bf16.msra.mxu0 %v1539
        %1735 = vmatprep.subr.bf16.mxu0 %v1540
        %1736 = vmatpush1.bf16.msra.mxu0 %v1534
        %1737 = vmatprep.subr.bf16.mxu0 %v1539
        %1738 = vmatpush1.bf16.msra.mxu0 %v1533
        %1739 = vmatprep.subr.bf16.mxu0 0
        %1740 = vmatpush2.bf16.msra.mxu0 0
        %1741 = vmatprep.subr.bf16.mxu0 0
        %1742 = vmatpush2.bf16.msra.mxu0 0
        %1743 = vmatprep.subr.bf16.mxu0 0
        %1744 = vmatpush2.bf16.msra.mxu0 0
        %1745 = vmatprep.subr.bf16.mxu0 0
        %1746 = vmatpush2.bf16.msra.mxu0 0
        %1747 = vmatprep.subr.bf16.mxu0 0
        %1748 = vmatpush2.bf16.msra.mxu0 0
        %1749 = vmatprep.subr.bf16.mxu0 0
        %1750 = vmatpush2.bf16.msra.mxu0 0
        %1751 = vmatprep.subr.bf16.mxu0 0
        %1752 = vmatpush2.bf16.msra.mxu0 0
        %1753 = vmatprep.subr.bf16.mxu0 0
        %1754 = vmatpush2.bf16.msra.mxu0 0
        %1755 = vmatprep.mubr.bf16.mxu0 0
        %1756 = vmatmul.mubr.bf16.gmra.mxu0 %v1715
        %v1757 = vpop.f32.mrf.mxu0
        %v1758 = vadd.f32 %v1662, %v1757
        %v1759 = vpop.f32.mrf.mxu0
        %v1760 = vadd.f32 %v1662, %v1759
        %v1761 = vpop.f32.mrf.mxu0
        %v1762 = vadd.f32 %v1667, %v1761
        %v1763 = vpop.f32.mrf.mxu0
        %v1764 = vadd.f32 %v1667, %v1763
        %1765 = vmatprep.mubr.bf16.mxu0 0
        %1766 = vmatmul.mubr.bf16.gmra.mxu0 %v1716
        %v1767 = vpop.f32.mrf.mxu0
        %v1768 = vadd.f32 %v1672, %v1767
        %v1769 = vpop.f32.mrf.mxu0
        %v1770 = vadd.f32 %v1672, %v1769
        %v1771 = vpop.f32.mrf.mxu0
        %v1772 = vadd.f32 %v1677, %v1771
        %v1773 = vpop.f32.mrf.mxu0
        %v1774 = vadd.f32 %v1677, %v1773
        %1775 = vmatprep.mubr.bf16.mxu0 0
        %1776 = vmatmul.mubr.bf16.gmra.mxu0 %v1717
        %v1777 = vpop.f32.mrf.mxu0
        %v1778 = vadd.f32 %v1682, %v1777
        %v1779 = vpop.f32.mrf.mxu0
        %v1780 = vadd.f32 %v1682, %v1779
        %v1781 = vpop.f32.mrf.mxu0
        %v1782 = vadd.f32 %v1687, %v1781
        %v1783 = vpop.f32.mrf.mxu0
        %v1784 = vadd.f32 %v1687, %v1783
        %1785 = vmatprep.mubr.bf16.mxu0 0
        %1786 = vmatmul.mubr.bf16.gmra.mxu0 %v1718
        %v1787 = vpop.f32.mrf.mxu0
        %v1788 = vadd.f32 %v1692, %v1787
        %v1789 = vpop.f32.mrf.mxu0
        %v1790 = vadd.f32 %v1692, %v1789
        %v1791 = vpop.f32.mrf.mxu0
        %v1792 = vadd.f32 %v1697, %v1791
        %v1793 = vpop.f32.mrf.mxu0
        %v1794 = vadd.f32 %v1697, %v1793
        %1795 = vdwg.mxu0
        %1796 = vmatprep.subr.bf16.mxu0 %v1640
        %1797 = vmatpush1.bf16.msra.mxu0 %v1628
        %1798 = vmatprep.subr.bf16.mxu0 %v1639
        %1799 = vmatpush1.bf16.msra.mxu0 %v1627
        %1800 = vmatprep.subr.bf16.mxu0 %v1628
        %1801 = vmatpush1.bf16.msra.mxu0 %v1612
        %1802 = vmatprep.subr.bf16.mxu0 %v1627
        %1803 = vmatpush1.bf16.msra.mxu0 %v1611
        %1804 = vmatprep.subr.bf16.mxu0 %v1594
        %1805 = vmatpush1.bf16.msra.mxu0 %v1552
        %1806 = vmatprep.subr.bf16.mxu0 %v1593
        %1807 = vmatpush1.bf16.msra.mxu0 %v1551
        %1808 = vmatprep.subr.bf16.mxu0 %v1552
        %1809 = vmatpush1.bf16.msra.mxu0 %v1546
        %1810 = vmatprep.subr.bf16.mxu0 %v1551
        %1811 = vmatpush1.bf16.msra.mxu0 %v1545
        %1812 = vmatprep.subr.bf16.mxu0 0
        %1813 = vmatpush2.bf16.msra.mxu0 0
        %1814 = vmatprep.subr.bf16.mxu0 0
        %1815 = vmatpush2.bf16.msra.mxu0 0
        %1816 = vmatprep.subr.bf16.mxu0 0
        %1817 = vmatpush2.bf16.msra.mxu0 0
        %1818 = vmatprep.subr.bf16.mxu0 0
        %1819 = vmatpush2.bf16.msra.mxu0 0
        %1820 = vmatprep.subr.bf16.mxu0 0
        %1821 = vmatpush2.bf16.msra.mxu0 0
        %1822 = vmatprep.subr.bf16.mxu0 0
        %1823 = vmatpush2.bf16.msra.mxu0 0
        %1824 = vmatprep.subr.bf16.mxu0 0
        %1825 = vmatpush2.bf16.msra.mxu0 0
        %1826 = vmatprep.subr.bf16.mxu0 0
        %1827 = vmatpush2.bf16.msra.mxu0 0
        %1828 = vmatprep.mubr.bf16.mxu0 0
        %1829 = vmatmul.mubr.bf16.gmra.mxu0 %v1715
        %v1830 = vpop.f32.mrf.mxu0
        %v1831 = vadd.f32 %v1662, %v1830
        %v1832 = vpop.f32.mrf.mxu0
        %v1833 = vadd.f32 %v1662, %v1832
        %v1834 = vpop.f32.mrf.mxu0
        %v1835 = vadd.f32 %v1667, %v1834
        %v1836 = vpop.f32.mrf.mxu0
        %v1837 = vadd.f32 %v1667, %v1836
        %1838 = vmatprep.mubr.bf16.mxu0 0
        %1839 = vmatmul.mubr.bf16.gmra.mxu0 %v1716
        %v1840 = vpop.f32.mrf.mxu0
        %v1841 = vadd.f32 %v1672, %v1840
        %v1842 = vpop.f32.mrf.mxu0
        %v1843 = vadd.f32 %v1672, %v1842
        %v1844 = vpop.f32.mrf.mxu0
        %v1845 = vadd.f32 %v1677, %v1844
        %v1846 = vpop.f32.mrf.mxu0
        %v1847 = vadd.f32 %v1677, %v1846
        %1848 = vmatprep.mubr.bf16.mxu0 0
        %1849 = vmatmul.mubr.bf16.gmra.mxu0 %v1717
        %v1850 = vpop.f32.mrf.mxu0
        %v1851 = vadd.f32 %v1682, %v1850
        %v1852 = vpop.f32.mrf.mxu0
        %v1853 = vadd.f32 %v1682, %v1852
        %v1854 = vpop.f32.mrf.mxu0
        %v1855 = vadd.f32 %v1687, %v1854
        %v1856 = vpop.f32.mrf.mxu0
        %v1857 = vadd.f32 %v1687, %v1856
        %1858 = vmatprep.mubr.bf16.mxu0 0
        %1859 = vmatmul.mubr.bf16.gmra.mxu0 %v1718
        %v1860 = vpop.f32.mrf.mxu0
        %v1861 = vadd.f32 %v1692, %v1860
        %v1862 = vpop.f32.mrf.mxu0
        %v1863 = vadd.f32 %v1692, %v1862
        %v1864 = vpop.f32.mrf.mxu0
        %v1865 = vadd.f32 %v1697, %v1864
        %v1866 = vpop.f32.mrf.mxu0
        %v1867 = vadd.f32 %v1697, %v1866
        %1868 = vdwg.mxu0
        %v1869 = vmax.f32 %v1758, 0.0
        %v1870 = vmax.f32 %v1760, 0.0
        %v1871 = vmax.f32 %v1831, 0.0
        %v1872 = vmax.f32 %v1833, 0.0
        %v1873 = vmax.f32 %v1762, 0.0
        %v1874 = vmax.f32 %v1764, 0.0
        %v1875 = vmax.f32 %v1835, 0.0
        %v1876 = vmax.f32 %v1837, 0.0
        %v1877 = vmax.f32 %v1768, 0.0
        %v1878 = vmax.f32 %v1770, 0.0
        %v1879 = vmax.f32 %v1841, 0.0
        %v1880 = vmax.f32 %v1843, 0.0
        %v1881 = vmax.f32 %v1772, 0.0
        %v1882 = vmax.f32 %v1774, 0.0
        %v1883 = vmax.f32 %v1845, 0.0
        %v1884 = vmax.f32 %v1847, 0.0
        %v1885 = vmax.f32 %v1778, 0.0
        %v1886 = vmax.f32 %v1780, 0.0
        %v1887 = vmax.f32 %v1851, 0.0
        %v1888 = vmax.f32 %v1853, 0.0
        %v1889 = vmax.f32 %v1782, 0.0
        %v1890 = vmax.f32 %v1784, 0.0
        %v1891 = vmax.f32 %v1855, 0.0
        %v1892 = vmax.f32 %v1857, 0.0
        %v1893 = vmax.f32 %v1788, 0.0
        %v1894 = vmax.f32 %v1790, 0.0
        %v1895 = vmax.f32 %v1861, 0.0
        %v1896 = vmax.f32 %v1863, 0.0
        %v1897 = vmax.f32 %v1792, 0.0
        %v1898 = vmax.f32 %v1794, 0.0
        %v1899 = vmax.f32 %v1865, 0.0
        %v1900 = vmax.f32 %v1867, 0.0
        %v1901 = vsel %vm1059, %v1869, 0.0
        %v1902 = vsel %vm1059, %v1870, 0.0
        %v1903 = vsel %vm1059, %v1871, 0.0
        %v1904 = vsel %vm1059, %v1872, 0.0
        %v1905 = vsel %vm1059, %v1873, 0.0
        %v1906 = vsel %vm1059, %v1874, 0.0
        %v1907 = vsel %vm1059, %v1875, 0.0
        %v1908 = vsel %vm1059, %v1876, 0.0
        %v1909 = vsel %vm1059, %v1877, 0.0
        %v1910 = vsel %vm1059, %v1878, 0.0
        %v1911 = vsel %vm1059, %v1879, 0.0
        %v1912 = vsel %vm1059, %v1880, 0.0
        %v1913 = vsel %vm1059, %v1881, 0.0
        %v1914 = vsel %vm1059, %v1882, 0.0
        %v1915 = vsel %vm1059, %v1883, 0.0
        %v1916 = vsel %vm1059, %v1884, 0.0
        %v1917 = vsel %vm1059, %v1885, 0.0
        %v1918 = vsel %vm1059, %v1886, 0.0
        %v1919 = vsel %vm1059, %v1887, 0.0
        %v1920 = vsel %vm1059, %v1888, 0.0
        %v1921 = vsel %vm1059, %v1889, 0.0
        %v1922 = vsel %vm1059, %v1890, 0.0
        %v1923 = vsel %vm1059, %v1891, 0.0
        %v1924 = vsel %vm1059, %v1892, 0.0
        %v1925 = vsel %vm1059, %v1893, 0.0
        %v1926 = vsel %vm1059, %v1894, 0.0
        %v1927 = vsel %vm1059, %v1895, 0.0
        %v1928 = vsel %vm1059, %v1896, 0.0
        %v1929 = vsel %vm1059, %v1897, 0.0
        %v1930 = vsel %vm1059, %v1898, 0.0
        %v1931 = vsel %vm1059, %v1899, 0.0
        %v1932 = vsel %vm1059, %v1900, 0.0
        %1933 = vst [vmem:[#allocation4] sm:$0xff] %v1901
        %1934 = vst [vmem:[#allocation4 + $0x8] sm:$0xff] %v1902
        %1935 = vst [vmem:[#allocation4 + $0x10] sm:$0xff] %v1903
        %1936 = vst [vmem:[#allocation4 + $0x18] sm:$0xff] %v1904
        %1937 = vst [vmem:[#allocation4 + $0x28] sm:$0xff] %v1905
        %1938 = vst [vmem:[#allocation4 + $0x30] sm:$0xff] %v1906
        %1939 = vst [vmem:[#allocation4 + $0x38] sm:$0xff] %v1907
        %1940 = vst [vmem:[#allocation4 + $0x40] sm:$0xff] %v1908
        %1941 = vst [vmem:[#allocation4 + $0x50] sm:$0xff] %v1909
        %1942 = vst [vmem:[#allocation4 + $0x58] sm:$0xff] %v1910
        %1943 = vst [vmem:[#allocation4 + $0x60] sm:$0xff] %v1911
        %1944 = vst [vmem:[#allocation4 + $0x68] sm:$0xff] %v1912
        %1945 = vst [vmem:[#allocation4 + $0x78] sm:$0xff] %v1913
        %1946 = vst [vmem:[#allocation4 + $0x80] sm:$0xff] %v1914
        %1947 = vst [vmem:[#allocation4 + $0x88] sm:$0xff] %v1915
        %1948 = vst [vmem:[#allocation4 + $0x90] sm:$0xff] %v1916
        %1949 = vst [vmem:[#allocation4 + $0xa0] sm:$0xff] %v1917
        %1950 = vst [vmem:[#allocation4 + $0xa8] sm:$0xff] %v1918
        %1951 = vst [vmem:[#allocation4 + $0xb0] sm:$0xff] %v1919
        %1952 = vst [vmem:[#allocation4 + $0xb8] sm:$0xff] %v1920
        %1953 = vst [vmem:[#allocation4 + $0xc8] sm:$0xff] %v1921
        %1954 = vst [vmem:[#allocation4 + $0xd0] sm:$0xff] %v1922
        %1955 = vst [vmem:[#allocation4 + $0xd8] sm:$0xff] %v1923
        %1956 = vst [vmem:[#allocation4 + $0xe0] sm:$0xff] %v1924
        %1957 = vst [vmem:[#allocation4 + $0xf0] sm:$0xff] %v1925
        %1958 = vst [vmem:[#allocation4 + $0xf8] sm:$0xff] %v1926
        %1959 = vst [vmem:[#allocation4 + $0x100] sm:$0xff] %v1927
        %1960 = vst [vmem:[#allocation4 + $0x108] sm:$0xff] %v1928
        %1961 = vst [vmem:[#allocation4 + $0x118] sm:$0xff] %v1929
        %1962 = vst [vmem:[#allocation4 + $0x120] sm:$0xff] %v1930
        %1963 = vst [vmem:[#allocation4 + $0x128] sm:$0xff] %v1931
        %1964 = vst [vmem:[#allocation4 + $0x130] sm:$0xff] %v1932
        %v1965 = vld [vmem:[#allocation4] sm:$0xff]
        %v1966 = vld [vmem:[#allocation4 + $0x28] sm:$0xff]
        %v1967 = vpack.c.bf16 %v1966, %v1965
        %v1968 = vld [vmem:[#allocation4 + $0x50] sm:$0xff]
        %v1969 = vld [vmem:[#allocation4 + $0x78] sm:$0xff]
        %v1970 = vpack.c.bf16 %v1969, %v1968
        %v1971 = vld [vmem:[#allocation4 + $0x8] sm:$0xff]
        %v1972 = vld [vmem:[#allocation4 + $0x30] sm:$0xff]
        %v1973 = vpack.c.bf16 %v1972, %v1971
        %v1974 = vld [vmem:[#allocation4 + $0x58] sm:$0xff]
        %v1975 = vld [vmem:[#allocation4 + $0x80] sm:$0xff]
        %v1976 = vpack.c.bf16 %v1975, %v1974
        %v1977 = vld [vmem:[#allocation4 + $0xa0] sm:$0xff]
        %v1978 = vld [vmem:[#allocation4 + $0xc8] sm:$0xff]
        %v1979 = vpack.c.bf16 %v1978, %v1977
        %v1980 = vld [vmem:[#allocation4 + $0xf0] sm:$0xff]
        %v1981 = vld [vmem:[#allocation4 + $0x118] sm:$0xff]
        %v1982 = vpack.c.bf16 %v1981, %v1980
        %v1983 = vld [vmem:[#allocation4 + $0xa8] sm:$0xff]
        %v1984 = vld [vmem:[#allocation4 + $0xd0] sm:$0xff]
        %v1985 = vpack.c.bf16 %v1984, %v1983
        %v1986 = vld [vmem:[#allocation4 + $0xf8] sm:$0xff]
        %v1987 = vld [vmem:[#allocation4 + $0x120] sm:$0xff]
        %v1988 = vpack.c.bf16 %v1987, %v1986
        %v1989 = vld [vmem:[#allocation4 + $0x10] sm:$0xff]
        %v1990 = vld [vmem:[#allocation4 + $0x38] sm:$0xff]
        %v1991 = vpack.c.bf16 %v1990, %v1989
        %v1992 = vld [vmem:[#allocation4 + $0x60] sm:$0xff]
        %v1993 = vld [vmem:[#allocation4 + $0x88] sm:$0xff]
        %v1994 = vpack.c.bf16 %v1993, %v1992
        %v1995 = vld [vmem:[#allocation4 + $0x18] sm:$0xff]
        %v1996 = vld [vmem:[#allocation4 + $0x40] sm:$0xff]
        %v1997 = vpack.c.bf16 %v1996, %v1995
        %v1998 = vld [vmem:[#allocation4 + $0x68] sm:$0xff]
        %v1999 = vld [vmem:[#allocation4 + $0x90] sm:$0xff]
        %v2000 = vpack.c.bf16 %v1999, %v1998
        %v2001 = vld [vmem:[#allocation4 + $0xb0] sm:$0xff]
        %v2002 = vld [vmem:[#allocation4 + $0xd8] sm:$0xff]
        %v2003 = vpack.c.bf16 %v2002, %v2001
        %v2004 = vld [vmem:[#allocation4 + $0x100] sm:$0xff]
        %v2005 = vld [vmem:[#allocation4 + $0x128] sm:$0xff]
        %v2006 = vpack.c.bf16 %v2005, %v2004
        %v2007 = vld [vmem:[#allocation4 + $0xb8] sm:$0xff]
        %v2008 = vld [vmem:[#allocation4 + $0xe0] sm:$0xff]
        %v2009 = vpack.c.bf16 %v2008, %v2007
        %v2010 = vld [vmem:[#allocation4 + $0x108] sm:$0xff]
        %v2011 = vld [vmem:[#allocation4 + $0x130] sm:$0xff]
        %v2012 = vpack.c.bf16 %v2011, %v2010
        %2015 = vrot.lane.b32.xlu0 %v1967, 127
        %v2016 = vpop.permute.xlu0 %2015
        %2017 = vrot.lane.b32.xlu0 %v1973, 127
        %v2018 = vpop.permute.xlu0 %2017
        %v2019 = vsel %vm482, %v2016, %v2018
        %2023 = vrot.lane.b32.xlu0 %v1979, 127
        %v2024 = vpop.permute.xlu0 %2023
        %2025 = vrot.lane.b32.xlu0 %v1985, 127
        %v2026 = vpop.permute.xlu0 %2025
        %v2027 = vsel %vm482, %v2024, %v2026
        %2031 = vrot.lane.b32.xlu0 %v1991, 127
        %v2032 = vpop.permute.xlu0 %2031
        %2033 = vrot.lane.b32.xlu0 %v1997, 127
        %v2034 = vpop.permute.xlu0 %2033
        %v2035 = vsel %vm482, %v2032, %v2034
        %2039 = vrot.lane.b32.xlu0 %v2003, 127
        %v2040 = vpop.permute.xlu0 %2039
        %2041 = vrot.lane.b32.xlu0 %v2009, 127
        %v2042 = vpop.permute.xlu0 %2041
        %v2043 = vsel %vm482, %v2040, %v2042
        %2045 = vrot.lane.b32.xlu0 %v1967, 118
        %v2046 = vpop.permute.xlu0 %2045
        %2047 = vrot.lane.b32.xlu0 %v1973, 118
        %v2048 = vpop.permute.xlu0 %2047
        %v2049 = vsel %vm532, %v2046, %v2048
        %2053 = vrot.lane.b32.xlu0 %v1970, 118
        %v2054 = vpop.permute.xlu0 %2053
        %2055 = vrot.lane.b32.xlu0 %v1976, 118
        %v2056 = vpop.permute.xlu0 %2055
        %v2057 = vsel %vm532, %v2054, %v2056
        %2059 = vrot.lane.b32.xlu0 %v1991, 118
        %v2060 = vpop.permute.xlu0 %2059
        %v2061 = vsel %vm532, %v2048, %v2060
        %2064 = vrot.lane.b32.xlu0 %v1994, 118
        %v2065 = vpop.permute.xlu0 %2064
        %v2066 = vsel %vm532, %v2056, %v2065
        %2068 = vrot.lane.b32.xlu0 %v1967, 117
        %v2069 = vpop.permute.xlu0 %2068
        %2070 = vrot.lane.b32.xlu0 %v1973, 117
        %v2071 = vpop.permute.xlu0 %2070
        %v2072 = vsel %vm557, %v2069, %v2071
        %v2074 = vld [vmem:[#allocation12] sm:$0xf]
        %v2075 = vld [vmem:[#allocation12 + $0x4] sm:$0x3]
        %v2076 = vld [vmem:[%s9] sm:$0xff]
        %v2077 = vld [vmem:[%s9 + $0x8] sm:$0xf]
        %2079 = vset.pattern.permute.xlu0 0
        %2080 = vperm.xlu0 %2079, %v2076
        %v2081 = vpop.permute.xlu0 %2080
        %2084 = vset.pattern.permute.xlu0 0
        %2085 = vperm.xlu0 %2084, %v2077
        %v2086 = vpop.permute.xlu0 %2085
        %v2090 = vunpack.c.l.b16 %v2074
        %v2091 = vunpack.c.l.b16 %v2075
        %v2092 = vpack.c.b16 %v2091, %v2090
        %v2094 = vsel %vm838, %v2092, 0
        %2096 = vmatprep.subr.bf16.mxu0 0
        %2097 = vmatpush1.bf16.msra.mxu0 0
        %2098 = vmatprep.subr.bf16.mxu0 0
        %2099 = vmatpush1.bf16.msra.mxu0 0
        %2100 = vmatprep.subr.bf16.mxu0 0
        %2101 = vmatpush1.bf16.msra.mxu0 0
        %2102 = vmatprep.subr.bf16.mxu0 0
        %2103 = vmatpush1.bf16.msra.mxu0 0
        %2104 = vmatprep.subr.bf16.mxu0 %v1985
        %2105 = vmatpush1.bf16.msra.mxu0 %v1982
        %2106 = vmatprep.subr.bf16.mxu0 %v1982
        %2107 = vmatpush1.bf16.msra.mxu0 %v1979
        %2108 = vmatprep.subr.bf16.mxu0 %v1973
        %2109 = vmatpush1.bf16.msra.mxu0 %v1970
        %2110 = vmatprep.subr.bf16.mxu0 %v1970
        %2111 = vmatpush1.bf16.msra.mxu0 %v1967
        %2112 = vmatprep.subr.bf16.mxu0 0
        %2113 = vmatpush2.bf16.msra.mxu0 0
        %2114 = vmatprep.subr.bf16.mxu0 0
        %2115 = vmatpush2.bf16.msra.mxu0 0
        %2116 = vmatprep.subr.bf16.mxu0 0
        %2117 = vmatpush2.bf16.msra.mxu0 0
        %2118 = vmatprep.subr.bf16.mxu0 0
        %2119 = vmatpush2.bf16.msra.mxu0 0
        %2120 = vmatprep.subr.bf16.mxu0 0
        %2121 = vmatpush2.bf16.msra.mxu0 0
        %2122 = vmatprep.subr.bf16.mxu0 0
        %2123 = vmatpush2.bf16.msra.mxu0 0
        %2124 = vmatprep.subr.bf16.mxu0 0
        %2125 = vmatpush2.bf16.msra.mxu0 0
        %2126 = vmatprep.subr.bf16.mxu0 0
        %2127 = vmatpush2.bf16.msra.mxu0 0
        %2128 = vmatprep.mubr.bf16.mxu0 0
        %2129 = vmatmul.mubr.bf16.gmra.mxu0 %v2094
        %v2130 = vpop.f32.mrf.mxu0
        %v2131 = vadd.f32 %v2081, %v2130
        %v2132 = vpop.f32.mrf.mxu0
        %v2133 = vadd.f32 %v2081, %v2132
        %v2134 = vpop.f32.mrf.mxu0
        %v2135 = vadd.f32 %v2086, %v2134
        %v2136 = vpop.f32.mrf.mxu0
        %v2137 = vadd.f32 %v2086, %v2136
        %2138 = vdwg.mxu0
        %2139 = vmatprep.subr.bf16.mxu0 0
        %2140 = vmatpush1.bf16.msra.mxu0 0
        %2141 = vmatprep.subr.bf16.mxu0 0
        %2142 = vmatpush1.bf16.msra.mxu0 0
        %2143 = vmatprep.subr.bf16.mxu0 0
        %2144 = vmatpush1.bf16.msra.mxu0 0
        %2145 = vmatprep.subr.bf16.mxu0 0
        %2146 = vmatpush1.bf16.msra.mxu0 0
        %2147 = vmatprep.subr.bf16.mxu0 %v2027
        %2148 = vmatpush1.bf16.msra.mxu0 %v1988
        %2149 = vmatprep.subr.bf16.mxu0 %v1988
        %2150 = vmatpush1.bf16.msra.mxu0 %v1985
        %2151 = vmatprep.subr.bf16.mxu0 %v2019
        %2152 = vmatpush1.bf16.msra.mxu0 %v1976
        %2153 = vmatprep.subr.bf16.mxu0 %v1976
        %2154 = vmatpush1.bf16.msra.mxu0 %v1973
        %2155 = vmatprep.subr.bf16.mxu0 0
        %2156 = vmatpush2.bf16.msra.mxu0 0
        %2157 = vmatprep.subr.bf16.mxu0 0
        %2158 = vmatpush2.bf16.msra.mxu0 0
        %2159 = vmatprep.subr.bf16.mxu0 0
        %2160 = vmatpush2.bf16.msra.mxu0 0
        %2161 = vmatprep.subr.bf16.mxu0 0
        %2162 = vmatpush2.bf16.msra.mxu0 0
        %2163 = vmatprep.subr.bf16.mxu0 0
        %2164 = vmatpush2.bf16.msra.mxu0 0
        %2165 = vmatprep.subr.bf16.mxu0 0
        %2166 = vmatpush2.bf16.msra.mxu0 0
        %2167 = vmatprep.subr.bf16.mxu0 0
        %2168 = vmatpush2.bf16.msra.mxu0 0
        %2169 = vmatprep.subr.bf16.mxu0 0
        %2170 = vmatpush2.bf16.msra.mxu0 0
        %2171 = vmatprep.mubr.bf16.mxu0 0
        %2172 = vmatmul.mubr.bf16.gmra.mxu0 %v2094
        %v2173 = vpop.f32.mrf.mxu0
        %v2174 = vadd.f32 %v2081, %v2173
        %v2175 = vpop.f32.mrf.mxu0
        %v2176 = vadd.f32 %v2081, %v2175
        %v2177 = vpop.f32.mrf.mxu0
        %v2178 = vadd.f32 %v2086, %v2177
        %v2179 = vpop.f32.mrf.mxu0
        %v2180 = vadd.f32 %v2086, %v2179
        %2181 = vdwg.mxu0
        %2182 = vmatprep.subr.bf16.mxu0 0
        %2183 = vmatpush1.bf16.msra.mxu0 0
        %2184 = vmatprep.subr.bf16.mxu0 0
        %2185 = vmatpush1.bf16.msra.mxu0 0
        %2186 = vmatprep.subr.bf16.mxu0 0
        %2187 = vmatpush1.bf16.msra.mxu0 0
        %2188 = vmatprep.subr.bf16.mxu0 0
        %2189 = vmatpush1.bf16.msra.mxu0 0
        %2190 = vmatprep.subr.bf16.mxu0 %v1997
        %2191 = vmatpush1.bf16.msra.mxu0 %v1994
        %2192 = vmatprep.subr.bf16.mxu0 %v1994
        %2193 = vmatpush1.bf16.msra.mxu0 %v1991
        %2194 = vmatprep.subr.bf16.mxu0 %v1985
        %2195 = vmatpush1.bf16.msra.mxu0 %v1982
        %2196 = vmatprep.subr.bf16.mxu0 %v1982
        %2197 = vmatpush1.bf16.msra.mxu0 %v1979
        %2198 = vmatprep.subr.bf16.mxu0 0
        %2199 = vmatpush2.bf16.msra.mxu0 0
        %2200 = vmatprep.subr.bf16.mxu0 0
        %2201 = vmatpush2.bf16.msra.mxu0 0
        %2202 = vmatprep.subr.bf16.mxu0 0
        %2203 = vmatpush2.bf16.msra.mxu0 0
        %2204 = vmatprep.subr.bf16.mxu0 0
        %2205 = vmatpush2.bf16.msra.mxu0 0
        %2206 = vmatprep.subr.bf16.mxu0 0
        %2207 = vmatpush2.bf16.msra.mxu0 0
        %2208 = vmatprep.subr.bf16.mxu0 0
        %2209 = vmatpush2.bf16.msra.mxu0 0
        %2210 = vmatprep.subr.bf16.mxu0 0
        %2211 = vmatpush2.bf16.msra.mxu0 0
        %2212 = vmatprep.subr.bf16.mxu0 0
        %2213 = vmatpush2.bf16.msra.mxu0 0
        %2214 = vmatprep.mubr.bf16.mxu0 0
        %2215 = vmatmul.mubr.bf16.gmra.mxu0 %v2094
        %v2216 = vpop.f32.mrf.mxu0
        %v2217 = vadd.f32 %v2081, %v2216
        %v2218 = vpop.f32.mrf.mxu0
        %v2219 = vadd.f32 %v2081, %v2218
        %v2220 = vpop.f32.mrf.mxu0
        %v2221 = vadd.f32 %v2086, %v2220
        %v2222 = vpop.f32.mrf.mxu0
        %v2223 = vadd.f32 %v2086, %v2222
        %2224 = vdwg.mxu0
        %2225 = vmatprep.subr.bf16.mxu0 0
        %2226 = vmatpush1.bf16.msra.mxu0 0
        %2227 = vmatprep.subr.bf16.mxu0 0
        %2228 = vmatpush1.bf16.msra.mxu0 0
        %2229 = vmatprep.subr.bf16.mxu0 0
        %2230 = vmatpush1.bf16.msra.mxu0 0
        %2231 = vmatprep.subr.bf16.mxu0 0
        %2232 = vmatpush1.bf16.msra.mxu0 0
        %2233 = vmatprep.subr.bf16.mxu0 %v2035
        %2234 = vmatpush1.bf16.msra.mxu0 %v2000
        %2235 = vmatprep.subr.bf16.mxu0 %v2000
        %2236 = vmatpush1.bf16.msra.mxu0 %v1997
        %2237 = vmatprep.subr.bf16.mxu0 %v2027
        %2238 = vmatpush1.bf16.msra.mxu0 %v1988
        %2239 = vmatprep.subr.bf16.mxu0 %v1988
        %2240 = vmatpush1.bf16.msra.mxu0 %v1985
        %2241 = vmatprep.subr.bf16.mxu0 0
        %2242 = vmatpush2.bf16.msra.mxu0 0
        %2243 = vmatprep.subr.bf16.mxu0 0
        %2244 = vmatpush2.bf16.msra.mxu0 0
        %2245 = vmatprep.subr.bf16.mxu0 0
        %2246 = vmatpush2.bf16.msra.mxu0 0
        %2247 = vmatprep.subr.bf16.mxu0 0
        %2248 = vmatpush2.bf16.msra.mxu0 0
        %2249 = vmatprep.subr.bf16.mxu0 0
        %2250 = vmatpush2.bf16.msra.mxu0 0
        %2251 = vmatprep.subr.bf16.mxu0 0
        %2252 = vmatpush2.bf16.msra.mxu0 0
        %2253 = vmatprep.subr.bf16.mxu0 0
        %2254 = vmatpush2.bf16.msra.mxu0 0
        %2255 = vmatprep.subr.bf16.mxu0 0
        %2256 = vmatpush2.bf16.msra.mxu0 0
        %2257 = vmatprep.mubr.bf16.mxu0 0
        %2258 = vmatmul.mubr.bf16.gmra.mxu0 %v2094
        %v2259 = vpop.f32.mrf.mxu0
        %v2260 = vadd.f32 %v2081, %v2259
        %v2261 = vpop.f32.mrf.mxu0
        %v2262 = vadd.f32 %v2081, %v2261
        %v2263 = vpop.f32.mrf.mxu0
        %v2264 = vadd.f32 %v2086, %v2263
        %v2265 = vpop.f32.mrf.mxu0
        %v2266 = vadd.f32 %v2086, %v2265
        %2267 = vdwg.mxu0
        %2268 = vmatprep.subr.bf16.mxu0 0
        %2269 = vmatpush1.bf16.msra.mxu0 0
        %2270 = vmatprep.subr.bf16.mxu0 0
        %2271 = vmatpush1.bf16.msra.mxu0 0
        %2272 = vmatprep.subr.bf16.mxu0 0
        %2273 = vmatpush1.bf16.msra.mxu0 0
        %2274 = vmatprep.subr.bf16.mxu0 0
        %2275 = vmatpush1.bf16.msra.mxu0 0
        %2276 = vmatprep.subr.bf16.mxu0 %v2009
        %2277 = vmatpush1.bf16.msra.mxu0 %v2006
        %2278 = vmatprep.subr.bf16.mxu0 %v2006
        %2279 = vmatpush1.bf16.msra.mxu0 %v2003
        %2280 = vmatprep.subr.bf16.mxu0 %v1997
        %2281 = vmatpush1.bf16.msra.mxu0 %v1994
        %2282 = vmatprep.subr.bf16.mxu0 %v1994
        %2283 = vmatpush1.bf16.msra.mxu0 %v1991
        %2284 = vmatprep.subr.bf16.mxu0 0
        %2285 = vmatpush2.bf16.msra.mxu0 0
        %2286 = vmatprep.subr.bf16.mxu0 0
        %2287 = vmatpush2.bf16.msra.mxu0 0
        %2288 = vmatprep.subr.bf16.mxu0 0
        %2289 = vmatpush2.bf16.msra.mxu0 0
        %2290 = vmatprep.subr.bf16.mxu0 0
        %2291 = vmatpush2.bf16.msra.mxu0 0
        %2292 = vmatprep.subr.bf16.mxu0 0
        %2293 = vmatpush2.bf16.msra.mxu0 0
        %2294 = vmatprep.subr.bf16.mxu0 0
        %2295 = vmatpush2.bf16.msra.mxu0 0
        %2296 = vmatprep.subr.bf16.mxu0 0
        %2297 = vmatpush2.bf16.msra.mxu0 0
        %2298 = vmatprep.subr.bf16.mxu0 0
        %2299 = vmatpush2.bf16.msra.mxu0 0
        %2300 = vmatprep.mubr.bf16.mxu0 0
        %2301 = vmatmul.mubr.bf16.gmra.mxu0 %v2094
        %v2302 = vpop.f32.mrf.mxu0
        %v2303 = vadd.f32 %v2081, %v2302
        %v2304 = vpop.f32.mrf.mxu0
        %v2305 = vadd.f32 %v2081, %v2304
        %v2306 = vpop.f32.mrf.mxu0
        %v2307 = vadd.f32 %v2086, %v2306
        %v2308 = vpop.f32.mrf.mxu0
        %v2309 = vadd.f32 %v2086, %v2308
        %2310 = vdwg.mxu0
        %2311 = vmatprep.subr.bf16.mxu0 0
        %2312 = vmatpush1.bf16.msra.mxu0 0
        %2313 = vmatprep.subr.bf16.mxu0 0
        %2314 = vmatpush1.bf16.msra.mxu0 0
        %2315 = vmatprep.subr.bf16.mxu0 0
        %2316 = vmatpush1.bf16.msra.mxu0 0
        %2317 = vmatprep.subr.bf16.mxu0 0
        %2318 = vmatpush1.bf16.msra.mxu0 0
        %2319 = vmatprep.subr.bf16.mxu0 %v2043
        %2320 = vmatpush1.bf16.msra.mxu0 %v2012
        %2321 = vmatprep.subr.bf16.mxu0 %v2012
        %2322 = vmatpush1.bf16.msra.mxu0 %v2009
        %2323 = vmatprep.subr.bf16.mxu0 %v2035
        %2324 = vmatpush1.bf16.msra.mxu0 %v2000
        %2325 = vmatprep.subr.bf16.mxu0 %v2000
        %2326 = vmatpush1.bf16.msra.mxu0 %v1997
        %2327 = vmatprep.subr.bf16.mxu0 0
        %2328 = vmatpush2.bf16.msra.mxu0 0
        %2329 = vmatprep.subr.bf16.mxu0 0
        %2330 = vmatpush2.bf16.msra.mxu0 0
        %2331 = vmatprep.subr.bf16.mxu0 0
        %2332 = vmatpush2.bf16.msra.mxu0 0
        %2333 = vmatprep.subr.bf16.mxu0 0
        %2334 = vmatpush2.bf16.msra.mxu0 0
        %2335 = vmatprep.subr.bf16.mxu0 0
        %2336 = vmatpush2.bf16.msra.mxu0 0
        %2337 = vmatprep.subr.bf16.mxu0 0
        %2338 = vmatpush2.bf16.msra.mxu0 0
        %2339 = vmatprep.subr.bf16.mxu0 0
        %2340 = vmatpush2.bf16.msra.mxu0 0
        %2341 = vmatprep.subr.bf16.mxu0 0
        %2342 = vmatpush2.bf16.msra.mxu0 0
        %2343 = vmatprep.mubr.bf16.mxu0 0
        %2344 = vmatmul.mubr.bf16.gmra.mxu0 %v2094
        %v2345 = vpop.f32.mrf.mxu0
        %v2346 = vadd.f32 %v2081, %v2345
        %v2347 = vpop.f32.mrf.mxu0
        %v2348 = vadd.f32 %v2081, %v2347
        %v2349 = vpop.f32.mrf.mxu0
        %v2350 = vadd.f32 %v2086, %v2349
        %v2351 = vpop.f32.mrf.mxu0
        %v2352 = vadd.f32 %v2086, %v2351
        %2353 = vdwg.mxu0
        %2354 = vmatprep.subr.bf16.mxu0 0
        %2355 = vmatpush1.bf16.msra.mxu0 0
        %2356 = vmatprep.subr.bf16.mxu0 0
        %2357 = vmatpush1.bf16.msra.mxu0 0
        %2358 = vmatprep.subr.bf16.mxu0 0
        %2359 = vmatpush1.bf16.msra.mxu0 0
        %2360 = vmatprep.subr.bf16.mxu0 0
        %2361 = vmatpush1.bf16.msra.mxu0 0
        %2362 = vmatprep.subr.bf16.mxu0 %v2061
        %2363 = vmatpush1.bf16.msra.mxu0 %v2057
        %2364 = vmatprep.subr.bf16.mxu0 %v2057
        %2365 = vmatpush1.bf16.msra.mxu0 %v2049
        %2366 = vmatprep.subr.bf16.mxu0 %v2009
        %2367 = vmatpush1.bf16.msra.mxu0 %v2006
        %2368 = vmatprep.subr.bf16.mxu0 %v2006
        %2369 = vmatpush1.bf16.msra.mxu0 %v2003
        %2370 = vmatprep.subr.bf16.mxu0 0
        %2371 = vmatpush2.bf16.msra.mxu0 0
        %2372 = vmatprep.subr.bf16.mxu0 0
        %2373 = vmatpush2.bf16.msra.mxu0 0
        %2374 = vmatprep.subr.bf16.mxu0 0
        %2375 = vmatpush2.bf16.msra.mxu0 0
        %2376 = vmatprep.subr.bf16.mxu0 0
        %2377 = vmatpush2.bf16.msra.mxu0 0
        %2378 = vmatprep.subr.bf16.mxu0 0
        %2379 = vmatpush2.bf16.msra.mxu0 0
        %2380 = vmatprep.subr.bf16.mxu0 0
        %2381 = vmatpush2.bf16.msra.mxu0 0
        %2382 = vmatprep.subr.bf16.mxu0 0
        %2383 = vmatpush2.bf16.msra.mxu0 0
        %2384 = vmatprep.subr.bf16.mxu0 0
        %2385 = vmatpush2.bf16.msra.mxu0 0
        %2386 = vmatprep.mubr.bf16.mxu0 0
        %2387 = vmatmul.mubr.bf16.gmra.mxu0 %v2094
        %v2388 = vpop.f32.mrf.mxu0
        %v2389 = vadd.f32 %v2081, %v2388
        %v2390 = vpop.f32.mrf.mxu0
        %v2391 = vadd.f32 %v2081, %v2390
        %v2392 = vpop.f32.mrf.mxu0
        %v2393 = vadd.f32 %v2086, %v2392
        %v2394 = vpop.f32.mrf.mxu0
        %v2395 = vadd.f32 %v2086, %v2394
        %2396 = vdwg.mxu0
        %2397 = vmatprep.subr.bf16.mxu0 0
        %2398 = vmatpush1.bf16.msra.mxu0 0
        %2399 = vmatprep.subr.bf16.mxu0 0
        %2400 = vmatpush1.bf16.msra.mxu0 0
        %2401 = vmatprep.subr.bf16.mxu0 0
        %2402 = vmatpush1.bf16.msra.mxu0 0
        %2403 = vmatprep.subr.bf16.mxu0 0
        %2404 = vmatpush1.bf16.msra.mxu0 0
        %2405 = vmatprep.subr.bf16.mxu0 %v2072
        %2406 = vmatpush1.bf16.msra.mxu0 %v2066
        %2407 = vmatprep.subr.bf16.mxu0 %v2066
        %2408 = vmatpush1.bf16.msra.mxu0 %v2061
        %2409 = vmatprep.subr.bf16.mxu0 %v2043
        %2410 = vmatpush1.bf16.msra.mxu0 %v2012
        %2411 = vmatprep.subr.bf16.mxu0 %v2012
        %2412 = vmatpush1.bf16.msra.mxu0 %v2009
        %2413 = vmatprep.subr.bf16.mxu0 0
        %2414 = vmatpush2.bf16.msra.mxu0 0
        %2415 = vmatprep.subr.bf16.mxu0 0
        %2416 = vmatpush2.bf16.msra.mxu0 0
        %2417 = vmatprep.subr.bf16.mxu0 0
        %2418 = vmatpush2.bf16.msra.mxu0 0
        %2419 = vmatprep.subr.bf16.mxu0 0
        %2420 = vmatpush2.bf16.msra.mxu0 0
        %2421 = vmatprep.subr.bf16.mxu0 0
        %2422 = vmatpush2.bf16.msra.mxu0 0
        %2423 = vmatprep.subr.bf16.mxu0 0
        %2424 = vmatpush2.bf16.msra.mxu0 0
        %2425 = vmatprep.subr.bf16.mxu0 0
        %2426 = vmatpush2.bf16.msra.mxu0 0
        %2427 = vmatprep.subr.bf16.mxu0 0
        %2428 = vmatpush2.bf16.msra.mxu0 0
        %2429 = vmatprep.mubr.bf16.mxu0 0
        %2430 = vmatmul.mubr.bf16.gmra.mxu0 %v2094
        %v2431 = vpop.f32.mrf.mxu0
        %v2432 = vadd.f32 %v2081, %v2431
        %v2433 = vpop.f32.mrf.mxu0
        %v2434 = vadd.f32 %v2081, %v2433
        %v2435 = vpop.f32.mrf.mxu0
        %v2436 = vadd.f32 %v2086, %v2435
        %v2437 = vpop.f32.mrf.mxu0
        %v2438 = vadd.f32 %v2086, %v2437
        %2439 = vdwg.mxu0
        %2440 = vst [vmem:[%s430] sm:$0xff] %v2131
        %2441 = vst [vmem:[%s430 + $0x8] sm:$0xff] %v2133
        %2442 = vst [vmem:[%s430 + $0x10] sm:$0xff] %v2174
        %2443 = vst [vmem:[%s430 + $0x18] sm:$0xff] %v2176
        %2444 = vst [vmem:[%s430 + $0x20] sm:$0xff] %v2217
        %2445 = vst [vmem:[%s430 + $0x28] sm:$0xff] %v2219
        %2446 = vst [vmem:[%s430 + $0x30] sm:$0xff] %v2260
        %2447 = vst [vmem:[%s430 + $0x38] sm:$0xff] %v2262
        %2448 = vst [vmem:[%s430 + $0x40] sm:$0xff] %v2303
        %2449 = vst [vmem:[%s430 + $0x48] sm:$0xff] %v2305
        %2450 = vst [vmem:[%s430 + $0x50] sm:$0xff] %v2346
        %2451 = vst [vmem:[%s430 + $0x58] sm:$0xff] %v2348
        %2452 = vst [vmem:[%s430 + $0x60] sm:$0xff] %v2389
        %2453 = vst [vmem:[%s430 + $0x68] sm:$0xff] %v2391
        %2454 = vst [vmem:[%s430 + $0x70] sm:$0xff] %v2432
        %2455 = vst [vmem:[%s430 + $0x78] sm:$0xff] %v2434
        %2456 = vst [vmem:[%s430 + $0x80] sm:$0xf] %v2135
        %2457 = vst [vmem:[%s430 + $0x88] sm:$0xf] %v2137
        %2458 = vst [vmem:[%s430 + $0x90] sm:$0xf] %v2178
        %2459 = vst [vmem:[%s430 + $0x98] sm:$0xf] %v2180
        %2460 = vst [vmem:[%s430 + $0xa0] sm:$0xf] %v2221
        %2461 = vst [vmem:[%s430 + $0xa8] sm:$0xf] %v2223
        %2462 = vst [vmem:[%s430 + $0xb0] sm:$0xf] %v2264
        %2463 = vst [vmem:[%s430 + $0xb8] sm:$0xf] %v2266
        %2464 = vst [vmem:[%s430 + $0xc0] sm:$0xf] %v2307
        %2465 = vst [vmem:[%s430 + $0xc8] sm:$0xf] %v2309
        %2466 = vst [vmem:[%s430 + $0xd0] sm:$0xf] %v2350
        %2467 = vst [vmem:[%s430 + $0xd8] sm:$0xf] %v2352
        %2468 = vst [vmem:[%s430 + $0xe0] sm:$0xf] %v2393
        %2469 = vst [vmem:[%s430 + $0xe8] sm:$0xf] %v2395
        %2470 = vst [vmem:[%s430 + $0xf0] sm:$0xf] %v2436
        %2471 = vst [vmem:[%s430 + $0xf8] sm:$0xf] %v2438
        %p2472 = scmp.lt.s32.totalorder %s24, 1
        %s2473 = scalar_select %p2472, %s24, 1
        %s2474 = smul.addr %s2473, 32
        %s2475 = smul.addr %s2474, 8
        %s2476 = scalar_lea.vmem %s10, %s2475
        // Predicated region
        $region81: #{decoder_forward.1} parent=59 // pred_check
          %p2477 = pneg %p257
        $region82: #{decoder_forward.1} parent=59 // pred_check_branch
          %2479 = sbr.rel (%p2477) target = $region84
        $region83: #{decoder_forward.1} parent=59 // pred_region
          _
        $region84: #{decoder_forward.1} parent=59 // pred_fallthru
          _
      $region60: #{decoder_forward.1} parent=5 // pred_fallthru
        _
      %p2480 = scmp.le.s32.totalorder 2, %s19
      // Predicated region
      $region85: #{decoder_forward.1} parent=5 // pred_check
        %p2481 = pneg %p2480
      $region86: #{decoder_forward.1} parent=5 // pred_check_branch
        %2483 = sbr.rel (%p2481) target = $region88
      $region87: #{decoder_forward.1} parent=5 // pred_region
        %s2484 = ssub.s32 %s19, 2
        // Predicated region
        $region89: #{decoder_forward.1} parent=87 // pred_check
          %p2485 = pneg %p263
        $region90: #{decoder_forward.1} parent=87 // pred_check_branch
          %2487 = sbr.rel (%p2485) target = $region92
        $region91: #{decoder_forward.1} parent=87 // pred_region
          %p2488 = scmp.lt.s32.totalorder %s25, 1
          %s2489 = scalar_select %p2488, %s25, 1
          %s2490 = smul.addr %s2489, 32
          %s2491 = smul.addr %s2490, 8
          %s2492 = scalar_lea.vmem %s10, %s2491
        $region92: #{decoder_forward.1} parent=87 // pred_fallthru
          _
      $region88: #{decoder_forward.1} parent=5 // pred_fallthru
        _
    $region6: #{decoder_forward.1} parent=1 // loop_footer
      %s23 = sadd.s32 1, %s19
    $region7: #{decoder_forward.1} parent=1 // loop_footer_branch
      %18 = sbr.rel target = $region3
    $region8: #{decoder_forward.1} parent=1 // loop_exit
      _
    %2493 = vsyncpa [#allocation6], 1
    %s2494 = scalar_lea.sflag [#allocation6], 1
    %2495 = vsyncpa %s2494, 1
    %2496 = vsyncpa [#allocation8], 1
    %2497 = vsyncpa [#allocation11], 1

</llo_original>
